<compile_context>
chip_gen: v7x
topology: tpu7x:2x2x1
jax: 0.10.0
libtpu: 0.0.40
codegen_flags: <defaults>
</compile_context>

<pallas_src>
import jax
import jax.numpy as jnp
from jax.experimental import pallas as pl
from jax.experimental.pallas import tpu as pltpu


IN_DIM = 1024
REP_DIM = 768
H1_DIM = 256
H2_DIM = 128
LANE = 128
NEG_PAD = -1e30  # bias for padded output lanes -> exp() underflows to exactly 0


def mlp_block_kernel(x_ref,
                     w_rep_ref, b_rep_ref,
                     w1_ref, b1_ref,
                     w2_ref, b2_ref,
                     w3_ref, b3_ref,
                     out_ref, rep_ref):
    # x tile: [TB, 1024] f32 -> bf16 for the MXU, accumulate in f32.
    x = x_ref[...].astype(jnp.bfloat16)

    # layer_representation: 1024 -> 768   (rep returned as rep_ref.dtype)
    rep = jnp.dot(x, w_rep_ref[...],
                  preferred_element_type=jnp.float32) + b_rep_ref[...]
    rep_ref[...] = rep.astype(rep_ref.dtype)

    # x = relu( layer1( relu(rep) ) )     : 768 -> 256
    h = jnp.maximum(rep, 0.0).astype(jnp.bfloat16)
    h = jnp.dot(h, w1_ref[...],
                preferred_element_type=jnp.float32) + b1_ref[...]
    h = jnp.maximum(h, 0.0).astype(jnp.bfloat16)

    # x = relu( layer2(x) )               : 256 -> 128
    h = jnp.dot(h, w2_ref[...],
                preferred_element_type=jnp.float32) + b2_ref[...]
    h = jnp.maximum(h, 0.0).astype(jnp.bfloat16)

    # output = softmax( layer3(x) )       : 128 -> output_dim (lane-padded)
    logits = jnp.dot(h, w3_ref[...],
                     preferred_element_type=jnp.float32) + b3_ref[...]
    m = jnp.max(logits, axis=-1, keepdims=True)
    e = jnp.exp(logits - m)
    denom = jnp.sum(e, axis=-1, keepdims=True)
    out_ref[...] = (e / denom).astype(out_ref.dtype)   # exact normalization


def _pick_batch_tile(B, tb):
    """Batch tile: whole (sublane-rounded) batch when small; otherwise a
    multiple of 128 capped so the grid has >= 2 steps (v7x megacore)."""
    b8 = pl.cdiv(B, 8) * 8
    if b8 <= 128:
        return b8
    tb = max(128, (tb // 128) * 128)
    half = max(128, (pl.cdiv(B, 2) // 128) * 128)
    return min(tb, half)


def _spec(shape, index_map, *, single_buffer=False):
    """BlockSpec helper: single-buffer grid-invariant operands when supported."""
    if single_buffer:
        try:
            return pl.BlockSpec(shape, index_map, pipeline_mode=pl.Buffered(1))
        except TypeError:  # older jax without pipeline_mode kwarg
            pass
    return pl.BlockSpec(shape, index_map)


def mlp_block_forward(x, params, *, tb=512, rep_dtype=jnp.float32):
    """x: [B, 1024] float32.
    params: (w_rep, b_rep, w1, b1, w2, b2, w3, b3); weights [in, out] bf16,
    biases [1, out] f32.
    Returns (softmax_output [B, output_dim] f32, representation [B, 768] rep_dtype)."""
    (w_rep, b_rep, w1, b1, w2, b2, w3, b3) = params
    B = x.shape[0]
    output_dim = w3.shape[1]

    # --- pad output_dim to a lane-dense multiple of 128 -----------------------
    out_pad = max(LANE, pl.cdiv(output_dim, LANE) * LANE)
    if out_pad != output_dim:
        w3_p = jnp.zeros((H2_DIM, out_pad), w3.dtype).at[:, :output_dim].set(w3)
        b3_p = jnp.full((1, out_pad), NEG_PAD, b3.dtype).at[:, :output_dim].set(b3)
    else:
        w3_p, b3_p = w3, b3

    # --- batch tile + grid (no wrapper-side batch padding; Pallas masks) ------
    TB = _pick_batch_tile(B, tb)
    grid = (pl.cdiv(B, TB),)

    const = lambda i: (0, 0)                   # resident weights / biases
    batch = lambda i: (i, 0)                   # batch-tiled operands

    # --- advisory cost estimate ------------------------------------------------
    flops = 2 * B * (IN_DIM * REP_DIM + REP_DIM * H1_DIM
                     + H1_DIM * H2_DIM + H2_DIM * out_pad)
    weight_bytes = 2 * (IN_DIM * REP_DIM + REP_DIM * H1_DIM
                        + H1_DIM * H2_DIM + H2_DIM * out_pad)
    rep_bytes = jnp.dtype(rep_dtype).itemsize
    bytes_accessed = B * (4 * IN_DIM + rep_bytes * REP_DIM + 4 * out_pad) + weight_bytes
    cost = pl.CostEstimate(flops=flops, transcendentals=B * out_pad,
                           bytes_accessed=bytes_accessed)

    compiler_kwargs = dict(dimension_semantics=("parallel",))
    if TB > 256:
        # Large tiles exceed v5e's 16 MiB scoped-VMEM default; raise the cap
        # (well under physical VMEM on every generation).
        compiler_kwargs["vmem_limit_bytes"] = 48 * 1024 * 1024

    out, rep = pl.pallas_call(
        mlp_block_kernel,
        out_shape=(
            jax.ShapeDtypeStruct((B, out_pad), jnp.float32),   # softmax out
            jax.ShapeDtypeStruct((B, REP_DIM), rep_dtype),     # representation
        ),
        grid_spec=pltpu.PrefetchScalarGridSpec(
            num_scalar_prefetch=0,
            grid=grid,
            in_specs=[
                _spec((TB, IN_DIM), batch),                              # x
                _spec((IN_DIM, REP_DIM), const, single_buffer=True),     # w_rep
                _spec((1, REP_DIM), const, single_buffer=True),          # b_rep
                _spec((REP_DIM, H1_DIM), const, single_buffer=True),     # w1
                _spec((1, H1_DIM), const, single_buffer=True),           # b1
                _spec((H1_DIM, H2_DIM), const, single_buffer=True),      # w2
                _spec((1, H2_DIM), const, single_buffer=True),           # b2
                _spec((H2_DIM, out_pad), const, single_buffer=True),     # w3 (padded)
                _spec((1, out_pad), const, single_buffer=True),          # b3 (padded)
            ],
            out_specs=[
                _spec((TB, out_pad), batch),
                _spec((TB, REP_DIM), batch),
            ],
        ),
        compiler_params=pltpu.CompilerParams(**compiler_kwargs),
        cost_estimate=cost,
    )(x, w_rep, b_rep, w1, b1, w2, b2, w3_p, b3_p)

    if out_pad != output_dim:
        out = out[:, :output_dim]
    return out, rep


def init_params(key, output_dim):
    """PyTorch-Linear-style init (uniform ±1/sqrt(fan_in)).
    Weights stored as [in, out] in bf16 (MXU-native); biases in f32."""
    def linear(key, fan_in, fan_out):
        kw, kb = jax.random.split(key)
        bound = 1.0 / jnp.sqrt(fan_in)
        w = jax.random.uniform(kw, (fan_in, fan_out), jnp.float32,
                               minval=-bound, maxval=bound).astype(jnp.bfloat16)
        b = jax.random.uniform(kb, (1, fan_out), jnp.float32,
                               minval=-bound, maxval=bound)
        return w, b

    k0, k1, k2, k3 = jax.random.split(key, 4)
    w_rep, b_rep = linear(k0, IN_DIM, REP_DIM)
    w1, b1 = linear(k1, REP_DIM, H1_DIM)
    w2, b2 = linear(k2, H1_DIM, H2_DIM)
    w3, b3 = linear(k3, H2_DIM, output_dim)
    return (w_rep, b_rep, w1, b1, w2, b2, w3, b3)


def mlp_block_reference(x, params):
    """Pure-JAX f32 reference (weights upcast from their bf16 storage)."""
    (w_rep, b_rep, w1, b1, w2, b2, w3, b3) = params
    f = jnp.float32
    rep = x @ w_rep.astype(f) + b_rep
    h = jnp.maximum(rep, 0.0) @ w1.astype(f) + b1
    h = jnp.maximum(h, 0.0) @ w2.astype(f) + b2
    h = jnp.maximum(h, 0.0) @ w3.astype(f) + b3
    out = jax.nn.softmax(h, axis=-1)
    return out, rep


if __name__ == "__main__":
    key = jax.random.PRNGKey(0)
    k_param, k_x1, k_x2 = jax.random.split(key, 3)

    output_dim = 16
    params = init_params(k_param, output_dim)

    # --- small batch: single tile, no vmem override ---------------------------
    batch = 8
    x = jax.random.normal(k_x1, (batch, IN_DIM), dtype=jnp.float32)
    out, rep = mlp_block_forward(x, params)
    out = jax.block_until_ready(out)
    rep = jax.block_until_ready(rep)

    assert out.shape == (batch, output_dim)
    assert rep.shape == (batch, REP_DIM)
    assert jnp.allclose(jnp.sum(out, axis=-1), 1.0, atol=1e-3)

    out_ref, rep_ref = mlp_block_reference(x, params)
    assert jnp.allclose(rep, rep_ref, atol=1e-1)
    assert jnp.allclose(out, out_ref, atol=5e-2)

    # --- non-divisible batch: 2 grid steps + masked partial final block -------
    batch2 = 200
    x2 = jax.random.normal(k_x2, (batch2, IN_DIM), dtype=jnp.float32)
    out2, rep2 = mlp_block_forward(x2, params)
    out2 = jax.block_until_ready(out2)
    rep2 = jax.block_until_ready(rep2)

    assert out2.shape == (batch2, output_dim)
    assert rep2.shape == (batch2, REP_DIM)
    out2_ref, rep2_ref = mlp_block_reference(x2, params)
    assert jnp.allclose(rep2, rep2_ref, atol=1e-1)
    assert jnp.allclose(out2, out2_ref, atol=5e-2)
    assert jnp.allclose(jnp.sum(out2, axis=-1), 1.0, atol=1e-3)

    print("KERNEL_OK")
</pallas_src>

<mosaic_0001>
module attributes {stable_mosaic.version = 11 : i64} {
  func.func @mlp_block_kernel(%arg0: i32, %arg1: memref<8x1024xf32, #tpu.memory_space<vmem>>, %arg2: memref<1024x768xbf16, #tpu.memory_space<vmem>>, %arg3: memref<1x768xf32, #tpu.memory_space<vmem>>, %arg4: memref<768x256xbf16, #tpu.memory_space<vmem>>, %arg5: memref<1x256xf32, #tpu.memory_space<vmem>>, %arg6: memref<256x128xbf16, #tpu.memory_space<vmem>>, %arg7: memref<1x128xf32, #tpu.memory_space<vmem>>, %arg8: memref<128x128xbf16, #tpu.memory_space<vmem>>, %arg9: memref<1x128xf32, #tpu.memory_space<vmem>>, %arg10: memref<8x128xf32, #tpu.memory_space<vmem>>, %arg11: memref<8x768xf32, #tpu.memory_space<vmem>>) attributes {dimension_semantics = [#tpu.dimension_semantics<parallel>], iteration_bounds = array<i64: 1>, scalar_prefetch = 0 : i64, scratch_operands = 0 : i64, tpu.core_type = #tpu.core_type<tc>, window_params = [{transform_indices = @transform_0, window_bounds = array<i64: 8, 1024>}, {pipeline_mode = #tpu.pipeline_mode<synchronous>, transform_indices = @transform_1, window_bounds = array<i64: 1024, 768>}, {pipeline_mode = #tpu.pipeline_mode<synchronous>, transform_indices = @transform_2, window_bounds = array<i64: 1, 768>}, {pipeline_mode = #tpu.pipeline_mode<synchronous>, transform_indices = @transform_3, window_bounds = array<i64: 768, 256>}, {pipeline_mode = #tpu.pipeline_mode<synchronous>, transform_indices = @transform_4, window_bounds = array<i64: 1, 256>}, {pipeline_mode = #tpu.pipeline_mode<synchronous>, transform_indices = @transform_5, window_bounds = array<i64: 256, 128>}, {pipeline_mode = #tpu.pipeline_mode<synchronous>, transform_indices = @transform_6, window_bounds = array<i64: 1, 128>}, {pipeline_mode = #tpu.pipeline_mode<synchronous>, transform_indices = @transform_7, window_bounds = array<i64: 128, 128>}, {pipeline_mode = #tpu.pipeline_mode<synchronous>, transform_indices = @transform_8, window_bounds = array<i64: 1, 128>}, {transform_indices = @transform_9, window_bounds = array<i64: 8, 128>}, {transform_indices = @transform_10, window_bounds = array<i64: 8, 768>}]} {
    %c0 = arith.constant 0 : index
    %c0_0 = arith.constant 0 : index
    %0 = vector.load %arg1[%c0, %c0_0] : memref<8x1024xf32, #tpu.memory_space<vmem>>, vector<8x1024xf32>
    %1 = arith.truncf %0 : vector<8x1024xf32> to vector<8x1024xbf16>
    %c0_1 = arith.constant 0 : index
    %c0_2 = arith.constant 0 : index
    %2 = vector.load %arg2[%c0_1, %c0_2] : memref<1024x768xbf16, #tpu.memory_space<vmem>>, vector<1024x768xbf16>
    %cst = arith.constant dense<0.000000e+00> : vector<8x768xf32>
    %3 = tpu.matmul %1, %2, %cst {dimension_numbers = #tpu.dot_dimension_numbers<[1], [0], [0], [1], [0, 0, 1, 1], [], []>} : vector<8x1024xbf16>, vector<1024x768xbf16>, vector<8x768xf32> -> vector<8x768xf32>
    %c0_3 = arith.constant 0 : index
    %c0_4 = arith.constant 0 : index
    %4 = vector.load %arg3[%c0_3, %c0_4] : memref<1x768xf32, #tpu.memory_space<vmem>>, vector<1x768xf32>
    %5 = vector.broadcast %4 : vector<1x768xf32> to vector<8x768xf32>
    %6 = arith.addf %3, %5 : vector<8x768xf32>
    %c0_5 = arith.constant 0 : index
    %c0_6 = arith.constant 0 : index
    %7 = vector.load %arg11[%c0_5, %c0_6] : memref<8x768xf32, #tpu.memory_space<vmem>>, vector<8x768xf32>
    tpu.vector_store %arg11[%c0_5, %c0_6], %6 {strides = array<i32>} : memref<8x768xf32, #tpu.memory_space<vmem>>, vector<8x768xf32>,
    %cst_7 = arith.constant 0.000000e+00 : f32
    %8 = vector.broadcast %cst_7 : f32 to vector<8x768xf32>
    %9 = arith.maximumf %6, %8 : vector<8x768xf32>
    %10 = arith.truncf %9 : vector<8x768xf32> to vector<8x768xbf16>
    %c0_8 = arith.constant 0 : index
    %c0_9 = arith.constant 0 : index
    %11 = vector.load %arg4[%c0_8, %c0_9] : memref<768x256xbf16, #tpu.memory_space<vmem>>, vector<768x256xbf16>
    %cst_10 = arith.constant dense<0.000000e+00> : vector<8x256xf32>
    %12 = tpu.matmul %10, %11, %cst_10 {dimension_numbers = #tpu.dot_dimension_numbers<[1], [0], [0], [1], [0, 0, 1, 1], [], []>} : vector<8x768xbf16>, vector<768x256xbf16>, vector<8x256xf32> -> vector<8x256xf32>
    %c0_11 = arith.constant 0 : index
    %c0_12 = arith.constant 0 : index
    %13 = vector.load %arg5[%c0_11, %c0_12] : memref<1x256xf32, #tpu.memory_space<vmem>>, vector<1x256xf32>
    %14 = vector.broadcast %13 : vector<1x256xf32> to vector<8x256xf32>
    %15 = arith.addf %12, %14 : vector<8x256xf32>
    %cst_13 = arith.constant 0.000000e+00 : f32
    %16 = vector.broadcast %cst_13 : f32 to vector<8x256xf32>
    %17 = arith.maximumf %15, %16 : vector<8x256xf32>
    %18 = arith.truncf %17 : vector<8x256xf32> to vector<8x256xbf16>
    %c0_14 = arith.constant 0 : index
    %c0_15 = arith.constant 0 : index
    %19 = vector.load %arg6[%c0_14, %c0_15] : memref<256x128xbf16, #tpu.memory_space<vmem>>, vector<256x128xbf16>
    %cst_16 = arith.constant dense<0.000000e+00> : vector<8x128xf32>
    %20 = tpu.matmul %18, %19, %cst_16 {dimension_numbers = #tpu.dot_dimension_numbers<[1], [0], [0], [1], [0, 0, 1, 1], [], []>} : vector<8x256xbf16>, vector<256x128xbf16>, vector<8x128xf32> -> vector<8x128xf32>
    %c0_17 = arith.constant 0 : index
    %c0_18 = arith.constant 0 : index
    %21 = vector.load %arg7[%c0_17, %c0_18] : memref<1x128xf32, #tpu.memory_space<vmem>>, vector<1x128xf32>
    %22 = vector.broadcast %21 : vector<1x128xf32> to vector<8x128xf32>
    %23 = arith.addf %20, %22 : vector<8x128xf32>
    %cst_19 = arith.constant 0.000000e+00 : f32
    %24 = vector.broadcast %cst_19 : f32 to vector<8x128xf32>
    %25 = arith.maximumf %23, %24 : vector<8x128xf32>
    %26 = arith.truncf %25 : vector<8x128xf32> to vector<8x128xbf16>
    %c0_20 = arith.constant 0 : index
    %c0_21 = arith.constant 0 : index
    %27 = vector.load %arg8[%c0_20, %c0_21] : memref<128x128xbf16, #tpu.memory_space<vmem>>, vector<128x128xbf16>
    %cst_22 = arith.constant dense<0.000000e+00> : vector<8x128xf32>
    %28 = tpu.matmul %26, %27, %cst_22 {dimension_numbers = #tpu.dot_dimension_numbers<[1], [0], [0], [1], [0, 0, 1, 1], [], []>} : vector<8x128xbf16>, vector<128x128xbf16>, vector<8x128xf32> -> vector<8x128xf32>
    %c0_23 = arith.constant 0 : index
    %c0_24 = arith.constant 0 : index
    %29 = vector.load %arg9[%c0_23, %c0_24] : memref<1x128xf32, #tpu.memory_space<vmem>>, vector<1x128xf32>
    %30 = vector.broadcast %29 : vector<1x128xf32> to vector<8x128xf32>
    %31 = arith.addf %28, %30 : vector<8x128xf32>
    %cst_25 = arith.constant dense<0xFF800000> : vector<8xf32>
    %32 = vector.multi_reduction <maximumf>, %31, %cst_25 [1] : vector<8x128xf32> to vector<8xf32>
    %33 = vector.shape_cast %32 : vector<8xf32> to vector<8x1xf32>
    %34 = vector.broadcast %33 : vector<8x1xf32> to vector<8x128xf32>
    %35 = arith.subf %31, %34 : vector<8x128xf32>
    %36 = math.exp %35 : vector<8x128xf32>
    %cst_26 = arith.constant dense<0.000000e+00> : vector<8xf32>
    %37 = vector.multi_reduction <add>, %36, %cst_26 [1] : vector<8x128xf32> to vector<8xf32>
    %38 = vector.shape_cast %37 : vector<8xf32> to vector<8x1xf32>
    %39 = vector.broadcast %38 : vector<8x1xf32> to vector<8x128xf32>
    %40 = arith.divf %36, %39 : vector<8x128xf32>
    %c0_27 = arith.constant 0 : index
    %c0_28 = arith.constant 0 : index
    %41 = vector.load %arg10[%c0_27, %c0_28] : memref<8x128xf32, #tpu.memory_space<vmem>>, vector<8x128xf32>
    tpu.vector_store %arg10[%c0_27, %c0_28], %40 {strides = array<i32>} : memref<8x128xf32, #tpu.memory_space<vmem>>, vector<8x128xf32>,
    return
  }
  func.func @transform_0(%arg0: i32) -> (i32, i32) {
    %c0_i32 = arith.constant 0 : i32
    %c0_i32_0 = arith.constant 0 : i32
    return %arg0, %c0_i32 : i32, i32
  }
  func.func @transform_1(%arg0: i32) -> (i32, i32) {
    %c0_i32 = arith.constant 0 : i32
    %c0_i32_0 = arith.constant 0 : i32
    %c0_i32_1 = arith.constant 0 : i32
    return %c0_i32, %c0_i32_0 : i32, i32
  }
  func.func @transform_2(%arg0: i32) -> (i32, i32) {
    %c0_i32 = arith.constant 0 : i32
    %c0_i32_0 = arith.constant 0 : i32
    %c0_i32_1 = arith.constant 0 : i32
    return %c0_i32, %c0_i32_0 : i32, i32
  }
  func.func @transform_3(%arg0: i32) -> (i32, i32) {
    %c0_i32 = arith.constant 0 : i32
    %c0_i32_0 = arith.constant 0 : i32
    %c0_i32_1 = arith.constant 0 : i32
    return %c0_i32, %c0_i32_0 : i32, i32
  }
  func.func @transform_4(%arg0: i32) -> (i32, i32) {
    %c0_i32 = arith.constant 0 : i32
    %c0_i32_0 = arith.constant 0 : i32
    %c0_i32_1 = arith.constant 0 : i32
    return %c0_i32, %c0_i32_0 : i32, i32
  }
  func.func @transform_5(%arg0: i32) -> (i32, i32) {
    %c0_i32 = arith.constant 0 : i32
    %c0_i32_0 = arith.constant 0 : i32
    %c0_i32_1 = arith.constant 0 : i32
    return %c0_i32, %c0_i32_0 : i32, i32
  }
  func.func @transform_6(%arg0: i32) -> (i32, i32) {
    %c0_i32 = arith.constant 0 : i32
    %c0_i32_0 = arith.constant 0 : i32
    %c0_i32_1 = arith.constant 0 : i32
    return %c0_i32, %c0_i32_0 : i32, i32
  }
  func.func @transform_7(%arg0: i32) -> (i32, i32) {
    %c0_i32 = arith.constant 0 : i32
    %c0_i32_0 = arith.constant 0 : i32
    %c0_i32_1 = arith.constant 0 : i32
    return %c0_i32, %c0_i32_0 : i32, i32
  }
  func.func @transform_8(%arg0: i32) -> (i32, i32) {
    %c0_i32 = arith.constant 0 : i32
    %c0_i32_0 = arith.constant 0 : i32
    %c0_i32_1 = arith.constant 0 : i32
    return %c0_i32, %c0_i32_0 : i32, i32
  }
  func.func @transform_9(%arg0: i32) -> (i32, i32) {
    %c0_i32 = arith.constant 0 : i32
    %c0_i32_0 = arith.constant 0 : i32
    return %arg0, %c0_i32 : i32, i32
  }
  func.func @transform_10(%arg0: i32) -> (i32, i32) {
    %c0_i32 = arith.constant 0 : i32
    %c0_i32_0 = arith.constant 0 : i32
    return %arg0, %c0_i32 : i32, i32
  }
}

</mosaic_0001>

<llo_original>
// kernel: tpu_custom_call.1
$region0: #{tpu_custom_call.1}
  #allocation0 [shape = 'u32[]', space=smem, size = 0x4, offset = 0x4, fixed_abs, tag = 'smem constant byte address 0x4 - core index']
  #allocation1 [shape = 'u32[144,128]{1,0:T(1,128)}', space=vmem, size = 0x12000, scoped, tag = 'internal scratch']
  %s0 = inlined_call_operand.hbm [shape: f32[8,1024], index: 0, kind: input, shape index: {}]
  %s1 = inlined_call_operand.hbm [shape: bf16[1024,768], index: 1, kind: input, shape index: {}]
  %s2 = inlined_call_operand.hbm [shape: f32[1,768], index: 2, kind: input, shape index: {}]
  %s3 = inlined_call_operand.hbm [shape: bf16[768,256], index: 3, kind: input, shape index: {}]
  %s4 = inlined_call_operand.hbm [shape: f32[1,256], index: 4, kind: input, shape index: {}]
  %s5 = inlined_call_operand.hbm [shape: bf16[256,128], index: 5, kind: input, shape index: {}]
  %s6 = inlined_call_operand.hbm [shape: f32[1,128], index: 6, kind: input, shape index: {}]
  %s7 = inlined_call_operand.hbm [shape: bf16[128,128], index: 7, kind: input, shape index: {}]
  %s8 = inlined_call_operand.hbm [shape: f32[1,128], index: 8, kind: input, shape index: {}]
  %s9 = inlined_call_operand.hbm [shape: f32[8,128], index: 9, kind: output, shape index: {0}]
  %s10 = inlined_call_operand.hbm [shape: f32[8,768], index: 10, kind: output, shape index: {1}]
  %11 = xla_tuple %s9, %s10
  %s12 = sld [smem:[#allocation0]]
  $region90: #{tpu_custom_call.1} parent=0
    _
  %s14 = ssub.s32 1, %s12
  %s15 = scalar_select 0, %s14, %s12
  $region1: #{tpu_custom_call.1} parent=0
    #allocation2 [shape = 'u8[32768]{0}', space=vmem, size = 0x8000, scoped, tag = 'input window, operand 0, single buffered']
    #allocation3 [shape = 's32[1]{0}', space=sflag, size = 0x4, scoped, tag = 'scoped memory for tpu_custom_call.1']
    #allocation4 [shape = 's32[1]{0}', space=sflag, size = 0x4, scoped, tag = 'scoped memory for tpu_custom_call.1']
    #allocation5 [shape = 'u8[1572864]{0}', space=vmem, size = 0x180000, scoped, tag = 'input window, operand 1, single buffered']
    #allocation6 [shape = 's32[1]{0}', space=sflag, size = 0x4, scoped, tag = 'scoped memory for tpu_custom_call.1']
    #allocation7 [shape = 'u8[3072]{0}', space=vmem, size = 0xc00, scoped, tag = 'input window, operand 2, single buffered']
    #allocation8 [shape = 'u8[393216]{0}', space=vmem, size = 0x60000, scoped, tag = 'input window, operand 3, single buffered']
    #allocation9 [shape = 's32[1]{0}', space=sflag, size = 0x4, scoped, tag = 'scoped memory for tpu_custom_call.1']
    #allocation10 [shape = 'u8[1024]{0}', space=vmem, size = 0x400, scoped, tag = 'input window, operand 4, single buffered']
    #allocation11 [shape = 'u8[65536]{0}', space=vmem, size = 0x10000, scoped, tag = 'input window, operand 5, single buffered']
    #allocation12 [shape = 's32[1]{0}', space=sflag, size = 0x4, scoped, tag = 'scoped memory for tpu_custom_call.1']
    #allocation13 [shape = 'u8[512]{0}', space=vmem, size = 0x400, scoped, tag = 'input window, operand 6, single buffered']
    #allocation14 [shape = 'u8[32768]{0}', space=vmem, size = 0x8000, scoped, tag = 'input window, operand 7, single buffered']
    #allocation15 [shape = 's32[1]{0}', space=sflag, size = 0x4, scoped, tag = 'scoped memory for tpu_custom_call.1']
    #allocation16 [shape = 'u8[512]{0}', space=vmem, size = 0x400, scoped, tag = 'input window, operand 8, single buffered']
    #allocation17 [shape = 'u8[4096]{0}', space=vmem, size = 0x1000, scoped, tag = 'output window, operand 0, single buffered']
    #allocation18 [shape = 'u8[24576]{0}', space=vmem, size = 0x6000, scoped, tag = 'output window, operand 1, single buffered']
    #allocation19 [shape = 's32[1]{0}', space=sflag, size = 0x4, scoped, tag = 'scoped memory for tpu_custom_call.1']
    %16 = vsyncpa [#allocation3], 0
    %17 = vsyncpa [#allocation6], 0
    %18 = vsyncpa [#allocation9], 0
    %19 = vsyncpa [#allocation12], 0
    %20 = vsyncpa [#allocation15], 0
    %21 = vsyncpa [#allocation4], 0
    %22 = vsyncpa [#allocation19], 0
    // Predicated region
    $region2: #{tpu_custom_call.1} parent=1 // pred_check
      _
    $region3: #{tpu_custom_call.1} parent=1 // pred_check_branch
      %24 = sbr.rel (0) target = $region5
    $region4: #{tpu_custom_call.1} parent=1 // pred_region
      %s26 = ssub.s32 1024, 1024
      %27 = vsyncadd [#allocation3], %s26
      %s29 = sshll.u32 [#allocation2], 4
      %s30 = int_to_ptr.vmem [resolvable:$true] %s29
      %32 = dma.hbm_to_vmem [thread:$0]  %s0, 1024, %s30, [#allocation3]
    $region5: #{tpu_custom_call.1} parent=1 // pred_fallthru
      _
    // Predicated region
    $region6: #{tpu_custom_call.1} parent=1 // pred_check
      _
    $region7: #{tpu_custom_call.1} parent=1 // pred_check_branch
      %34 = sbr.rel (0) target = $region9
    $region8: #{tpu_custom_call.1} parent=1 // pred_region
      %s36 = ssub.s32 49152, 49152
      %37 = vsyncadd [#allocation6], %s36
      %s38 = sshll.u32 [#allocation5], 4
      %s39 = int_to_ptr.vmem [resolvable:$true] %s38
      %44 = dma.hbm_to_vmem [thread:$0]  %s1, 49152, %s39, [#allocation6], 384, 384, 24
    $region9: #{tpu_custom_call.1} parent=1 // pred_fallthru
      _
    // Predicated region
    $region10: #{tpu_custom_call.1} parent=1 // pred_check
      _
    $region11: #{tpu_custom_call.1} parent=1 // pred_check_branch
      %46 = sbr.rel (0) target = $region13
    $region12: #{tpu_custom_call.1} parent=1 // pred_region
      %s48 = ssub.s32 96, 96
      %49 = vsyncadd [#allocation6], %s48
      %s51 = sshll.u32 [#allocation7], 4
      %s52 = int_to_ptr.vmem [resolvable:$true] %s51
      %54 = dma.hbm_to_vmem [thread:$0]  %s2, 96, %s52, [#allocation6]
    $region13: #{tpu_custom_call.1} parent=1 // pred_fallthru
      _
    // Predicated region
    $region14: #{tpu_custom_call.1} parent=1 // pred_check
      _
    $region15: #{tpu_custom_call.1} parent=1 // pred_check_branch
      %56 = sbr.rel (0) target = $region17
    $region16: #{tpu_custom_call.1} parent=1 // pred_region
      %s58 = ssub.s32 12288, 12288
      %59 = vsyncadd [#allocation9], %s58
      %s60 = sshll.u32 [#allocation8], 4
      %s61 = int_to_ptr.vmem [resolvable:$true] %s60
      %66 = dma.hbm_to_vmem [thread:$0]  %s3, 12288, %s61, [#allocation9], 128, 128, 8
    $region17: #{tpu_custom_call.1} parent=1 // pred_fallthru
      _
    // Predicated region
    $region18: #{tpu_custom_call.1} parent=1 // pred_check
      _
    $region19: #{tpu_custom_call.1} parent=1 // pred_check_branch
      %68 = sbr.rel (0) target = $region21
    $region20: #{tpu_custom_call.1} parent=1 // pred_region
      %s70 = ssub.s32 32, 32
      %71 = vsyncadd [#allocation9], %s70
      %s73 = sshll.u32 [#allocation10], 4
      %s74 = int_to_ptr.vmem [resolvable:$true] %s73
      %76 = dma.hbm_to_vmem [thread:$0]  %s4, 32, %s74, [#allocation9]
    $region21: #{tpu_custom_call.1} parent=1 // pred_fallthru
      _
    // Predicated region
    $region22: #{tpu_custom_call.1} parent=1 // pred_check
      _
    $region23: #{tpu_custom_call.1} parent=1 // pred_check_branch
      %78 = sbr.rel (0) target = $region25
    $region24: #{tpu_custom_call.1} parent=1 // pred_region
      %s80 = ssub.s32 2048, 2048
      %81 = vsyncadd [#allocation12], %s80
      %s82 = sshll.u32 [#allocation11], 4
      %s83 = int_to_ptr.vmem [resolvable:$true] %s82
      %88 = dma.hbm_to_vmem [thread:$0]  %s5, 2048, %s83, [#allocation12], 64, 64, 4
    $region25: #{tpu_custom_call.1} parent=1 // pred_fallthru
      _
    // Predicated region
    $region26: #{tpu_custom_call.1} parent=1 // pred_check
      _
    $region27: #{tpu_custom_call.1} parent=1 // pred_check_branch
      %90 = sbr.rel (0) target = $region29
    $region28: #{tpu_custom_call.1} parent=1 // pred_region
      %s92 = ssub.s32 16, 16
      %93 = vsyncadd [#allocation12], %s92
      %s95 = sshll.u32 [#allocation13], 4
      %s96 = int_to_ptr.vmem [resolvable:$true] %s95
      %98 = dma.hbm_to_vmem [thread:$0]  %s6, 16, %s96, [#allocation12]
    $region29: #{tpu_custom_call.1} parent=1 // pred_fallthru
      _
    // Predicated region
    $region30: #{tpu_custom_call.1} parent=1 // pred_check
      _
    $region31: #{tpu_custom_call.1} parent=1 // pred_check_branch
      %100 = sbr.rel (0) target = $region33
    $region32: #{tpu_custom_call.1} parent=1 // pred_region
      %s102 = ssub.s32 1024, 1024
      %103 = vsyncadd [#allocation15], %s102
      %s104 = sshll.u32 [#allocation14], 4
      %s105 = int_to_ptr.vmem [resolvable:$true] %s104
      %110 = dma.hbm_to_vmem [thread:$0]  %s7, 1024, %s105, [#allocation15], 64, 64, 4
    $region33: #{tpu_custom_call.1} parent=1 // pred_fallthru
      _
    // Predicated region
    $region34: #{tpu_custom_call.1} parent=1 // pred_check
      _
    $region35: #{tpu_custom_call.1} parent=1 // pred_check_branch
      %112 = sbr.rel (0) target = $region37
    $region36: #{tpu_custom_call.1} parent=1 // pred_region
      %s114 = ssub.s32 16, 16
      %115 = vsyncadd [#allocation15], %s114
      %s117 = sshll.u32 [#allocation16], 4
      %s118 = int_to_ptr.vmem [resolvable:$true] %s117
      %120 = dma.hbm_to_vmem [thread:$0]  %s8, 16, %s118, [#allocation15]
    $region37: #{tpu_custom_call.1} parent=1 // pred_fallthru
      _
    // Predicated region
    $region38: #{tpu_custom_call.1} parent=1 // pred_check
      _
    $region39: #{tpu_custom_call.1} parent=1 // pred_check_branch
      %122 = sbr.rel (0) target = $region41
    $region40: #{tpu_custom_call.1} parent=1 // pred_region
      %123 = dma.done [#allocation3], 1024
    $region41: #{tpu_custom_call.1} parent=1 // pred_fallthru
      _
    // Predicated region
    $region42: #{tpu_custom_call.1} parent=1 // pred_check
      _
    $region43: #{tpu_custom_call.1} parent=1 // pred_check_branch
      %125 = sbr.rel (0) target = $region45
    $region44: #{tpu_custom_call.1} parent=1 // pred_region
      %126 = dma.done [#allocation6], 49152
    $region45: #{tpu_custom_call.1} parent=1 // pred_fallthru
      _
    // Predicated region
    $region46: #{tpu_custom_call.1} parent=1 // pred_check
      _
    $region47: #{tpu_custom_call.1} parent=1 // pred_check_branch
      %128 = sbr.rel (0) target = $region49
    $region48: #{tpu_custom_call.1} parent=1 // pred_region
      %129 = dma.done [#allocation6], 96
    $region49: #{tpu_custom_call.1} parent=1 // pred_fallthru
      _
    // Predicated region
    $region50: #{tpu_custom_call.1} parent=1 // pred_check
      _
    $region51: #{tpu_custom_call.1} parent=1 // pred_check_branch
      %131 = sbr.rel (0) target = $region53
    $region52: #{tpu_custom_call.1} parent=1 // pred_region
      %132 = dma.done [#allocation9], 12288
    $region53: #{tpu_custom_call.1} parent=1 // pred_fallthru
      _
    // Predicated region
    $region54: #{tpu_custom_call.1} parent=1 // pred_check
      _
    $region55: #{tpu_custom_call.1} parent=1 // pred_check_branch
      %134 = sbr.rel (0) target = $region57
    $region56: #{tpu_custom_call.1} parent=1 // pred_region
      %135 = dma.done [#allocation9], 32
    $region57: #{tpu_custom_call.1} parent=1 // pred_fallthru
      _
    // Predicated region
    $region58: #{tpu_custom_call.1} parent=1 // pred_check
      _
    $region59: #{tpu_custom_call.1} parent=1 // pred_check_branch
      %137 = sbr.rel (0) target = $region61
    $region60: #{tpu_custom_call.1} parent=1 // pred_region
      %138 = dma.done [#allocation12], 2048
    $region61: #{tpu_custom_call.1} parent=1 // pred_fallthru
      _
    // Predicated region
    $region62: #{tpu_custom_call.1} parent=1 // pred_check
      _
    $region63: #{tpu_custom_call.1} parent=1 // pred_check_branch
      %140 = sbr.rel (0) target = $region65
    $region64: #{tpu_custom_call.1} parent=1 // pred_region
      %141 = dma.done [#allocation12], 16
    $region65: #{tpu_custom_call.1} parent=1 // pred_fallthru
      _
    // Predicated region
    $region66: #{tpu_custom_call.1} parent=1 // pred_check
      _
    $region67: #{tpu_custom_call.1} parent=1 // pred_check_branch
      %143 = sbr.rel (0) target = $region69
    $region68: #{tpu_custom_call.1} parent=1 // pred_region
      %144 = dma.done [#allocation15], 1024
    $region69: #{tpu_custom_call.1} parent=1 // pred_fallthru
      _
    // Predicated region
    $region70: #{tpu_custom_call.1} parent=1 // pred_check
      _
    $region71: #{tpu_custom_call.1} parent=1 // pred_check_branch
      %146 = sbr.rel (0) target = $region73
    $region72: #{tpu_custom_call.1} parent=1 // pred_region
      %147 = dma.done [#allocation15], 16
    $region73: #{tpu_custom_call.1} parent=1 // pred_fallthru
      _
    %v149 = vld [vmem:[#allocation2] sm:$0xff]
    %v150 = vld [vmem:[#allocation2 + $0x8] sm:$0xff]
    %v151 = vld [vmem:[#allocation2 + $0x10] sm:$0xff]
    %v152 = vld [vmem:[#allocation2 + $0x18] sm:$0xff]
    %v153 = vld [vmem:[#allocation2 + $0x20] sm:$0xff]
    %v154 = vld [vmem:[#allocation2 + $0x28] sm:$0xff]
    %v155 = vld [vmem:[#allocation2 + $0x30] sm:$0xff]
    %v156 = vld [vmem:[#allocation2 + $0x38] sm:$0xff]
    %v157 = vpack.c.bf16 %v149, %v149
    %v158 = vpack.c.bf16 %v150, %v150
    %v159 = vpack.c.bf16 %v151, %v151
    %v160 = vpack.c.bf16 %v152, %v152
    %v161 = vpack.c.bf16 %v153, %v153
    %v162 = vpack.c.bf16 %v154, %v154
    %v163 = vpack.c.bf16 %v155, %v155
    %v164 = vpack.c.bf16 %v156, %v156
    %v165 = vld [vmem:[#allocation5] sm:$0xff]
    %v166 = vld [vmem:[#allocation5 + $0x8] sm:$0xff]
    %v167 = vld [vmem:[#allocation5 + $0x10] sm:$0xff]
    %v168 = vld [vmem:[#allocation5 + $0x18] sm:$0xff]
    %v169 = vld [vmem:[#allocation5 + $0x20] sm:$0xff]
    %v170 = vld [vmem:[#allocation5 + $0x28] sm:$0xff]
    %v171 = vld [vmem:[#allocation5 + $0x30] sm:$0xff]
    %v172 = vld [vmem:[#allocation5 + $0x38] sm:$0xff]
    %v173 = vld [vmem:[#allocation5 + $0x40] sm:$0xff]
    %v174 = vld [vmem:[#allocation5 + $0x48] sm:$0xff]
    %v175 = vld [vmem:[#allocation5 + $0x50] sm:$0xff]
    %v176 = vld [vmem:[#allocation5 + $0x58] sm:$0xff]
    %v177 = vld [vmem:[#allocation5 + $0x60] sm:$0xff]
    %v178 = vld [vmem:[#allocation5 + $0x68] sm:$0xff]
    %v179 = vld [vmem:[#allocation5 + $0x70] sm:$0xff]
    %v180 = vld [vmem:[#allocation5 + $0x78] sm:$0xff]
    %v181 = vld [vmem:[#allocation5 + $0x80] sm:$0xff]
    %v182 = vld [vmem:[#allocation5 + $0x88] sm:$0xff]
    %v183 = vld [vmem:[#allocation5 + $0x90] sm:$0xff]
    %v184 = vld [vmem:[#allocation5 + $0x98] sm:$0xff]
    %v185 = vld [vmem:[#allocation5 + $0xa0] sm:$0xff]
    %v186 = vld [vmem:[#allocation5 + $0xa8] sm:$0xff]
    %v187 = vld [vmem:[#allocation5 + $0xb0] sm:$0xff]
    %v188 = vld [vmem:[#allocation5 + $0xb8] sm:$0xff]
    %v189 = vld [vmem:[#allocation5 + $0xc0] sm:$0xff]
    %v190 = vld [vmem:[#allocation5 + $0xc8] sm:$0xff]
    %v191 = vld [vmem:[#allocation5 + $0xd0] sm:$0xff]
    %v192 = vld [vmem:[#allocation5 + $0xd8] sm:$0xff]
    %v193 = vld [vmem:[#allocation5 + $0xe0] sm:$0xff]
    %v194 = vld [vmem:[#allocation5 + $0xe8] sm:$0xff]
    %v195 = vld [vmem:[#allocation5 + $0xf0] sm:$0xff]
    %v196 = vld [vmem:[#allocation5 + $0xf8] sm:$0xff]
    %v197 = vld [vmem:[#allocation5 + $0x100] sm:$0xff]
    %v198 = vld [vmem:[#allocation5 + $0x108] sm:$0xff]
    %v199 = vld [vmem:[#allocation5 + $0x110] sm:$0xff]
    %v200 = vld [vmem:[#allocation5 + $0x118] sm:$0xff]
    %v201 = vld [vmem:[#allocation5 + $0x120] sm:$0xff]
    %v202 = vld [vmem:[#allocation5 + $0x128] sm:$0xff]
    %v203 = vld [vmem:[#allocation5 + $0x130] sm:$0xff]
    %v204 = vld [vmem:[#allocation5 + $0x138] sm:$0xff]
    %v205 = vld [vmem:[#allocation5 + $0x140] sm:$0xff]
    %v206 = vld [vmem:[#allocation5 + $0x148] sm:$0xff]
    %v207 = vld [vmem:[#allocation5 + $0x150] sm:$0xff]
    %v208 = vld [vmem:[#allocation5 + $0x158] sm:$0xff]
    %v209 = vld [vmem:[#allocation5 + $0x160] sm:$0xff]
    %v210 = vld [vmem:[#allocation5 + $0x168] sm:$0xff]
    %v211 = vld [vmem:[#allocation5 + $0x170] sm:$0xff]
    %v212 = vld [vmem:[#allocation5 + $0x178] sm:$0xff]
    %v213 = vld [vmem:[#allocation5 + $0x180] sm:$0xff]
    %v214 = vld [vmem:[#allocation5 + $0x188] sm:$0xff]
    %v215 = vld [vmem:[#allocation5 + $0x190] sm:$0xff]
    %v216 = vld [vmem:[#allocation5 + $0x198] sm:$0xff]
    %v217 = vld [vmem:[#allocation5 + $0x1a0] sm:$0xff]
    %v218 = vld [vmem:[#allocation5 + $0x1a8] sm:$0xff]
    %v219 = vld [vmem:[#allocation5 + $0x1b0] sm:$0xff]
    %v220 = vld [vmem:[#allocation5 + $0x1b8] sm:$0xff]
    %v221 = vld [vmem:[#allocation5 + $0x1c0] sm:$0xff]
    %v222 = vld [vmem:[#allocation5 + $0x1c8] sm:$0xff]
    %v223 = vld [vmem:[#allocation5 + $0x1d0] sm:$0xff]
    %v224 = vld [vmem:[#allocation5 + $0x1d8] sm:$0xff]
    %v225 = vld [vmem:[#allocation5 + $0x1e0] sm:$0xff]
    %v226 = vld [vmem:[#allocation5 + $0x1e8] sm:$0xff]
    %v227 = vld [vmem:[#allocation5 + $0x1f0] sm:$0xff]
    %v228 = vld [vmem:[#allocation5 + $0x1f8] sm:$0xff]
    %v229 = vld [vmem:[#allocation5 + $0x200] sm:$0xff]
    %v230 = vld [vmem:[#allocation5 + $0x208] sm:$0xff]
    %v231 = vld [vmem:[#allocation5 + $0x210] sm:$0xff]
    %v232 = vld [vmem:[#allocation5 + $0x218] sm:$0xff]
    %v233 = vld [vmem:[#allocation5 + $0x220] sm:$0xff]
    %v234 = vld [vmem:[#allocation5 + $0x228] sm:$0xff]
    %v235 = vld [vmem:[#allocation5 + $0x230] sm:$0xff]
    %v236 = vld [vmem:[#allocation5 + $0x238] sm:$0xff]
    %v237 = vld [vmem:[#allocation5 + $0x240] sm:$0xff]
    %v238 = vld [vmem:[#allocation5 + $0x248] sm:$0xff]
    %v239 = vld [vmem:[#allocation5 + $0x250] sm:$0xff]
    %v240 = vld [vmem:[#allocation5 + $0x258] sm:$0xff]
    %v241 = vld [vmem:[#allocation5 + $0x260] sm:$0xff]
    %v242 = vld [vmem:[#allocation5 + $0x268] sm:$0xff]
    %v243 = vld [vmem:[#allocation5 + $0x270] sm:$0xff]
    %v244 = vld [vmem:[#allocation5 + $0x278] sm:$0xff]
    %v245 = vld [vmem:[#allocation5 + $0x280] sm:$0xff]
    %v246 = vld [vmem:[#allocation5 + $0x288] sm:$0xff]
    %v247 = vld [vmem:[#allocation5 + $0x290] sm:$0xff]
    %v248 = vld [vmem:[#allocation5 + $0x298] sm:$0xff]
    %v249 = vld [vmem:[#allocation5 + $0x2a0] sm:$0xff]
    %v250 = vld [vmem:[#allocation5 + $0x2a8] sm:$0xff]
    %v251 = vld [vmem:[#allocation5 + $0x2b0] sm:$0xff]
    %v252 = vld [vmem:[#allocation5 + $0x2b8] sm:$0xff]
    %v253 = vld [vmem:[#allocation5 + $0x2c0] sm:$0xff]
    %v254 = vld [vmem:[#allocation5 + $0x2c8] sm:$0xff]
    %v255 = vld [vmem:[#allocation5 + $0x2d0] sm:$0xff]
    %v256 = vld [vmem:[#allocation5 + $0x2d8] sm:$0xff]
    %v257 = vld [vmem:[#allocation5 + $0x2e0] sm:$0xff]
    %v258 = vld [vmem:[#allocation5 + $0x2e8] sm:$0xff]
    %v259 = vld [vmem:[#allocation5 + $0x2f0] sm:$0xff]
    %v260 = vld [vmem:[#allocation5 + $0x2f8] sm:$0xff]
    %v261 = vld [vmem:[#allocation5 + $0x300] sm:$0xff]
    %v262 = vld [vmem:[#allocation5 + $0x308] sm:$0xff]
    %v263 = vld [vmem:[#allocation5 + $0x310] sm:$0xff]
    %v264 = vld [vmem:[#allocation5 + $0x318] sm:$0xff]
    %v265 = vld [vmem:[#allocation5 + $0x320] sm:$0xff]
    %v266 = vld [vmem:[#allocation5 + $0x328] sm:$0xff]
    %v267 = vld [vmem:[#allocation5 + $0x330] sm:$0xff]
    %v268 = vld [vmem:[#allocation5 + $0x338] sm:$0xff]
    %v269 = vld [vmem:[#allocation5 + $0x340] sm:$0xff]
    %v270 = vld [vmem:[#allocation5 + $0x348] sm:$0xff]
    %v271 = vld [vmem:[#allocation5 + $0x350] sm:$0xff]
    %v272 = vld [vmem:[#allocation5 + $0x358] sm:$0xff]
    %v273 = vld [vmem:[#allocation5 + $0x360] sm:$0xff]
    %v274 = vld [vmem:[#allocation5 + $0x368] sm:$0xff]
    %v275 = vld [vmem:[#allocation5 + $0x370] sm:$0xff]
    %v276 = vld [vmem:[#allocation5 + $0x378] sm:$0xff]
    %v277 = vld [vmem:[#allocation5 + $0x380] sm:$0xff]
    %v278 = vld [vmem:[#allocation5 + $0x388] sm:$0xff]
    %v279 = vld [vmem:[#allocation5 + $0x390] sm:$0xff]
    %v280 = vld [vmem:[#allocation5 + $0x398] sm:$0xff]
    %v281 = vld [vmem:[#allocation5 + $0x3a0] sm:$0xff]
    %v282 = vld [vmem:[#allocation5 + $0x3a8] sm:$0xff]
    %v283 = vld [vmem:[#allocation5 + $0x3b0] sm:$0xff]
    %v284 = vld [vmem:[#allocation5 + $0x3b8] sm:$0xff]
    %v285 = vld [vmem:[#allocation5 + $0x3c0] sm:$0xff]
    %v286 = vld [vmem:[#allocation5 + $0x3c8] sm:$0xff]
    %v287 = vld [vmem:[#allocation5 + $0x3d0] sm:$0xff]
    %v288 = vld [vmem:[#allocation5 + $0x3d8] sm:$0xff]
    %v289 = vld [vmem:[#allocation5 + $0x3e0] sm:$0xff]
    %v290 = vld [vmem:[#allocation5 + $0x3e8] sm:$0xff]
    %v291 = vld [vmem:[#allocation5 + $0x3f0] sm:$0xff]
    %v292 = vld [vmem:[#allocation5 + $0x3f8] sm:$0xff]
    %v293 = vld [vmem:[#allocation5 + $0x400] sm:$0xff]
    %v294 = vld [vmem:[#allocation5 + $0x408] sm:$0xff]
    %v295 = vld [vmem:[#allocation5 + $0x410] sm:$0xff]
    %v296 = vld [vmem:[#allocation5 + $0x418] sm:$0xff]
    %v297 = vld [vmem:[#allocation5 + $0x420] sm:$0xff]
    %v298 = vld [vmem:[#allocation5 + $0x428] sm:$0xff]
    %v299 = vld [vmem:[#allocation5 + $0x430] sm:$0xff]
    %v300 = vld [vmem:[#allocation5 + $0x438] sm:$0xff]
    %v301 = vld [vmem:[#allocation5 + $0x440] sm:$0xff]
    %v302 = vld [vmem:[#allocation5 + $0x448] sm:$0xff]
    %v303 = vld [vmem:[#allocation5 + $0x450] sm:$0xff]
    %v304 = vld [vmem:[#allocation5 + $0x458] sm:$0xff]
    %v305 = vld [vmem:[#allocation5 + $0x460] sm:$0xff]
    %v306 = vld [vmem:[#allocation5 + $0x468] sm:$0xff]
    %v307 = vld [vmem:[#allocation5 + $0x470] sm:$0xff]
    %v308 = vld [vmem:[#allocation5 + $0x478] sm:$0xff]
    %v309 = vld [vmem:[#allocation5 + $0x480] sm:$0xff]
    %v310 = vld [vmem:[#allocation5 + $0x488] sm:$0xff]
    %v311 = vld [vmem:[#allocation5 + $0x490] sm:$0xff]
    %v312 = vld [vmem:[#allocation5 + $0x498] sm:$0xff]
    %v313 = vld [vmem:[#allocation5 + $0x4a0] sm:$0xff]
    %v314 = vld [vmem:[#allocation5 + $0x4a8] sm:$0xff]
    %v315 = vld [vmem:[#allocation5 + $0x4b0] sm:$0xff]
    %v316 = vld [vmem:[#allocation5 + $0x4b8] sm:$0xff]
    %v317 = vld [vmem:[#allocation5 + $0x4c0] sm:$0xff]
    %v318 = vld [vmem:[#allocation5 + $0x4c8] sm:$0xff]
    %v319 = vld [vmem:[#allocation5 + $0x4d0] sm:$0xff]
    %v320 = vld [vmem:[#allocation5 + $0x4d8] sm:$0xff]
    %v321 = vld [vmem:[#allocation5 + $0x4e0] sm:$0xff]
    %v322 = vld [vmem:[#allocation5 + $0x4e8] sm:$0xff]
    %v323 = vld [vmem:[#allocation5 + $0x4f0] sm:$0xff]
    %v324 = vld [vmem:[#allocation5 + $0x4f8] sm:$0xff]
    %v325 = vld [vmem:[#allocation5 + $0x500] sm:$0xff]
    %v326 = vld [vmem:[#allocation5 + $0x508] sm:$0xff]
    %v327 = vld [vmem:[#allocation5 + $0x510] sm:$0xff]
    %v328 = vld [vmem:[#allocation5 + $0x518] sm:$0xff]
    %v329 = vld [vmem:[#allocation5 + $0x520] sm:$0xff]
    %v330 = vld [vmem:[#allocation5 + $0x528] sm:$0xff]
    %v331 = vld [vmem:[#allocation5 + $0x530] sm:$0xff]
    %v332 = vld [vmem:[#allocation5 + $0x538] sm:$0xff]
    %v333 = vld [vmem:[#allocation5 + $0x540] sm:$0xff]
    %v334 = vld [vmem:[#allocation5 + $0x548] sm:$0xff]
    %v335 = vld [vmem:[#allocation5 + $0x550] sm:$0xff]
    %v336 = vld [vmem:[#allocation5 + $0x558] sm:$0xff]
    %v337 = vld [vmem:[#allocation5 + $0x560] sm:$0xff]
    %v338 = vld [vmem:[#allocation5 + $0x568] sm:$0xff]
    %v339 = vld [vmem:[#allocation5 + $0x570] sm:$0xff]
    %v340 = vld [vmem:[#allocation5 + $0x578] sm:$0xff]
    %v341 = vld [vmem:[#allocation5 + $0x580] sm:$0xff]
    %v342 = vld [vmem:[#allocation5 + $0x588] sm:$0xff]
    %v343 = vld [vmem:[#allocation5 + $0x590] sm:$0xff]
    %v344 = vld [vmem:[#allocation5 + $0x598] sm:$0xff]
    %v345 = vld [vmem:[#allocation5 + $0x5a0] sm:$0xff]
    %v346 = vld [vmem:[#allocation5 + $0x5a8] sm:$0xff]
    %v347 = vld [vmem:[#allocation5 + $0x5b0] sm:$0xff]
    %v348 = vld [vmem:[#allocation5 + $0x5b8] sm:$0xff]
    %v349 = vld [vmem:[#allocation5 + $0x5c0] sm:$0xff]
    %v350 = vld [vmem:[#allocation5 + $0x5c8] sm:$0xff]
    %v351 = vld [vmem:[#allocation5 + $0x5d0] sm:$0xff]
    %v352 = vld [vmem:[#allocation5 + $0x5d8] sm:$0xff]
    %v353 = vld [vmem:[#allocation5 + $0x5e0] sm:$0xff]
    %v354 = vld [vmem:[#allocation5 + $0x5e8] sm:$0xff]
    %v355 = vld [vmem:[#allocation5 + $0x5f0] sm:$0xff]
    %v356 = vld [vmem:[#allocation5 + $0x5f8] sm:$0xff]
    %v357 = vld [vmem:[#allocation5 + $0x600] sm:$0xff]
    %v358 = vld [vmem:[#allocation5 + $0x608] sm:$0xff]
    %v359 = vld [vmem:[#allocation5 + $0x610] sm:$0xff]
    %v360 = vld [vmem:[#allocation5 + $0x618] sm:$0xff]
    %v361 = vld [vmem:[#allocation5 + $0x620] sm:$0xff]
    %v362 = vld [vmem:[#allocation5 + $0x628] sm:$0xff]
    %v363 = vld [vmem:[#allocation5 + $0x630] sm:$0xff]
    %v364 = vld [vmem:[#allocation5 + $0x638] sm:$0xff]
    %v365 = vld [vmem:[#allocation5 + $0x640] sm:$0xff]
    %v366 = vld [vmem:[#allocation5 + $0x648] sm:$0xff]
    %v367 = vld [vmem:[#allocation5 + $0x650] sm:$0xff]
    %v368 = vld [vmem:[#allocation5 + $0x658] sm:$0xff]
    %v369 = vld [vmem:[#allocation5 + $0x660] sm:$0xff]
    %v370 = vld [vmem:[#allocation5 + $0x668] sm:$0xff]
    %v371 = vld [vmem:[#allocation5 + $0x670] sm:$0xff]
    %v372 = vld [vmem:[#allocation5 + $0x678] sm:$0xff]
    %v373 = vld [vmem:[#allocation5 + $0x680] sm:$0xff]
    %v374 = vld [vmem:[#allocation5 + $0x688] sm:$0xff]
    %v375 = vld [vmem:[#allocation5 + $0x690] sm:$0xff]
    %v376 = vld [vmem:[#allocation5 + $0x698] sm:$0xff]
    %v377 = vld [vmem:[#allocation5 + $0x6a0] sm:$0xff]
    %v378 = vld [vmem:[#allocation5 + $0x6a8] sm:$0xff]
    %v379 = vld [vmem:[#allocation5 + $0x6b0] sm:$0xff]
    %v380 = vld [vmem:[#allocation5 + $0x6b8] sm:$0xff]
    %v381 = vld [vmem:[#allocation5 + $0x6c0] sm:$0xff]
    %v382 = vld [vmem:[#allocation5 + $0x6c8] sm:$0xff]
    %v383 = vld [vmem:[#allocation5 + $0x6d0] sm:$0xff]
    %v384 = vld [vmem:[#allocation5 + $0x6d8] sm:$0xff]
    %v385 = vld [vmem:[#allocation5 + $0x6e0] sm:$0xff]
    %v386 = vld [vmem:[#allocation5 + $0x6e8] sm:$0xff]
    %v387 = vld [vmem:[#allocation5 + $0x6f0] sm:$0xff]
    %v388 = vld [vmem:[#allocation5 + $0x6f8] sm:$0xff]
    %v389 = vld [vmem:[#allocation5 + $0x700] sm:$0xff]
    %v390 = vld [vmem:[#allocation5 + $0x708] sm:$0xff]
    %v391 = vld [vmem:[#allocation5 + $0x710] sm:$0xff]
    %v392 = vld [vmem:[#allocation5 + $0x718] sm:$0xff]
    %v393 = vld [vmem:[#allocation5 + $0x720] sm:$0xff]
    %v394 = vld [vmem:[#allocation5 + $0x728] sm:$0xff]
    %v395 = vld [vmem:[#allocation5 + $0x730] sm:$0xff]
    %v396 = vld [vmem:[#allocation5 + $0x738] sm:$0xff]
    %v397 = vld [vmem:[#allocation5 + $0x740] sm:$0xff]
    %v398 = vld [vmem:[#allocation5 + $0x748] sm:$0xff]
    %v399 = vld [vmem:[#allocation5 + $0x750] sm:$0xff]
    %v400 = vld [vmem:[#allocation5 + $0x758] sm:$0xff]
    %v401 = vld [vmem:[#allocation5 + $0x760] sm:$0xff]
    %v402 = vld [vmem:[#allocation5 + $0x768] sm:$0xff]
    %v403 = vld [vmem:[#allocation5 + $0x770] sm:$0xff]
    %v404 = vld [vmem:[#allocation5 + $0x778] sm:$0xff]
    %v405 = vld [vmem:[#allocation5 + $0x780] sm:$0xff]
    %v406 = vld [vmem:[#allocation5 + $0x788] sm:$0xff]
    %v407 = vld [vmem:[#allocation5 + $0x790] sm:$0xff]
    %v408 = vld [vmem:[#allocation5 + $0x798] sm:$0xff]
    %v409 = vld [vmem:[#allocation5 + $0x7a0] sm:$0xff]
    %v410 = vld [vmem:[#allocation5 + $0x7a8] sm:$0xff]
    %v411 = vld [vmem:[#allocation5 + $0x7b0] sm:$0xff]
    %v412 = vld [vmem:[#allocation5 + $0x7b8] sm:$0xff]
    %v413 = vld [vmem:[#allocation5 + $0x7c0] sm:$0xff]
    %v414 = vld [vmem:[#allocation5 + $0x7c8] sm:$0xff]
    %v415 = vld [vmem:[#allocation5 + $0x7d0] sm:$0xff]
    %v416 = vld [vmem:[#allocation5 + $0x7d8] sm:$0xff]
    %v417 = vld [vmem:[#allocation5 + $0x7e0] sm:$0xff]
    %v418 = vld [vmem:[#allocation5 + $0x7e8] sm:$0xff]
    %v419 = vld [vmem:[#allocation5 + $0x7f0] sm:$0xff]
    %v420 = vld [vmem:[#allocation5 + $0x7f8] sm:$0xff]
    %v421 = vld [vmem:[#allocation5 + $0x800] sm:$0xff]
    %v422 = vld [vmem:[#allocation5 + $0x808] sm:$0xff]
    %v423 = vld [vmem:[#allocation5 + $0x810] sm:$0xff]
    %v424 = vld [vmem:[#allocation5 + $0x818] sm:$0xff]
    %v425 = vld [vmem:[#allocation5 + $0x820] sm:$0xff]
    %v426 = vld [vmem:[#allocation5 + $0x828] sm:$0xff]
    %v427 = vld [vmem:[#allocation5 + $0x830] sm:$0xff]
    %v428 = vld [vmem:[#allocation5 + $0x838] sm:$0xff]
    %v429 = vld [vmem:[#allocation5 + $0x840] sm:$0xff]
    %v430 = vld [vmem:[#allocation5 + $0x848] sm:$0xff]
    %v431 = vld [vmem:[#allocation5 + $0x850] sm:$0xff]
    %v432 = vld [vmem:[#allocation5 + $0x858] sm:$0xff]
    %v433 = vld [vmem:[#allocation5 + $0x860] sm:$0xff]
    %v434 = vld [vmem:[#allocation5 + $0x868] sm:$0xff]
    %v435 = vld [vmem:[#allocation5 + $0x870] sm:$0xff]
    %v436 = vld [vmem:[#allocation5 + $0x878] sm:$0xff]
    %v437 = vld [vmem:[#allocation5 + $0x880] sm:$0xff]
    %v438 = vld [vmem:[#allocation5 + $0x888] sm:$0xff]
    %v439 = vld [vmem:[#allocation5 + $0x890] sm:$0xff]
    %v440 = vld [vmem:[#allocation5 + $0x898] sm:$0xff]
    %v441 = vld [vmem:[#allocation5 + $0x8a0] sm:$0xff]
    %v442 = vld [vmem:[#allocation5 + $0x8a8] sm:$0xff]
    %v443 = vld [vmem:[#allocation5 + $0x8b0] sm:$0xff]
    %v444 = vld [vmem:[#allocation5 + $0x8b8] sm:$0xff]
    %v445 = vld [vmem:[#allocation5 + $0x8c0] sm:$0xff]
    %v446 = vld [vmem:[#allocation5 + $0x8c8] sm:$0xff]
    %v447 = vld [vmem:[#allocation5 + $0x8d0] sm:$0xff]
    %v448 = vld [vmem:[#allocation5 + $0x8d8] sm:$0xff]
    %v449 = vld [vmem:[#allocation5 + $0x8e0] sm:$0xff]
    %v450 = vld [vmem:[#allocation5 + $0x8e8] sm:$0xff]
    %v451 = vld [vmem:[#allocation5 + $0x8f0] sm:$0xff]
    %v452 = vld [vmem:[#allocation5 + $0x8f8] sm:$0xff]
    %v453 = vld [vmem:[#allocation5 + $0x900] sm:$0xff]
    %v454 = vld [vmem:[#allocation5 + $0x908] sm:$0xff]
    %v455 = vld [vmem:[#allocation5 + $0x910] sm:$0xff]
    %v456 = vld [vmem:[#allocation5 + $0x918] sm:$0xff]
    %v457 = vld [vmem:[#allocation5 + $0x920] sm:$0xff]
    %v458 = vld [vmem:[#allocation5 + $0x928] sm:$0xff]
    %v459 = vld [vmem:[#allocation5 + $0x930] sm:$0xff]
    %v460 = vld [vmem:[#allocation5 + $0x938] sm:$0xff]
    %v461 = vld [vmem:[#allocation5 + $0x940] sm:$0xff]
    %v462 = vld [vmem:[#allocation5 + $0x948] sm:$0xff]
    %v463 = vld [vmem:[#allocation5 + $0x950] sm:$0xff]
    %v464 = vld [vmem:[#allocation5 + $0x958] sm:$0xff]
    %v465 = vld [vmem:[#allocation5 + $0x960] sm:$0xff]
    %v466 = vld [vmem:[#allocation5 + $0x968] sm:$0xff]
    %v467 = vld [vmem:[#allocation5 + $0x970] sm:$0xff]
    %v468 = vld [vmem:[#allocation5 + $0x978] sm:$0xff]
    %v469 = vld [vmem:[#allocation5 + $0x980] sm:$0xff]
    %v470 = vld [vmem:[#allocation5 + $0x988] sm:$0xff]
    %v471 = vld [vmem:[#allocation5 + $0x990] sm:$0xff]
    %v472 = vld [vmem:[#allocation5 + $0x998] sm:$0xff]
    %v473 = vld [vmem:[#allocation5 + $0x9a0] sm:$0xff]
    %v474 = vld [vmem:[#allocation5 + $0x9a8] sm:$0xff]
    %v475 = vld [vmem:[#allocation5 + $0x9b0] sm:$0xff]
    %v476 = vld [vmem:[#allocation5 + $0x9b8] sm:$0xff]
    %v477 = vld [vmem:[#allocation5 + $0x9c0] sm:$0xff]
    %v478 = vld [vmem:[#allocation5 + $0x9c8] sm:$0xff]
    %v479 = vld [vmem:[#allocation5 + $0x9d0] sm:$0xff]
    %v480 = vld [vmem:[#allocation5 + $0x9d8] sm:$0xff]
    %v481 = vld [vmem:[#allocation5 + $0x9e0] sm:$0xff]
    %v482 = vld [vmem:[#allocation5 + $0x9e8] sm:$0xff]
    %v483 = vld [vmem:[#allocation5 + $0x9f0] sm:$0xff]
    %v484 = vld [vmem:[#allocation5 + $0x9f8] sm:$0xff]
    %v485 = vld [vmem:[#allocation5 + $0xa00] sm:$0xff]
    %v486 = vld [vmem:[#allocation5 + $0xa08] sm:$0xff]
    %v487 = vld [vmem:[#allocation5 + $0xa10] sm:$0xff]
    %v488 = vld [vmem:[#allocation5 + $0xa18] sm:$0xff]
    %v489 = vld [vmem:[#allocation5 + $0xa20] sm:$0xff]
    %v490 = vld [vmem:[#allocation5 + $0xa28] sm:$0xff]
    %v491 = vld [vmem:[#allocation5 + $0xa30] sm:$0xff]
    %v492 = vld [vmem:[#allocation5 + $0xa38] sm:$0xff]
    %v493 = vld [vmem:[#allocation5 + $0xa40] sm:$0xff]
    %v494 = vld [vmem:[#allocation5 + $0xa48] sm:$0xff]
    %v495 = vld [vmem:[#allocation5 + $0xa50] sm:$0xff]
    %v496 = vld [vmem:[#allocation5 + $0xa58] sm:$0xff]
    %v497 = vld [vmem:[#allocation5 + $0xa60] sm:$0xff]
    %v498 = vld [vmem:[#allocation5 + $0xa68] sm:$0xff]
    %v499 = vld [vmem:[#allocation5 + $0xa70] sm:$0xff]
    %v500 = vld [vmem:[#allocation5 + $0xa78] sm:$0xff]
    %v501 = vld [vmem:[#allocation5 + $0xa80] sm:$0xff]
    %v502 = vld [vmem:[#allocation5 + $0xa88] sm:$0xff]
    %v503 = vld [vmem:[#allocation5 + $0xa90] sm:$0xff]
    %v504 = vld [vmem:[#allocation5 + $0xa98] sm:$0xff]
    %v505 = vld [vmem:[#allocation5 + $0xaa0] sm:$0xff]
    %v506 = vld [vmem:[#allocation5 + $0xaa8] sm:$0xff]
    %v507 = vld [vmem:[#allocation5 + $0xab0] sm:$0xff]
    %v508 = vld [vmem:[#allocation5 + $0xab8] sm:$0xff]
    %v509 = vld [vmem:[#allocation5 + $0xac0] sm:$0xff]
    %v510 = vld [vmem:[#allocation5 + $0xac8] sm:$0xff]
    %v511 = vld [vmem:[#allocation5 + $0xad0] sm:$0xff]
    %v512 = vld [vmem:[#allocation5 + $0xad8] sm:$0xff]
    %v513 = vld [vmem:[#allocation5 + $0xae0] sm:$0xff]
    %v514 = vld [vmem:[#allocation5 + $0xae8] sm:$0xff]
    %v515 = vld [vmem:[#allocation5 + $0xaf0] sm:$0xff]
    %v516 = vld [vmem:[#allocation5 + $0xaf8] sm:$0xff]
    %v517 = vld [vmem:[#allocation5 + $0xb00] sm:$0xff]
    %v518 = vld [vmem:[#allocation5 + $0xb08] sm:$0xff]
    %v519 = vld [vmem:[#allocation5 + $0xb10] sm:$0xff]
    %v520 = vld [vmem:[#allocation5 + $0xb18] sm:$0xff]
    %v521 = vld [vmem:[#allocation5 + $0xb20] sm:$0xff]
    %v522 = vld [vmem:[#allocation5 + $0xb28] sm:$0xff]
    %v523 = vld [vmem:[#allocation5 + $0xb30] sm:$0xff]
    %v524 = vld [vmem:[#allocation5 + $0xb38] sm:$0xff]
    %v525 = vld [vmem:[#allocation5 + $0xb40] sm:$0xff]
    %v526 = vld [vmem:[#allocation5 + $0xb48] sm:$0xff]
    %v527 = vld [vmem:[#allocation5 + $0xb50] sm:$0xff]
    %v528 = vld [vmem:[#allocation5 + $0xb58] sm:$0xff]
    %v529 = vld [vmem:[#allocation5 + $0xb60] sm:$0xff]
    %v530 = vld [vmem:[#allocation5 + $0xb68] sm:$0xff]
    %v531 = vld [vmem:[#allocation5 + $0xb70] sm:$0xff]
    %v532 = vld [vmem:[#allocation5 + $0xb78] sm:$0xff]
    %v533 = vld [vmem:[#allocation5 + $0xb80] sm:$0xff]
    %v534 = vld [vmem:[#allocation5 + $0xb88] sm:$0xff]
    %v535 = vld [vmem:[#allocation5 + $0xb90] sm:$0xff]
    %v536 = vld [vmem:[#allocation5 + $0xb98] sm:$0xff]
    %v537 = vld [vmem:[#allocation5 + $0xba0] sm:$0xff]
    %v538 = vld [vmem:[#allocation5 + $0xba8] sm:$0xff]
    %v539 = vld [vmem:[#allocation5 + $0xbb0] sm:$0xff]
    %v540 = vld [vmem:[#allocation5 + $0xbb8] sm:$0xff]
    %v541 = vld [vmem:[#allocation5 + $0xbc0] sm:$0xff]
    %v542 = vld [vmem:[#allocation5 + $0xbc8] sm:$0xff]
    %v543 = vld [vmem:[#allocation5 + $0xbd0] sm:$0xff]
    %v544 = vld [vmem:[#allocation5 + $0xbd8] sm:$0xff]
    %v545 = vld [vmem:[#allocation5 + $0xbe0] sm:$0xff]
    %v546 = vld [vmem:[#allocation5 + $0xbe8] sm:$0xff]
    %v547 = vld [vmem:[#allocation5 + $0xbf0] sm:$0xff]
    %v548 = vld [vmem:[#allocation5 + $0xbf8] sm:$0xff]
    %v549 = vld [vmem:[#allocation7] sm:$0x3f]
    %v551 = vlaneseq
    %v552 = vshrl.u32 %v551, 7
    %v553 = vsub.s32 0, %v552
    %v554 = vrot.slane %v549, %v553
    %v555 = vlaneseq
    %v556 = vshrl.u32 %v555, 7
    %v557 = vsub.s32 1, %v556
    %v558 = vrot.slane %v549, %v557
    %v559 = vlaneseq
    %v560 = vshrl.u32 %v559, 7
    %v561 = vsub.s32 2, %v560
    %v562 = vrot.slane %v549, %v561
    %v563 = vlaneseq
    %v564 = vshrl.u32 %v563, 7
    %v565 = vsub.s32 3, %v564
    %v566 = vrot.slane %v549, %v565
    %v567 = vlaneseq
    %v568 = vshrl.u32 %v567, 7
    %v569 = vsub.s32 4, %v568
    %v570 = vrot.slane %v549, %v569
    %v571 = vlaneseq
    %v572 = vshrl.u32 %v571, 7
    %v573 = vsub.s32 5, %v572
    %v574 = vrot.slane %v549, %v573
    %v965 = vunpack.c.l.b16 %v165
    %v966 = vunpack.c.h.b16 %v165
    %v967 = vunpack.c.l.b16 %v166
    %v968 = vunpack.c.h.b16 %v166
    %v969 = vunpack.c.l.b16 %v167
    %v970 = vunpack.c.h.b16 %v167
    %v971 = vunpack.c.l.b16 %v168
    %v972 = vunpack.c.h.b16 %v168
    %v973 = vunpack.c.l.b16 %v169
    %v974 = vunpack.c.h.b16 %v169
    %v975 = vunpack.c.l.b16 %v170
    %v976 = vunpack.c.h.b16 %v170
    %v977 = vunpack.c.l.b16 %v171
    %v978 = vunpack.c.h.b16 %v171
    %v979 = vunpack.c.l.b16 %v172
    %v980 = vunpack.c.h.b16 %v172
    %v981 = vunpack.c.l.b16 %v173
    %v982 = vunpack.c.h.b16 %v173
    %v983 = vunpack.c.l.b16 %v174
    %v984 = vunpack.c.h.b16 %v174
    %v985 = vunpack.c.l.b16 %v175
    %v986 = vunpack.c.h.b16 %v175
    %v987 = vunpack.c.l.b16 %v176
    %v988 = vunpack.c.h.b16 %v176
    %v989 = vunpack.c.l.b16 %v177
    %v990 = vunpack.c.h.b16 %v177
    %v991 = vunpack.c.l.b16 %v178
    %v992 = vunpack.c.h.b16 %v178
    %v993 = vunpack.c.l.b16 %v179
    %v994 = vunpack.c.h.b16 %v179
    %v995 = vunpack.c.l.b16 %v180
    %v996 = vunpack.c.h.b16 %v180
    %v997 = vunpack.c.l.b16 %v181
    %v998 = vunpack.c.h.b16 %v181
    %v999 = vunpack.c.l.b16 %v182
    %v1000 = vunpack.c.h.b16 %v182
    %v1001 = vunpack.c.l.b16 %v183
    %v1002 = vunpack.c.h.b16 %v183
    %v1003 = vunpack.c.l.b16 %v184
    %v1004 = vunpack.c.h.b16 %v184
    %v1005 = vunpack.c.l.b16 %v185
    %v1006 = vunpack.c.h.b16 %v185
    %v1007 = vunpack.c.l.b16 %v186
    %v1008 = vunpack.c.h.b16 %v186
    %v1009 = vunpack.c.l.b16 %v187
    %v1010 = vunpack.c.h.b16 %v187
    %v1011 = vunpack.c.l.b16 %v188
    %v1012 = vunpack.c.h.b16 %v188
    %v1013 = vunpack.c.l.b16 %v189
    %v1014 = vunpack.c.h.b16 %v189
    %v1015 = vunpack.c.l.b16 %v190
    %v1016 = vunpack.c.h.b16 %v190
    %v1017 = vunpack.c.l.b16 %v191
    %v1018 = vunpack.c.h.b16 %v191
    %v1019 = vunpack.c.l.b16 %v192
    %v1020 = vunpack.c.h.b16 %v192
    %v1021 = vunpack.c.l.b16 %v193
    %v1022 = vunpack.c.h.b16 %v193
    %v1023 = vunpack.c.l.b16 %v194
    %v1024 = vunpack.c.h.b16 %v194
    %v1025 = vunpack.c.l.b16 %v195
    %v1026 = vunpack.c.h.b16 %v195
    %v1027 = vunpack.c.l.b16 %v196
    %v1028 = vunpack.c.h.b16 %v196
    %v1029 = vunpack.c.l.b16 %v197
    %v1030 = vunpack.c.h.b16 %v197
    %v1031 = vunpack.c.l.b16 %v198
    %v1032 = vunpack.c.h.b16 %v198
    %v1033 = vunpack.c.l.b16 %v199
    %v1034 = vunpack.c.h.b16 %v199
    %v1035 = vunpack.c.l.b16 %v200
    %v1036 = vunpack.c.h.b16 %v200
    %v1037 = vunpack.c.l.b16 %v201
    %v1038 = vunpack.c.h.b16 %v201
    %v1039 = vunpack.c.l.b16 %v202
    %v1040 = vunpack.c.h.b16 %v202
    %v1041 = vunpack.c.l.b16 %v203
    %v1042 = vunpack.c.h.b16 %v203
    %v1043 = vunpack.c.l.b16 %v204
    %v1044 = vunpack.c.h.b16 %v204
    %v1045 = vunpack.c.l.b16 %v205
    %v1046 = vunpack.c.h.b16 %v205
    %v1047 = vunpack.c.l.b16 %v206
    %v1048 = vunpack.c.h.b16 %v206
    %v1049 = vunpack.c.l.b16 %v207
    %v1050 = vunpack.c.h.b16 %v207
    %v1051 = vunpack.c.l.b16 %v208
    %v1052 = vunpack.c.h.b16 %v208
    %v1053 = vunpack.c.l.b16 %v209
    %v1054 = vunpack.c.h.b16 %v209
    %v1055 = vunpack.c.l.b16 %v210
    %v1056 = vunpack.c.h.b16 %v210
    %v1057 = vunpack.c.l.b16 %v211
    %v1058 = vunpack.c.h.b16 %v211
    %v1059 = vunpack.c.l.b16 %v212
    %v1060 = vunpack.c.h.b16 %v212
    %v1061 = vunpack.c.l.b16 %v213
    %v1062 = vunpack.c.h.b16 %v213
    %v1063 = vunpack.c.l.b16 %v214
    %v1064 = vunpack.c.h.b16 %v214
    %v1065 = vunpack.c.l.b16 %v215
    %v1066 = vunpack.c.h.b16 %v215
    %v1067 = vunpack.c.l.b16 %v216
    %v1068 = vunpack.c.h.b16 %v216
    %v1069 = vunpack.c.l.b16 %v217
    %v1070 = vunpack.c.h.b16 %v217
    %v1071 = vunpack.c.l.b16 %v218
    %v1072 = vunpack.c.h.b16 %v218
    %v1073 = vunpack.c.l.b16 %v219
    %v1074 = vunpack.c.h.b16 %v219
    %v1075 = vunpack.c.l.b16 %v220
    %v1076 = vunpack.c.h.b16 %v220
    %v1077 = vunpack.c.l.b16 %v221
    %v1078 = vunpack.c.h.b16 %v221
    %v1079 = vunpack.c.l.b16 %v222
    %v1080 = vunpack.c.h.b16 %v222
    %v1081 = vunpack.c.l.b16 %v223
    %v1082 = vunpack.c.h.b16 %v223
    %v1083 = vunpack.c.l.b16 %v224
    %v1084 = vunpack.c.h.b16 %v224
    %v1085 = vunpack.c.l.b16 %v225
    %v1086 = vunpack.c.h.b16 %v225
    %v1087 = vunpack.c.l.b16 %v226
    %v1088 = vunpack.c.h.b16 %v226
    %v1089 = vunpack.c.l.b16 %v227
    %v1090 = vunpack.c.h.b16 %v227
    %v1091 = vunpack.c.l.b16 %v228
    %v1092 = vunpack.c.h.b16 %v228
    %v1093 = vunpack.c.l.b16 %v229
    %v1094 = vunpack.c.h.b16 %v229
    %v1095 = vunpack.c.l.b16 %v230
    %v1096 = vunpack.c.h.b16 %v230
    %v1097 = vunpack.c.l.b16 %v231
    %v1098 = vunpack.c.h.b16 %v231
    %v1099 = vunpack.c.l.b16 %v232
    %v1100 = vunpack.c.h.b16 %v232
    %v1101 = vunpack.c.l.b16 %v233
    %v1102 = vunpack.c.h.b16 %v233
    %v1103 = vunpack.c.l.b16 %v234
    %v1104 = vunpack.c.h.b16 %v234
    %v1105 = vunpack.c.l.b16 %v235
    %v1106 = vunpack.c.h.b16 %v235
    %v1107 = vunpack.c.l.b16 %v236
    %v1108 = vunpack.c.h.b16 %v236
    %v1109 = vunpack.c.l.b16 %v237
    %v1110 = vunpack.c.h.b16 %v237
    %v1111 = vunpack.c.l.b16 %v238
    %v1112 = vunpack.c.h.b16 %v238
    %v1113 = vunpack.c.l.b16 %v239
    %v1114 = vunpack.c.h.b16 %v239
    %v1115 = vunpack.c.l.b16 %v240
    %v1116 = vunpack.c.h.b16 %v240
    %v1117 = vunpack.c.l.b16 %v241
    %v1118 = vunpack.c.h.b16 %v241
    %v1119 = vunpack.c.l.b16 %v242
    %v1120 = vunpack.c.h.b16 %v242
    %v1121 = vunpack.c.l.b16 %v243
    %v1122 = vunpack.c.h.b16 %v243
    %v1123 = vunpack.c.l.b16 %v244
    %v1124 = vunpack.c.h.b16 %v244
    %v1125 = vunpack.c.l.b16 %v245
    %v1126 = vunpack.c.h.b16 %v245
    %v1127 = vunpack.c.l.b16 %v246
    %v1128 = vunpack.c.h.b16 %v246
    %v1129 = vunpack.c.l.b16 %v247
    %v1130 = vunpack.c.h.b16 %v247
    %v1131 = vunpack.c.l.b16 %v248
    %v1132 = vunpack.c.h.b16 %v248
    %v1133 = vunpack.c.l.b16 %v249
    %v1134 = vunpack.c.h.b16 %v249
    %v1135 = vunpack.c.l.b16 %v250
    %v1136 = vunpack.c.h.b16 %v250
    %v1137 = vunpack.c.l.b16 %v251
    %v1138 = vunpack.c.h.b16 %v251
    %v1139 = vunpack.c.l.b16 %v252
    %v1140 = vunpack.c.h.b16 %v252
    %v1141 = vunpack.c.l.b16 %v253
    %v1142 = vunpack.c.h.b16 %v253
    %v1143 = vunpack.c.l.b16 %v254
    %v1144 = vunpack.c.h.b16 %v254
    %v1145 = vunpack.c.l.b16 %v255
    %v1146 = vunpack.c.h.b16 %v255
    %v1147 = vunpack.c.l.b16 %v256
    %v1148 = vunpack.c.h.b16 %v256
    %v1149 = vunpack.c.l.b16 %v257
    %v1150 = vunpack.c.h.b16 %v257
    %v1151 = vunpack.c.l.b16 %v258
    %v1152 = vunpack.c.h.b16 %v258
    %v1153 = vunpack.c.l.b16 %v259
    %v1154 = vunpack.c.h.b16 %v259
    %v1155 = vunpack.c.l.b16 %v260
    %v1156 = vunpack.c.h.b16 %v260
    %v1157 = vunpack.c.l.b16 %v261
    %v1158 = vunpack.c.h.b16 %v261
    %v1159 = vunpack.c.l.b16 %v262
    %v1160 = vunpack.c.h.b16 %v262
    %v1161 = vunpack.c.l.b16 %v263
    %v1162 = vunpack.c.h.b16 %v263
    %v1163 = vunpack.c.l.b16 %v264
    %v1164 = vunpack.c.h.b16 %v264
    %v1165 = vunpack.c.l.b16 %v265
    %v1166 = vunpack.c.h.b16 %v265
    %v1167 = vunpack.c.l.b16 %v266
    %v1168 = vunpack.c.h.b16 %v266
    %v1169 = vunpack.c.l.b16 %v267
    %v1170 = vunpack.c.h.b16 %v267
    %v1171 = vunpack.c.l.b16 %v268
    %v1172 = vunpack.c.h.b16 %v268
    %v1173 = vunpack.c.l.b16 %v269
    %v1174 = vunpack.c.h.b16 %v269
    %v1175 = vunpack.c.l.b16 %v270
    %v1176 = vunpack.c.h.b16 %v270
    %v1177 = vunpack.c.l.b16 %v271
    %v1178 = vunpack.c.h.b16 %v271
    %v1179 = vunpack.c.l.b16 %v272
    %v1180 = vunpack.c.h.b16 %v272
    %v1181 = vunpack.c.l.b16 %v273
    %v1182 = vunpack.c.h.b16 %v273
    %v1183 = vunpack.c.l.b16 %v274
    %v1184 = vunpack.c.h.b16 %v274
    %v1185 = vunpack.c.l.b16 %v275
    %v1186 = vunpack.c.h.b16 %v275
    %v1187 = vunpack.c.l.b16 %v276
    %v1188 = vunpack.c.h.b16 %v276
    %v1189 = vunpack.c.l.b16 %v277
    %v1190 = vunpack.c.h.b16 %v277
    %v1191 = vunpack.c.l.b16 %v278
    %v1192 = vunpack.c.h.b16 %v278
    %v1193 = vunpack.c.l.b16 %v279
    %v1194 = vunpack.c.h.b16 %v279
    %v1195 = vunpack.c.l.b16 %v280
    %v1196 = vunpack.c.h.b16 %v280
    %v1197 = vunpack.c.l.b16 %v281
    %v1198 = vunpack.c.h.b16 %v281
    %v1199 = vunpack.c.l.b16 %v282
    %v1200 = vunpack.c.h.b16 %v282
    %v1201 = vunpack.c.l.b16 %v283
    %v1202 = vunpack.c.h.b16 %v283
    %v1203 = vunpack.c.l.b16 %v284
    %v1204 = vunpack.c.h.b16 %v284
    %v1205 = vunpack.c.l.b16 %v285
    %v1206 = vunpack.c.h.b16 %v285
    %v1207 = vunpack.c.l.b16 %v286
    %v1208 = vunpack.c.h.b16 %v286
    %v1209 = vunpack.c.l.b16 %v287
    %v1210 = vunpack.c.h.b16 %v287
    %v1211 = vunpack.c.l.b16 %v288
    %v1212 = vunpack.c.h.b16 %v288
    %v1213 = vunpack.c.l.b16 %v289
    %v1214 = vunpack.c.h.b16 %v289
    %v1215 = vunpack.c.l.b16 %v290
    %v1216 = vunpack.c.h.b16 %v290
    %v1217 = vunpack.c.l.b16 %v291
    %v1218 = vunpack.c.h.b16 %v291
    %v1219 = vunpack.c.l.b16 %v292
    %v1220 = vunpack.c.h.b16 %v292
    %v1221 = vunpack.c.l.b16 %v293
    %v1222 = vunpack.c.h.b16 %v293
    %v1223 = vunpack.c.l.b16 %v294
    %v1224 = vunpack.c.h.b16 %v294
    %v1225 = vunpack.c.l.b16 %v295
    %v1226 = vunpack.c.h.b16 %v295
    %v1227 = vunpack.c.l.b16 %v296
    %v1228 = vunpack.c.h.b16 %v296
    %v1229 = vunpack.c.l.b16 %v297
    %v1230 = vunpack.c.h.b16 %v297
    %v1231 = vunpack.c.l.b16 %v298
    %v1232 = vunpack.c.h.b16 %v298
    %v1233 = vunpack.c.l.b16 %v299
    %v1234 = vunpack.c.h.b16 %v299
    %v1235 = vunpack.c.l.b16 %v300
    %v1236 = vunpack.c.h.b16 %v300
    %v1237 = vunpack.c.l.b16 %v301
    %v1238 = vunpack.c.h.b16 %v301
    %v1239 = vunpack.c.l.b16 %v302
    %v1240 = vunpack.c.h.b16 %v302
    %v1241 = vunpack.c.l.b16 %v303
    %v1242 = vunpack.c.h.b16 %v303
    %v1243 = vunpack.c.l.b16 %v304
    %v1244 = vunpack.c.h.b16 %v304
    %v1245 = vunpack.c.l.b16 %v305
    %v1246 = vunpack.c.h.b16 %v305
    %v1247 = vunpack.c.l.b16 %v306
    %v1248 = vunpack.c.h.b16 %v306
    %v1249 = vunpack.c.l.b16 %v307
    %v1250 = vunpack.c.h.b16 %v307
    %v1251 = vunpack.c.l.b16 %v308
    %v1252 = vunpack.c.h.b16 %v308
    %v1253 = vunpack.c.l.b16 %v309
    %v1254 = vunpack.c.h.b16 %v309
    %v1255 = vunpack.c.l.b16 %v310
    %v1256 = vunpack.c.h.b16 %v310
    %v1257 = vunpack.c.l.b16 %v311
    %v1258 = vunpack.c.h.b16 %v311
    %v1259 = vunpack.c.l.b16 %v312
    %v1260 = vunpack.c.h.b16 %v312
    %v1261 = vunpack.c.l.b16 %v313
    %v1262 = vunpack.c.h.b16 %v313
    %v1263 = vunpack.c.l.b16 %v314
    %v1264 = vunpack.c.h.b16 %v314
    %v1265 = vunpack.c.l.b16 %v315
    %v1266 = vunpack.c.h.b16 %v315
    %v1267 = vunpack.c.l.b16 %v316
    %v1268 = vunpack.c.h.b16 %v316
    %v1269 = vunpack.c.l.b16 %v317
    %v1270 = vunpack.c.h.b16 %v317
    %v1271 = vunpack.c.l.b16 %v318
    %v1272 = vunpack.c.h.b16 %v318
    %v1273 = vunpack.c.l.b16 %v319
    %v1274 = vunpack.c.h.b16 %v319
    %v1275 = vunpack.c.l.b16 %v320
    %v1276 = vunpack.c.h.b16 %v320
    %v1277 = vunpack.c.l.b16 %v321
    %v1278 = vunpack.c.h.b16 %v321
    %v1279 = vunpack.c.l.b16 %v322
    %v1280 = vunpack.c.h.b16 %v322
    %v1281 = vunpack.c.l.b16 %v323
    %v1282 = vunpack.c.h.b16 %v323
    %v1283 = vunpack.c.l.b16 %v324
    %v1284 = vunpack.c.h.b16 %v324
    %v1285 = vunpack.c.l.b16 %v325
    %v1286 = vunpack.c.h.b16 %v325
    %v1287 = vunpack.c.l.b16 %v326
    %v1288 = vunpack.c.h.b16 %v326
    %v1289 = vunpack.c.l.b16 %v327
    %v1290 = vunpack.c.h.b16 %v327
    %v1291 = vunpack.c.l.b16 %v328
    %v1292 = vunpack.c.h.b16 %v328
    %v1293 = vunpack.c.l.b16 %v329
    %v1294 = vunpack.c.h.b16 %v329
    %v1295 = vunpack.c.l.b16 %v330
    %v1296 = vunpack.c.h.b16 %v330
    %v1297 = vunpack.c.l.b16 %v331
    %v1298 = vunpack.c.h.b16 %v331
    %v1299 = vunpack.c.l.b16 %v332
    %v1300 = vunpack.c.h.b16 %v332
    %v1301 = vunpack.c.l.b16 %v333
    %v1302 = vunpack.c.h.b16 %v333
    %v1303 = vunpack.c.l.b16 %v334
    %v1304 = vunpack.c.h.b16 %v334
    %v1305 = vunpack.c.l.b16 %v335
    %v1306 = vunpack.c.h.b16 %v335
    %v1307 = vunpack.c.l.b16 %v336
    %v1308 = vunpack.c.h.b16 %v336
    %v1309 = vunpack.c.l.b16 %v337
    %v1310 = vunpack.c.h.b16 %v337
    %v1311 = vunpack.c.l.b16 %v338
    %v1312 = vunpack.c.h.b16 %v338
    %v1313 = vunpack.c.l.b16 %v339
    %v1314 = vunpack.c.h.b16 %v339
    %v1315 = vunpack.c.l.b16 %v340
    %v1316 = vunpack.c.h.b16 %v340
    %v1317 = vunpack.c.l.b16 %v341
    %v1318 = vunpack.c.h.b16 %v341
    %v1319 = vunpack.c.l.b16 %v342
    %v1320 = vunpack.c.h.b16 %v342
    %v1321 = vunpack.c.l.b16 %v343
    %v1322 = vunpack.c.h.b16 %v343
    %v1323 = vunpack.c.l.b16 %v344
    %v1324 = vunpack.c.h.b16 %v344
    %v1325 = vunpack.c.l.b16 %v345
    %v1326 = vunpack.c.h.b16 %v345
    %v1327 = vunpack.c.l.b16 %v346
    %v1328 = vunpack.c.h.b16 %v346
    %v1329 = vunpack.c.l.b16 %v347
    %v1330 = vunpack.c.h.b16 %v347
    %v1331 = vunpack.c.l.b16 %v348
    %v1332 = vunpack.c.h.b16 %v348
    %v1333 = vunpack.c.l.b16 %v349
    %v1334 = vunpack.c.h.b16 %v349
    %v1335 = vunpack.c.l.b16 %v350
    %v1336 = vunpack.c.h.b16 %v350
    %v1337 = vunpack.c.l.b16 %v351
    %v1338 = vunpack.c.h.b16 %v351
    %v1339 = vunpack.c.l.b16 %v352
    %v1340 = vunpack.c.h.b16 %v352
    %v1341 = vunpack.c.l.b16 %v353
    %v1342 = vunpack.c.h.b16 %v353
    %v1343 = vunpack.c.l.b16 %v354
    %v1344 = vunpack.c.h.b16 %v354
    %v1345 = vunpack.c.l.b16 %v355
    %v1346 = vunpack.c.h.b16 %v355
    %v1347 = vunpack.c.l.b16 %v356
    %v1348 = vunpack.c.h.b16 %v356
    %v1349 = vunpack.c.l.b16 %v357
    %v1350 = vunpack.c.h.b16 %v357
    %v1351 = vunpack.c.l.b16 %v358
    %v1352 = vunpack.c.h.b16 %v358
    %v1353 = vunpack.c.l.b16 %v359
    %v1354 = vunpack.c.h.b16 %v359
    %v1355 = vunpack.c.l.b16 %v360
    %v1356 = vunpack.c.h.b16 %v360
    %v1357 = vunpack.c.l.b16 %v361
    %v1358 = vunpack.c.h.b16 %v361
    %v1359 = vunpack.c.l.b16 %v362
    %v1360 = vunpack.c.h.b16 %v362
    %v1361 = vunpack.c.l.b16 %v363
    %v1362 = vunpack.c.h.b16 %v363
    %v1363 = vunpack.c.l.b16 %v364
    %v1364 = vunpack.c.h.b16 %v364
    %v1365 = vunpack.c.l.b16 %v365
    %v1366 = vunpack.c.h.b16 %v365
    %v1367 = vunpack.c.l.b16 %v366
    %v1368 = vunpack.c.h.b16 %v366
    %v1369 = vunpack.c.l.b16 %v367
    %v1370 = vunpack.c.h.b16 %v367
    %v1371 = vunpack.c.l.b16 %v368
    %v1372 = vunpack.c.h.b16 %v368
    %v1373 = vunpack.c.l.b16 %v369
    %v1374 = vunpack.c.h.b16 %v369
    %v1375 = vunpack.c.l.b16 %v370
    %v1376 = vunpack.c.h.b16 %v370
    %v1377 = vunpack.c.l.b16 %v371
    %v1378 = vunpack.c.h.b16 %v371
    %v1379 = vunpack.c.l.b16 %v372
    %v1380 = vunpack.c.h.b16 %v372
    %v1381 = vunpack.c.l.b16 %v373
    %v1382 = vunpack.c.h.b16 %v373
    %v1383 = vunpack.c.l.b16 %v374
    %v1384 = vunpack.c.h.b16 %v374
    %v1385 = vunpack.c.l.b16 %v375
    %v1386 = vunpack.c.h.b16 %v375
    %v1387 = vunpack.c.l.b16 %v376
    %v1388 = vunpack.c.h.b16 %v376
    %v1389 = vunpack.c.l.b16 %v377
    %v1390 = vunpack.c.h.b16 %v377
    %v1391 = vunpack.c.l.b16 %v378
    %v1392 = vunpack.c.h.b16 %v378
    %v1393 = vunpack.c.l.b16 %v379
    %v1394 = vunpack.c.h.b16 %v379
    %v1395 = vunpack.c.l.b16 %v380
    %v1396 = vunpack.c.h.b16 %v380
    %v1397 = vunpack.c.l.b16 %v381
    %v1398 = vunpack.c.h.b16 %v381
    %v1399 = vunpack.c.l.b16 %v382
    %v1400 = vunpack.c.h.b16 %v382
    %v1401 = vunpack.c.l.b16 %v383
    %v1402 = vunpack.c.h.b16 %v383
    %v1403 = vunpack.c.l.b16 %v384
    %v1404 = vunpack.c.h.b16 %v384
    %v1405 = vunpack.c.l.b16 %v385
    %v1406 = vunpack.c.h.b16 %v385
    %v1407 = vunpack.c.l.b16 %v386
    %v1408 = vunpack.c.h.b16 %v386
    %v1409 = vunpack.c.l.b16 %v387
    %v1410 = vunpack.c.h.b16 %v387
    %v1411 = vunpack.c.l.b16 %v388
    %v1412 = vunpack.c.h.b16 %v388
    %v1413 = vunpack.c.l.b16 %v389
    %v1414 = vunpack.c.h.b16 %v389
    %v1415 = vunpack.c.l.b16 %v390
    %v1416 = vunpack.c.h.b16 %v390
    %v1417 = vunpack.c.l.b16 %v391
    %v1418 = vunpack.c.h.b16 %v391
    %v1419 = vunpack.c.l.b16 %v392
    %v1420 = vunpack.c.h.b16 %v392
    %v1421 = vunpack.c.l.b16 %v393
    %v1422 = vunpack.c.h.b16 %v393
    %v1423 = vunpack.c.l.b16 %v394
    %v1424 = vunpack.c.h.b16 %v394
    %v1425 = vunpack.c.l.b16 %v395
    %v1426 = vunpack.c.h.b16 %v395
    %v1427 = vunpack.c.l.b16 %v396
    %v1428 = vunpack.c.h.b16 %v396
    %v1429 = vunpack.c.l.b16 %v397
    %v1430 = vunpack.c.h.b16 %v397
    %v1431 = vunpack.c.l.b16 %v398
    %v1432 = vunpack.c.h.b16 %v398
    %v1433 = vunpack.c.l.b16 %v399
    %v1434 = vunpack.c.h.b16 %v399
    %v1435 = vunpack.c.l.b16 %v400
    %v1436 = vunpack.c.h.b16 %v400
    %v1437 = vunpack.c.l.b16 %v401
    %v1438 = vunpack.c.h.b16 %v401
    %v1439 = vunpack.c.l.b16 %v402
    %v1440 = vunpack.c.h.b16 %v402
    %v1441 = vunpack.c.l.b16 %v403
    %v1442 = vunpack.c.h.b16 %v403
    %v1443 = vunpack.c.l.b16 %v404
    %v1444 = vunpack.c.h.b16 %v404
    %v1445 = vunpack.c.l.b16 %v405
    %v1446 = vunpack.c.h.b16 %v405
    %v1447 = vunpack.c.l.b16 %v406
    %v1448 = vunpack.c.h.b16 %v406
    %v1449 = vunpack.c.l.b16 %v407
    %v1450 = vunpack.c.h.b16 %v407
    %v1451 = vunpack.c.l.b16 %v408
    %v1452 = vunpack.c.h.b16 %v408
    %v1453 = vunpack.c.l.b16 %v409
    %v1454 = vunpack.c.h.b16 %v409
    %v1455 = vunpack.c.l.b16 %v410
    %v1456 = vunpack.c.h.b16 %v410
    %v1457 = vunpack.c.l.b16 %v411
    %v1458 = vunpack.c.h.b16 %v411
    %v1459 = vunpack.c.l.b16 %v412
    %v1460 = vunpack.c.h.b16 %v412
    %v1461 = vunpack.c.l.b16 %v413
    %v1462 = vunpack.c.h.b16 %v413
    %v1463 = vunpack.c.l.b16 %v414
    %v1464 = vunpack.c.h.b16 %v414
    %v1465 = vunpack.c.l.b16 %v415
    %v1466 = vunpack.c.h.b16 %v415
    %v1467 = vunpack.c.l.b16 %v416
    %v1468 = vunpack.c.h.b16 %v416
    %v1469 = vunpack.c.l.b16 %v417
    %v1470 = vunpack.c.h.b16 %v417
    %v1471 = vunpack.c.l.b16 %v418
    %v1472 = vunpack.c.h.b16 %v418
    %v1473 = vunpack.c.l.b16 %v419
    %v1474 = vunpack.c.h.b16 %v419
    %v1475 = vunpack.c.l.b16 %v420
    %v1476 = vunpack.c.h.b16 %v420
    %v1477 = vunpack.c.l.b16 %v421
    %v1478 = vunpack.c.h.b16 %v421
    %v1479 = vunpack.c.l.b16 %v422
    %v1480 = vunpack.c.h.b16 %v422
    %v1481 = vunpack.c.l.b16 %v423
    %v1482 = vunpack.c.h.b16 %v423
    %v1483 = vunpack.c.l.b16 %v424
    %v1484 = vunpack.c.h.b16 %v424
    %v1485 = vunpack.c.l.b16 %v425
    %v1486 = vunpack.c.h.b16 %v425
    %v1487 = vunpack.c.l.b16 %v426
    %v1488 = vunpack.c.h.b16 %v426
    %v1489 = vunpack.c.l.b16 %v427
    %v1490 = vunpack.c.h.b16 %v427
    %v1491 = vunpack.c.l.b16 %v428
    %v1492 = vunpack.c.h.b16 %v428
    %v1493 = vunpack.c.l.b16 %v429
    %v1494 = vunpack.c.h.b16 %v429
    %v1495 = vunpack.c.l.b16 %v430
    %v1496 = vunpack.c.h.b16 %v430
    %v1497 = vunpack.c.l.b16 %v431
    %v1498 = vunpack.c.h.b16 %v431
    %v1499 = vunpack.c.l.b16 %v432
    %v1500 = vunpack.c.h.b16 %v432
    %v1501 = vunpack.c.l.b16 %v433
    %v1502 = vunpack.c.h.b16 %v433
    %v1503 = vunpack.c.l.b16 %v434
    %v1504 = vunpack.c.h.b16 %v434
    %v1505 = vunpack.c.l.b16 %v435
    %v1506 = vunpack.c.h.b16 %v435
    %v1507 = vunpack.c.l.b16 %v436
    %v1508 = vunpack.c.h.b16 %v436
    %v1509 = vunpack.c.l.b16 %v437
    %v1510 = vunpack.c.h.b16 %v437
    %v1511 = vunpack.c.l.b16 %v438
    %v1512 = vunpack.c.h.b16 %v438
    %v1513 = vunpack.c.l.b16 %v439
    %v1514 = vunpack.c.h.b16 %v439
    %v1515 = vunpack.c.l.b16 %v440
    %v1516 = vunpack.c.h.b16 %v440
    %v1517 = vunpack.c.l.b16 %v441
    %v1518 = vunpack.c.h.b16 %v441
    %v1519 = vunpack.c.l.b16 %v442
    %v1520 = vunpack.c.h.b16 %v442
    %v1521 = vunpack.c.l.b16 %v443
    %v1522 = vunpack.c.h.b16 %v443
    %v1523 = vunpack.c.l.b16 %v444
    %v1524 = vunpack.c.h.b16 %v444
    %v1525 = vunpack.c.l.b16 %v445
    %v1526 = vunpack.c.h.b16 %v445
    %v1527 = vunpack.c.l.b16 %v446
    %v1528 = vunpack.c.h.b16 %v446
    %v1529 = vunpack.c.l.b16 %v447
    %v1530 = vunpack.c.h.b16 %v447
    %v1531 = vunpack.c.l.b16 %v448
    %v1532 = vunpack.c.h.b16 %v448
    %v1533 = vunpack.c.l.b16 %v449
    %v1534 = vunpack.c.h.b16 %v449
    %v1535 = vunpack.c.l.b16 %v450
    %v1536 = vunpack.c.h.b16 %v450
    %v1537 = vunpack.c.l.b16 %v451
    %v1538 = vunpack.c.h.b16 %v451
    %v1539 = vunpack.c.l.b16 %v452
    %v1540 = vunpack.c.h.b16 %v452
    %v1541 = vunpack.c.l.b16 %v453
    %v1542 = vunpack.c.h.b16 %v453
    %v1543 = vunpack.c.l.b16 %v454
    %v1544 = vunpack.c.h.b16 %v454
    %v1545 = vunpack.c.l.b16 %v455
    %v1546 = vunpack.c.h.b16 %v455
    %v1547 = vunpack.c.l.b16 %v456
    %v1548 = vunpack.c.h.b16 %v456
    %v1549 = vunpack.c.l.b16 %v457
    %v1550 = vunpack.c.h.b16 %v457
    %v1551 = vunpack.c.l.b16 %v458
    %v1552 = vunpack.c.h.b16 %v458
    %v1553 = vunpack.c.l.b16 %v459
    %v1554 = vunpack.c.h.b16 %v459
    %v1555 = vunpack.c.l.b16 %v460
    %v1556 = vunpack.c.h.b16 %v460
    %v1557 = vunpack.c.l.b16 %v461
    %v1558 = vunpack.c.h.b16 %v461
    %v1559 = vunpack.c.l.b16 %v462
    %v1560 = vunpack.c.h.b16 %v462
    %v1561 = vunpack.c.l.b16 %v463
    %v1562 = vunpack.c.h.b16 %v463
    %v1563 = vunpack.c.l.b16 %v464
    %v1564 = vunpack.c.h.b16 %v464
    %v1565 = vunpack.c.l.b16 %v465
    %v1566 = vunpack.c.h.b16 %v465
    %v1567 = vunpack.c.l.b16 %v466
    %v1568 = vunpack.c.h.b16 %v466
    %v1569 = vunpack.c.l.b16 %v467
    %v1570 = vunpack.c.h.b16 %v467
    %v1571 = vunpack.c.l.b16 %v468
    %v1572 = vunpack.c.h.b16 %v468
    %v1573 = vunpack.c.l.b16 %v469
    %v1574 = vunpack.c.h.b16 %v469
    %v1575 = vunpack.c.l.b16 %v470
    %v1576 = vunpack.c.h.b16 %v470
    %v1577 = vunpack.c.l.b16 %v471
    %v1578 = vunpack.c.h.b16 %v471
    %v1579 = vunpack.c.l.b16 %v472
    %v1580 = vunpack.c.h.b16 %v472
    %v1581 = vunpack.c.l.b16 %v473
    %v1582 = vunpack.c.h.b16 %v473
    %v1583 = vunpack.c.l.b16 %v474
    %v1584 = vunpack.c.h.b16 %v474
    %v1585 = vunpack.c.l.b16 %v475
    %v1586 = vunpack.c.h.b16 %v475
    %v1587 = vunpack.c.l.b16 %v476
    %v1588 = vunpack.c.h.b16 %v476
    %v1589 = vunpack.c.l.b16 %v477
    %v1590 = vunpack.c.h.b16 %v477
    %v1591 = vunpack.c.l.b16 %v478
    %v1592 = vunpack.c.h.b16 %v478
    %v1593 = vunpack.c.l.b16 %v479
    %v1594 = vunpack.c.h.b16 %v479
    %v1595 = vunpack.c.l.b16 %v480
    %v1596 = vunpack.c.h.b16 %v480
    %v1597 = vunpack.c.l.b16 %v481
    %v1598 = vunpack.c.h.b16 %v481
    %v1599 = vunpack.c.l.b16 %v482
    %v1600 = vunpack.c.h.b16 %v482
    %v1601 = vunpack.c.l.b16 %v483
    %v1602 = vunpack.c.h.b16 %v483
    %v1603 = vunpack.c.l.b16 %v484
    %v1604 = vunpack.c.h.b16 %v484
    %v1605 = vunpack.c.l.b16 %v485
    %v1606 = vunpack.c.h.b16 %v485
    %v1607 = vunpack.c.l.b16 %v486
    %v1608 = vunpack.c.h.b16 %v486
    %v1609 = vunpack.c.l.b16 %v487
    %v1610 = vunpack.c.h.b16 %v487
    %v1611 = vunpack.c.l.b16 %v488
    %v1612 = vunpack.c.h.b16 %v488
    %v1613 = vunpack.c.l.b16 %v489
    %v1614 = vunpack.c.h.b16 %v489
    %v1615 = vunpack.c.l.b16 %v490
    %v1616 = vunpack.c.h.b16 %v490
    %v1617 = vunpack.c.l.b16 %v491
    %v1618 = vunpack.c.h.b16 %v491
    %v1619 = vunpack.c.l.b16 %v492
    %v1620 = vunpack.c.h.b16 %v492
    %v1621 = vunpack.c.l.b16 %v493
    %v1622 = vunpack.c.h.b16 %v493
    %v1623 = vunpack.c.l.b16 %v494
    %v1624 = vunpack.c.h.b16 %v494
    %v1625 = vunpack.c.l.b16 %v495
    %v1626 = vunpack.c.h.b16 %v495
    %v1627 = vunpack.c.l.b16 %v496
    %v1628 = vunpack.c.h.b16 %v496
    %v1629 = vunpack.c.l.b16 %v497
    %v1630 = vunpack.c.h.b16 %v497
    %v1631 = vunpack.c.l.b16 %v498
    %v1632 = vunpack.c.h.b16 %v498
    %v1633 = vunpack.c.l.b16 %v499
    %v1634 = vunpack.c.h.b16 %v499
    %v1635 = vunpack.c.l.b16 %v500
    %v1636 = vunpack.c.h.b16 %v500
    %v1637 = vunpack.c.l.b16 %v501
    %v1638 = vunpack.c.h.b16 %v501
    %v1639 = vunpack.c.l.b16 %v502
    %v1640 = vunpack.c.h.b16 %v502
    %v1641 = vunpack.c.l.b16 %v503
    %v1642 = vunpack.c.h.b16 %v503
    %v1643 = vunpack.c.l.b16 %v504
    %v1644 = vunpack.c.h.b16 %v504
    %v1645 = vunpack.c.l.b16 %v505
    %v1646 = vunpack.c.h.b16 %v505
    %v1647 = vunpack.c.l.b16 %v506
    %v1648 = vunpack.c.h.b16 %v506
    %v1649 = vunpack.c.l.b16 %v507
    %v1650 = vunpack.c.h.b16 %v507
    %v1651 = vunpack.c.l.b16 %v508
    %v1652 = vunpack.c.h.b16 %v508
    %v1653 = vunpack.c.l.b16 %v509
    %v1654 = vunpack.c.h.b16 %v509
    %v1655 = vunpack.c.l.b16 %v510
    %v1656 = vunpack.c.h.b16 %v510
    %v1657 = vunpack.c.l.b16 %v511
    %v1658 = vunpack.c.h.b16 %v511
    %v1659 = vunpack.c.l.b16 %v512
    %v1660 = vunpack.c.h.b16 %v512
    %v1661 = vunpack.c.l.b16 %v513
    %v1662 = vunpack.c.h.b16 %v513
    %v1663 = vunpack.c.l.b16 %v514
    %v1664 = vunpack.c.h.b16 %v514
    %v1665 = vunpack.c.l.b16 %v515
    %v1666 = vunpack.c.h.b16 %v515
    %v1667 = vunpack.c.l.b16 %v516
    %v1668 = vunpack.c.h.b16 %v516
    %v1669 = vunpack.c.l.b16 %v517
    %v1670 = vunpack.c.h.b16 %v517
    %v1671 = vunpack.c.l.b16 %v518
    %v1672 = vunpack.c.h.b16 %v518
    %v1673 = vunpack.c.l.b16 %v519
    %v1674 = vunpack.c.h.b16 %v519
    %v1675 = vunpack.c.l.b16 %v520
    %v1676 = vunpack.c.h.b16 %v520
    %v1677 = vunpack.c.l.b16 %v521
    %v1678 = vunpack.c.h.b16 %v521
    %v1679 = vunpack.c.l.b16 %v522
    %v1680 = vunpack.c.h.b16 %v522
    %v1681 = vunpack.c.l.b16 %v523
    %v1682 = vunpack.c.h.b16 %v523
    %v1683 = vunpack.c.l.b16 %v524
    %v1684 = vunpack.c.h.b16 %v524
    %v1685 = vunpack.c.l.b16 %v525
    %v1686 = vunpack.c.h.b16 %v525
    %v1687 = vunpack.c.l.b16 %v526
    %v1688 = vunpack.c.h.b16 %v526
    %v1689 = vunpack.c.l.b16 %v527
    %v1690 = vunpack.c.h.b16 %v527
    %v1691 = vunpack.c.l.b16 %v528
    %v1692 = vunpack.c.h.b16 %v528
    %v1693 = vunpack.c.l.b16 %v529
    %v1694 = vunpack.c.h.b16 %v529
    %v1695 = vunpack.c.l.b16 %v530
    %v1696 = vunpack.c.h.b16 %v530
    %v1697 = vunpack.c.l.b16 %v531
    %v1698 = vunpack.c.h.b16 %v531
    %v1699 = vunpack.c.l.b16 %v532
    %v1700 = vunpack.c.h.b16 %v532
    %v1701 = vunpack.c.l.b16 %v533
    %v1702 = vunpack.c.h.b16 %v533
    %v1703 = vunpack.c.l.b16 %v534
    %v1704 = vunpack.c.h.b16 %v534
    %v1705 = vunpack.c.l.b16 %v535
    %v1706 = vunpack.c.h.b16 %v535
    %v1707 = vunpack.c.l.b16 %v536
    %v1708 = vunpack.c.h.b16 %v536
    %v1709 = vunpack.c.l.b16 %v537
    %v1710 = vunpack.c.h.b16 %v537
    %v1711 = vunpack.c.l.b16 %v538
    %v1712 = vunpack.c.h.b16 %v538
    %v1713 = vunpack.c.l.b16 %v539
    %v1714 = vunpack.c.h.b16 %v539
    %v1715 = vunpack.c.l.b16 %v540
    %v1716 = vunpack.c.h.b16 %v540
    %v1717 = vunpack.c.l.b16 %v541
    %v1718 = vunpack.c.h.b16 %v541
    %v1719 = vunpack.c.l.b16 %v542
    %v1720 = vunpack.c.h.b16 %v542
    %v1721 = vunpack.c.l.b16 %v543
    %v1722 = vunpack.c.h.b16 %v543
    %v1723 = vunpack.c.l.b16 %v544
    %v1724 = vunpack.c.h.b16 %v544
    %v1725 = vunpack.c.l.b16 %v545
    %v1726 = vunpack.c.h.b16 %v545
    %v1727 = vunpack.c.l.b16 %v546
    %v1728 = vunpack.c.h.b16 %v546
    %v1729 = vunpack.c.l.b16 %v547
    %v1730 = vunpack.c.h.b16 %v547
    %v1731 = vunpack.c.l.b16 %v548
    %v1732 = vunpack.c.h.b16 %v548
    %v1733 = vpack.c.b16 %v971, %v965
    %v1734 = vpack.c.b16 %v972, %v966
    %v1735 = vpack.c.b16 %v973, %v967
    %v1736 = vpack.c.b16 %v974, %v968
    %v1737 = vpack.c.b16 %v975, %v969
    %v1738 = vpack.c.b16 %v976, %v970
    %v1739 = vpack.c.b16 %v983, %v977
    %v1740 = vpack.c.b16 %v984, %v978
    %v1741 = vpack.c.b16 %v985, %v979
    %v1742 = vpack.c.b16 %v986, %v980
    %v1743 = vpack.c.b16 %v987, %v981
    %v1744 = vpack.c.b16 %v988, %v982
    %v1745 = vpack.c.b16 %v995, %v989
    %v1746 = vpack.c.b16 %v996, %v990
    %v1747 = vpack.c.b16 %v997, %v991
    %v1748 = vpack.c.b16 %v998, %v992
    %v1749 = vpack.c.b16 %v999, %v993
    %v1750 = vpack.c.b16 %v1000, %v994
    %v1751 = vpack.c.b16 %v1007, %v1001
    %v1752 = vpack.c.b16 %v1008, %v1002
    %v1753 = vpack.c.b16 %v1009, %v1003
    %v1754 = vpack.c.b16 %v1010, %v1004
    %v1755 = vpack.c.b16 %v1011, %v1005
    %v1756 = vpack.c.b16 %v1012, %v1006
    %v1757 = vpack.c.b16 %v1019, %v1013
    %v1758 = vpack.c.b16 %v1020, %v1014
    %v1759 = vpack.c.b16 %v1021, %v1015
    %v1760 = vpack.c.b16 %v1022, %v1016
    %v1761 = vpack.c.b16 %v1023, %v1017
    %v1762 = vpack.c.b16 %v1024, %v1018
    %v1763 = vpack.c.b16 %v1031, %v1025
    %v1764 = vpack.c.b16 %v1032, %v1026
    %v1765 = vpack.c.b16 %v1033, %v1027
    %v1766 = vpack.c.b16 %v1034, %v1028
    %v1767 = vpack.c.b16 %v1035, %v1029
    %v1768 = vpack.c.b16 %v1036, %v1030
    %v1769 = vpack.c.b16 %v1043, %v1037
    %v1770 = vpack.c.b16 %v1044, %v1038
    %v1771 = vpack.c.b16 %v1045, %v1039
    %v1772 = vpack.c.b16 %v1046, %v1040
    %v1773 = vpack.c.b16 %v1047, %v1041
    %v1774 = vpack.c.b16 %v1048, %v1042
    %v1775 = vpack.c.b16 %v1055, %v1049
    %v1776 = vpack.c.b16 %v1056, %v1050
    %v1777 = vpack.c.b16 %v1057, %v1051
    %v1778 = vpack.c.b16 %v1058, %v1052
    %v1779 = vpack.c.b16 %v1059, %v1053
    %v1780 = vpack.c.b16 %v1060, %v1054
    %v1781 = vpack.c.b16 %v1067, %v1061
    %v1782 = vpack.c.b16 %v1068, %v1062
    %v1783 = vpack.c.b16 %v1069, %v1063
    %v1784 = vpack.c.b16 %v1070, %v1064
    %v1785 = vpack.c.b16 %v1071, %v1065
    %v1786 = vpack.c.b16 %v1072, %v1066
    %v1787 = vpack.c.b16 %v1079, %v1073
    %v1788 = vpack.c.b16 %v1080, %v1074
    %v1789 = vpack.c.b16 %v1081, %v1075
    %v1790 = vpack.c.b16 %v1082, %v1076
    %v1791 = vpack.c.b16 %v1083, %v1077
    %v1792 = vpack.c.b16 %v1084, %v1078
    %v1793 = vpack.c.b16 %v1091, %v1085
    %v1794 = vpack.c.b16 %v1092, %v1086
    %v1795 = vpack.c.b16 %v1093, %v1087
    %v1796 = vpack.c.b16 %v1094, %v1088
    %v1797 = vpack.c.b16 %v1095, %v1089
    %v1798 = vpack.c.b16 %v1096, %v1090
    %v1799 = vpack.c.b16 %v1103, %v1097
    %v1800 = vpack.c.b16 %v1104, %v1098
    %v1801 = vpack.c.b16 %v1105, %v1099
    %v1802 = vpack.c.b16 %v1106, %v1100
    %v1803 = vpack.c.b16 %v1107, %v1101
    %v1804 = vpack.c.b16 %v1108, %v1102
    %v1805 = vpack.c.b16 %v1115, %v1109
    %v1806 = vpack.c.b16 %v1116, %v1110
    %v1807 = vpack.c.b16 %v1117, %v1111
    %v1808 = vpack.c.b16 %v1118, %v1112
    %v1809 = vpack.c.b16 %v1119, %v1113
    %v1810 = vpack.c.b16 %v1120, %v1114
    %v1811 = vpack.c.b16 %v1127, %v1121
    %v1812 = vpack.c.b16 %v1128, %v1122
    %v1813 = vpack.c.b16 %v1129, %v1123
    %v1814 = vpack.c.b16 %v1130, %v1124
    %v1815 = vpack.c.b16 %v1131, %v1125
    %v1816 = vpack.c.b16 %v1132, %v1126
    %v1817 = vpack.c.b16 %v1139, %v1133
    %v1818 = vpack.c.b16 %v1140, %v1134
    %v1819 = vpack.c.b16 %v1141, %v1135
    %v1820 = vpack.c.b16 %v1142, %v1136
    %v1821 = vpack.c.b16 %v1143, %v1137
    %v1822 = vpack.c.b16 %v1144, %v1138
    %v1823 = vpack.c.b16 %v1151, %v1145
    %v1824 = vpack.c.b16 %v1152, %v1146
    %v1825 = vpack.c.b16 %v1153, %v1147
    %v1826 = vpack.c.b16 %v1154, %v1148
    %v1827 = vpack.c.b16 %v1155, %v1149
    %v1828 = vpack.c.b16 %v1156, %v1150
    %v1829 = vpack.c.b16 %v1163, %v1157
    %v1830 = vpack.c.b16 %v1164, %v1158
    %v1831 = vpack.c.b16 %v1165, %v1159
    %v1832 = vpack.c.b16 %v1166, %v1160
    %v1833 = vpack.c.b16 %v1167, %v1161
    %v1834 = vpack.c.b16 %v1168, %v1162
    %v1835 = vpack.c.b16 %v1175, %v1169
    %v1836 = vpack.c.b16 %v1176, %v1170
    %v1837 = vpack.c.b16 %v1177, %v1171
    %v1838 = vpack.c.b16 %v1178, %v1172
    %v1839 = vpack.c.b16 %v1179, %v1173
    %v1840 = vpack.c.b16 %v1180, %v1174
    %v1841 = vpack.c.b16 %v1187, %v1181
    %v1842 = vpack.c.b16 %v1188, %v1182
    %v1843 = vpack.c.b16 %v1189, %v1183
    %v1844 = vpack.c.b16 %v1190, %v1184
    %v1845 = vpack.c.b16 %v1191, %v1185
    %v1846 = vpack.c.b16 %v1192, %v1186
    %v1847 = vpack.c.b16 %v1199, %v1193
    %v1848 = vpack.c.b16 %v1200, %v1194
    %v1849 = vpack.c.b16 %v1201, %v1195
    %v1850 = vpack.c.b16 %v1202, %v1196
    %v1851 = vpack.c.b16 %v1203, %v1197
    %v1852 = vpack.c.b16 %v1204, %v1198
    %v1853 = vpack.c.b16 %v1211, %v1205
    %v1854 = vpack.c.b16 %v1212, %v1206
    %v1855 = vpack.c.b16 %v1213, %v1207
    %v1856 = vpack.c.b16 %v1214, %v1208
    %v1857 = vpack.c.b16 %v1215, %v1209
    %v1858 = vpack.c.b16 %v1216, %v1210
    %v1859 = vpack.c.b16 %v1223, %v1217
    %v1860 = vpack.c.b16 %v1224, %v1218
    %v1861 = vpack.c.b16 %v1225, %v1219
    %v1862 = vpack.c.b16 %v1226, %v1220
    %v1863 = vpack.c.b16 %v1227, %v1221
    %v1864 = vpack.c.b16 %v1228, %v1222
    %v1865 = vpack.c.b16 %v1235, %v1229
    %v1866 = vpack.c.b16 %v1236, %v1230
    %v1867 = vpack.c.b16 %v1237, %v1231
    %v1868 = vpack.c.b16 %v1238, %v1232
    %v1869 = vpack.c.b16 %v1239, %v1233
    %v1870 = vpack.c.b16 %v1240, %v1234
    %v1871 = vpack.c.b16 %v1247, %v1241
    %v1872 = vpack.c.b16 %v1248, %v1242
    %v1873 = vpack.c.b16 %v1249, %v1243
    %v1874 = vpack.c.b16 %v1250, %v1244
    %v1875 = vpack.c.b16 %v1251, %v1245
    %v1876 = vpack.c.b16 %v1252, %v1246
    %v1877 = vpack.c.b16 %v1259, %v1253
    %v1878 = vpack.c.b16 %v1260, %v1254
    %v1879 = vpack.c.b16 %v1261, %v1255
    %v1880 = vpack.c.b16 %v1262, %v1256
    %v1881 = vpack.c.b16 %v1263, %v1257
    %v1882 = vpack.c.b16 %v1264, %v1258
    %v1883 = vpack.c.b16 %v1271, %v1265
    %v1884 = vpack.c.b16 %v1272, %v1266
    %v1885 = vpack.c.b16 %v1273, %v1267
    %v1886 = vpack.c.b16 %v1274, %v1268
    %v1887 = vpack.c.b16 %v1275, %v1269
    %v1888 = vpack.c.b16 %v1276, %v1270
    %v1889 = vpack.c.b16 %v1283, %v1277
    %v1890 = vpack.c.b16 %v1284, %v1278
    %v1891 = vpack.c.b16 %v1285, %v1279
    %v1892 = vpack.c.b16 %v1286, %v1280
    %v1893 = vpack.c.b16 %v1287, %v1281
    %v1894 = vpack.c.b16 %v1288, %v1282
    %v1895 = vpack.c.b16 %v1295, %v1289
    %v1896 = vpack.c.b16 %v1296, %v1290
    %v1897 = vpack.c.b16 %v1297, %v1291
    %v1898 = vpack.c.b16 %v1298, %v1292
    %v1899 = vpack.c.b16 %v1299, %v1293
    %v1900 = vpack.c.b16 %v1300, %v1294
    %v1901 = vpack.c.b16 %v1307, %v1301
    %v1902 = vpack.c.b16 %v1308, %v1302
    %v1903 = vpack.c.b16 %v1309, %v1303
    %v1904 = vpack.c.b16 %v1310, %v1304
    %v1905 = vpack.c.b16 %v1311, %v1305
    %v1906 = vpack.c.b16 %v1312, %v1306
    %v1907 = vpack.c.b16 %v1319, %v1313
    %v1908 = vpack.c.b16 %v1320, %v1314
    %v1909 = vpack.c.b16 %v1321, %v1315
    %v1910 = vpack.c.b16 %v1322, %v1316
    %v1911 = vpack.c.b16 %v1323, %v1317
    %v1912 = vpack.c.b16 %v1324, %v1318
    %v1913 = vpack.c.b16 %v1331, %v1325
    %v1914 = vpack.c.b16 %v1332, %v1326
    %v1915 = vpack.c.b16 %v1333, %v1327
    %v1916 = vpack.c.b16 %v1334, %v1328
    %v1917 = vpack.c.b16 %v1335, %v1329
    %v1918 = vpack.c.b16 %v1336, %v1330
    %v1919 = vpack.c.b16 %v1343, %v1337
    %v1920 = vpack.c.b16 %v1344, %v1338
    %v1921 = vpack.c.b16 %v1345, %v1339
    %v1922 = vpack.c.b16 %v1346, %v1340
    %v1923 = vpack.c.b16 %v1347, %v1341
    %v1924 = vpack.c.b16 %v1348, %v1342
    %v1925 = vpack.c.b16 %v1355, %v1349
    %v1926 = vpack.c.b16 %v1356, %v1350
    %v1927 = vpack.c.b16 %v1357, %v1351
    %v1928 = vpack.c.b16 %v1358, %v1352
    %v1929 = vpack.c.b16 %v1359, %v1353
    %v1930 = vpack.c.b16 %v1360, %v1354
    %v1931 = vpack.c.b16 %v1367, %v1361
    %v1932 = vpack.c.b16 %v1368, %v1362
    %v1933 = vpack.c.b16 %v1369, %v1363
    %v1934 = vpack.c.b16 %v1370, %v1364
    %v1935 = vpack.c.b16 %v1371, %v1365
    %v1936 = vpack.c.b16 %v1372, %v1366
    %v1937 = vpack.c.b16 %v1379, %v1373
    %v1938 = vpack.c.b16 %v1380, %v1374
    %v1939 = vpack.c.b16 %v1381, %v1375
    %v1940 = vpack.c.b16 %v1382, %v1376
    %v1941 = vpack.c.b16 %v1383, %v1377
    %v1942 = vpack.c.b16 %v1384, %v1378
    %v1943 = vpack.c.b16 %v1391, %v1385
    %v1944 = vpack.c.b16 %v1392, %v1386
    %v1945 = vpack.c.b16 %v1393, %v1387
    %v1946 = vpack.c.b16 %v1394, %v1388
    %v1947 = vpack.c.b16 %v1395, %v1389
    %v1948 = vpack.c.b16 %v1396, %v1390
    %v1949 = vpack.c.b16 %v1403, %v1397
    %v1950 = vpack.c.b16 %v1404, %v1398
    %v1951 = vpack.c.b16 %v1405, %v1399
    %v1952 = vpack.c.b16 %v1406, %v1400
    %v1953 = vpack.c.b16 %v1407, %v1401
    %v1954 = vpack.c.b16 %v1408, %v1402
    %v1955 = vpack.c.b16 %v1415, %v1409
    %v1956 = vpack.c.b16 %v1416, %v1410
    %v1957 = vpack.c.b16 %v1417, %v1411
    %v1958 = vpack.c.b16 %v1418, %v1412
    %v1959 = vpack.c.b16 %v1419, %v1413
    %v1960 = vpack.c.b16 %v1420, %v1414
    %v1961 = vpack.c.b16 %v1427, %v1421
    %v1962 = vpack.c.b16 %v1428, %v1422
    %v1963 = vpack.c.b16 %v1429, %v1423
    %v1964 = vpack.c.b16 %v1430, %v1424
    %v1965 = vpack.c.b16 %v1431, %v1425
    %v1966 = vpack.c.b16 %v1432, %v1426
    %v1967 = vpack.c.b16 %v1439, %v1433
    %v1968 = vpack.c.b16 %v1440, %v1434
    %v1969 = vpack.c.b16 %v1441, %v1435
    %v1970 = vpack.c.b16 %v1442, %v1436
    %v1971 = vpack.c.b16 %v1443, %v1437
    %v1972 = vpack.c.b16 %v1444, %v1438
    %v1973 = vpack.c.b16 %v1451, %v1445
    %v1974 = vpack.c.b16 %v1452, %v1446
    %v1975 = vpack.c.b16 %v1453, %v1447
    %v1976 = vpack.c.b16 %v1454, %v1448
    %v1977 = vpack.c.b16 %v1455, %v1449
    %v1978 = vpack.c.b16 %v1456, %v1450
    %v1979 = vpack.c.b16 %v1463, %v1457
    %v1980 = vpack.c.b16 %v1464, %v1458
    %v1981 = vpack.c.b16 %v1465, %v1459
    %v1982 = vpack.c.b16 %v1466, %v1460
    %v1983 = vpack.c.b16 %v1467, %v1461
    %v1984 = vpack.c.b16 %v1468, %v1462
    %v1985 = vpack.c.b16 %v1475, %v1469
    %v1986 = vpack.c.b16 %v1476, %v1470
    %v1987 = vpack.c.b16 %v1477, %v1471
    %v1988 = vpack.c.b16 %v1478, %v1472
    %v1989 = vpack.c.b16 %v1479, %v1473
    %v1990 = vpack.c.b16 %v1480, %v1474
    %v1991 = vpack.c.b16 %v1487, %v1481
    %v1992 = vpack.c.b16 %v1488, %v1482
    %v1993 = vpack.c.b16 %v1489, %v1483
    %v1994 = vpack.c.b16 %v1490, %v1484
    %v1995 = vpack.c.b16 %v1491, %v1485
    %v1996 = vpack.c.b16 %v1492, %v1486
    %v1997 = vpack.c.b16 %v1499, %v1493
    %v1998 = vpack.c.b16 %v1500, %v1494
    %v1999 = vpack.c.b16 %v1501, %v1495
    %v2000 = vpack.c.b16 %v1502, %v1496
    %v2001 = vpack.c.b16 %v1503, %v1497
    %v2002 = vpack.c.b16 %v1504, %v1498
    %v2003 = vpack.c.b16 %v1511, %v1505
    %v2004 = vpack.c.b16 %v1512, %v1506
    %v2005 = vpack.c.b16 %v1513, %v1507
    %v2006 = vpack.c.b16 %v1514, %v1508
    %v2007 = vpack.c.b16 %v1515, %v1509
    %v2008 = vpack.c.b16 %v1516, %v1510
    %v2009 = vpack.c.b16 %v1523, %v1517
    %v2010 = vpack.c.b16 %v1524, %v1518
    %v2011 = vpack.c.b16 %v1525, %v1519
    %v2012 = vpack.c.b16 %v1526, %v1520
    %v2013 = vpack.c.b16 %v1527, %v1521
    %v2014 = vpack.c.b16 %v1528, %v1522
    %v2015 = vpack.c.b16 %v1535, %v1529
    %v2016 = vpack.c.b16 %v1536, %v1530
    %v2017 = vpack.c.b16 %v1537, %v1531
    %v2018 = vpack.c.b16 %v1538, %v1532
    %v2019 = vpack.c.b16 %v1539, %v1533
    %v2020 = vpack.c.b16 %v1540, %v1534
    %v2021 = vpack.c.b16 %v1547, %v1541
    %v2022 = vpack.c.b16 %v1548, %v1542
    %v2023 = vpack.c.b16 %v1549, %v1543
    %v2024 = vpack.c.b16 %v1550, %v1544
    %v2025 = vpack.c.b16 %v1551, %v1545
    %v2026 = vpack.c.b16 %v1552, %v1546
    %v2027 = vpack.c.b16 %v1559, %v1553
    %v2028 = vpack.c.b16 %v1560, %v1554
    %v2029 = vpack.c.b16 %v1561, %v1555
    %v2030 = vpack.c.b16 %v1562, %v1556
    %v2031 = vpack.c.b16 %v1563, %v1557
    %v2032 = vpack.c.b16 %v1564, %v1558
    %v2033 = vpack.c.b16 %v1571, %v1565
    %v2034 = vpack.c.b16 %v1572, %v1566
    %v2035 = vpack.c.b16 %v1573, %v1567
    %v2036 = vpack.c.b16 %v1574, %v1568
    %v2037 = vpack.c.b16 %v1575, %v1569
    %v2038 = vpack.c.b16 %v1576, %v1570
    %v2039 = vpack.c.b16 %v1583, %v1577
    %v2040 = vpack.c.b16 %v1584, %v1578
    %v2041 = vpack.c.b16 %v1585, %v1579
    %v2042 = vpack.c.b16 %v1586, %v1580
    %v2043 = vpack.c.b16 %v1587, %v1581
    %v2044 = vpack.c.b16 %v1588, %v1582
    %v2045 = vpack.c.b16 %v1595, %v1589
    %v2046 = vpack.c.b16 %v1596, %v1590
    %v2047 = vpack.c.b16 %v1597, %v1591
    %v2048 = vpack.c.b16 %v1598, %v1592
    %v2049 = vpack.c.b16 %v1599, %v1593
    %v2050 = vpack.c.b16 %v1600, %v1594
    %v2051 = vpack.c.b16 %v1607, %v1601
    %v2052 = vpack.c.b16 %v1608, %v1602
    %v2053 = vpack.c.b16 %v1609, %v1603
    %v2054 = vpack.c.b16 %v1610, %v1604
    %v2055 = vpack.c.b16 %v1611, %v1605
    %v2056 = vpack.c.b16 %v1612, %v1606
    %v2057 = vpack.c.b16 %v1619, %v1613
    %v2058 = vpack.c.b16 %v1620, %v1614
    %v2059 = vpack.c.b16 %v1621, %v1615
    %v2060 = vpack.c.b16 %v1622, %v1616
    %v2061 = vpack.c.b16 %v1623, %v1617
    %v2062 = vpack.c.b16 %v1624, %v1618
    %v2063 = vpack.c.b16 %v1631, %v1625
    %v2064 = vpack.c.b16 %v1632, %v1626
    %v2065 = vpack.c.b16 %v1633, %v1627
    %v2066 = vpack.c.b16 %v1634, %v1628
    %v2067 = vpack.c.b16 %v1635, %v1629
    %v2068 = vpack.c.b16 %v1636, %v1630
    %v2069 = vpack.c.b16 %v1643, %v1637
    %v2070 = vpack.c.b16 %v1644, %v1638
    %v2071 = vpack.c.b16 %v1645, %v1639
    %v2072 = vpack.c.b16 %v1646, %v1640
    %v2073 = vpack.c.b16 %v1647, %v1641
    %v2074 = vpack.c.b16 %v1648, %v1642
    %v2075 = vpack.c.b16 %v1655, %v1649
    %v2076 = vpack.c.b16 %v1656, %v1650
    %v2077 = vpack.c.b16 %v1657, %v1651
    %v2078 = vpack.c.b16 %v1658, %v1652
    %v2079 = vpack.c.b16 %v1659, %v1653
    %v2080 = vpack.c.b16 %v1660, %v1654
    %v2081 = vpack.c.b16 %v1667, %v1661
    %v2082 = vpack.c.b16 %v1668, %v1662
    %v2083 = vpack.c.b16 %v1669, %v1663
    %v2084 = vpack.c.b16 %v1670, %v1664
    %v2085 = vpack.c.b16 %v1671, %v1665
    %v2086 = vpack.c.b16 %v1672, %v1666
    %v2087 = vpack.c.b16 %v1679, %v1673
    %v2088 = vpack.c.b16 %v1680, %v1674
    %v2089 = vpack.c.b16 %v1681, %v1675
    %v2090 = vpack.c.b16 %v1682, %v1676
    %v2091 = vpack.c.b16 %v1683, %v1677
    %v2092 = vpack.c.b16 %v1684, %v1678
    %v2093 = vpack.c.b16 %v1691, %v1685
    %v2094 = vpack.c.b16 %v1692, %v1686
    %v2095 = vpack.c.b16 %v1693, %v1687
    %v2096 = vpack.c.b16 %v1694, %v1688
    %v2097 = vpack.c.b16 %v1695, %v1689
    %v2098 = vpack.c.b16 %v1696, %v1690
    %v2099 = vpack.c.b16 %v1703, %v1697
    %v2100 = vpack.c.b16 %v1704, %v1698
    %v2101 = vpack.c.b16 %v1705, %v1699
    %v2102 = vpack.c.b16 %v1706, %v1700
    %v2103 = vpack.c.b16 %v1707, %v1701
    %v2104 = vpack.c.b16 %v1708, %v1702
    %v2105 = vpack.c.b16 %v1715, %v1709
    %v2106 = vpack.c.b16 %v1716, %v1710
    %v2107 = vpack.c.b16 %v1717, %v1711
    %v2108 = vpack.c.b16 %v1718, %v1712
    %v2109 = vpack.c.b16 %v1719, %v1713
    %v2110 = vpack.c.b16 %v1720, %v1714
    %v2111 = vpack.c.b16 %v1727, %v1721
    %v2112 = vpack.c.b16 %v1728, %v1722
    %v2113 = vpack.c.b16 %v1729, %v1723
    %v2114 = vpack.c.b16 %v1730, %v1724
    %v2115 = vpack.c.b16 %v1731, %v1725
    %v2116 = vpack.c.b16 %v1732, %v1726
    %2501 = vmatprep.subr.bf16.mxu0 %v1734
    %2502 = vmatpush1.bf16.msra.mxu0 %v1733
    %2503 = vmatprep.subr.bf16.mxu0 %v1740
    %2504 = vmatpush1.bf16.msra.mxu0 %v1739
    %2505 = vmatprep.subr.bf16.mxu0 %v1746
    %2506 = vmatpush1.bf16.msra.mxu0 %v1745
    %2507 = vmatprep.subr.bf16.mxu0 %v1752
    %2508 = vmatpush1.bf16.msra.mxu0 %v1751
    %2509 = vmatprep.subr.bf16.mxu0 %v1758
    %2510 = vmatpush1.bf16.msra.mxu0 %v1757
    %2511 = vmatprep.subr.bf16.mxu0 %v1764
    %2512 = vmatpush1.bf16.msra.mxu0 %v1763
    %2513 = vmatprep.subr.bf16.mxu0 %v1770
    %2514 = vmatpush1.bf16.msra.mxu0 %v1769
    %2515 = vmatprep.subr.bf16.mxu0 %v1776
    %2516 = vmatpush1.bf16.msra.mxu0 %v1775
    %2517 = vmatprep.subr.bf16.mxu0 %v1782
    %2518 = vmatpush1.bf16.msra.mxu0 %v1781
    %2519 = vmatprep.subr.bf16.mxu0 %v1788
    %2520 = vmatpush1.bf16.msra.mxu0 %v1787
    %2521 = vmatprep.subr.bf16.mxu0 %v1794
    %2522 = vmatpush1.bf16.msra.mxu0 %v1793
    %2523 = vmatprep.subr.bf16.mxu0 %v1800
    %2524 = vmatpush1.bf16.msra.mxu0 %v1799
    %2525 = vmatprep.subr.bf16.mxu0 %v1806
    %2526 = vmatpush1.bf16.msra.mxu0 %v1805
    %2527 = vmatprep.subr.bf16.mxu0 %v1812
    %2528 = vmatpush1.bf16.msra.mxu0 %v1811
    %2529 = vmatprep.subr.bf16.mxu0 %v1818
    %2530 = vmatpush1.bf16.msra.mxu0 %v1817
    %2531 = vmatprep.subr.bf16.mxu0 %v1824
    %2532 = vmatpush1.bf16.msra.mxu0 %v1823
    %2533 = vmatprep.mubr.bf16.mxu0 %v158
    %2534 = vmatmul.mubr.bf16.gmra.mrb[0].mxu0 %v157
    %v2535 = vpop.f32.mrb[0].mxu0
    %v2536 = vadd.f32 %v554, %v2535
    %v2537 = vpop.f32.mrb[0].mxu0
    %v2538 = vadd.f32 %v558, %v2537
    %v2539 = vpop.f32.mrb[0].mxu0
    %v2540 = vpop.f32.mrb[0].mxu0
    %2541 = vdwg.mxu0
    %2542 = vmatprep.subr.bf16.mxu0 %v1830
    %2543 = vmatpush1.bf16.msra.mxu0 %v1829
    %2544 = vmatprep.subr.bf16.mxu0 %v1836
    %2545 = vmatpush1.bf16.msra.mxu0 %v1835
    %2546 = vmatprep.subr.bf16.mxu0 %v1842
    %2547 = vmatpush1.bf16.msra.mxu0 %v1841
    %2548 = vmatprep.subr.bf16.mxu0 %v1848
    %2549 = vmatpush1.bf16.msra.mxu0 %v1847
    %2550 = vmatprep.subr.bf16.mxu0 %v1854
    %2551 = vmatpush1.bf16.msra.mxu0 %v1853
    %2552 = vmatprep.subr.bf16.mxu0 %v1860
    %2553 = vmatpush1.bf16.msra.mxu0 %v1859
    %2554 = vmatprep.subr.bf16.mxu0 %v1866
    %2555 = vmatpush1.bf16.msra.mxu0 %v1865
    %2556 = vmatprep.subr.bf16.mxu0 %v1872
    %2557 = vmatpush1.bf16.msra.mxu0 %v1871
    %2558 = vmatprep.subr.bf16.mxu0 %v1878
    %2559 = vmatpush1.bf16.msra.mxu0 %v1877
    %2560 = vmatprep.subr.bf16.mxu0 %v1884
    %2561 = vmatpush1.bf16.msra.mxu0 %v1883
    %2562 = vmatprep.subr.bf16.mxu0 %v1890
    %2563 = vmatpush1.bf16.msra.mxu0 %v1889
    %2564 = vmatprep.subr.bf16.mxu0 %v1896
    %2565 = vmatpush1.bf16.msra.mxu0 %v1895
    %2566 = vmatprep.subr.bf16.mxu0 %v1902
    %2567 = vmatpush1.bf16.msra.mxu0 %v1901
    %2568 = vmatprep.subr.bf16.mxu0 %v1908
    %2569 = vmatpush1.bf16.msra.mxu0 %v1907
    %2570 = vmatprep.subr.bf16.mxu0 %v1914
    %2571 = vmatpush1.bf16.msra.mxu0 %v1913
    %2572 = vmatprep.subr.bf16.mxu0 %v1920
    %2573 = vmatpush1.bf16.msra.mxu0 %v1919
    %2574 = vmatprep.mubr.bf16.mxu0 %v160
    %2575 = vmatmul.mubr.bf16.gmra.mrb[0].mxu0 %v159
    %v2576 = vpop.f32.mrb[0].mxu0
    %v2577 = vadd.f32 %v2536, %v2576
    %v2578 = vpop.f32.mrb[0].mxu0
    %v2579 = vadd.f32 %v2538, %v2578
    %v2580 = vpop.f32.mrb[0].mxu0
    %v2581 = vpop.f32.mrb[0].mxu0
    %2582 = vdwg.mxu0
    %2583 = vmatprep.subr.bf16.mxu0 %v1926
    %2584 = vmatpush1.bf16.msra.mxu0 %v1925
    %2585 = vmatprep.subr.bf16.mxu0 %v1932
    %2586 = vmatpush1.bf16.msra.mxu0 %v1931
    %2587 = vmatprep.subr.bf16.mxu0 %v1938
    %2588 = vmatpush1.bf16.msra.mxu0 %v1937
    %2589 = vmatprep.subr.bf16.mxu0 %v1944
    %2590 = vmatpush1.bf16.msra.mxu0 %v1943
    %2591 = vmatprep.subr.bf16.mxu0 %v1950
    %2592 = vmatpush1.bf16.msra.mxu0 %v1949
    %2593 = vmatprep.subr.bf16.mxu0 %v1956
    %2594 = vmatpush1.bf16.msra.mxu0 %v1955
    %2595 = vmatprep.subr.bf16.mxu0 %v1962
    %2596 = vmatpush1.bf16.msra.mxu0 %v1961
    %2597 = vmatprep.subr.bf16.mxu0 %v1968
    %2598 = vmatpush1.bf16.msra.mxu0 %v1967
    %2599 = vmatprep.subr.bf16.mxu0 %v1974
    %2600 = vmatpush1.bf16.msra.mxu0 %v1973
    %2601 = vmatprep.subr.bf16.mxu0 %v1980
    %2602 = vmatpush1.bf16.msra.mxu0 %v1979
    %2603 = vmatprep.subr.bf16.mxu0 %v1986
    %2604 = vmatpush1.bf16.msra.mxu0 %v1985
    %2605 = vmatprep.subr.bf16.mxu0 %v1992
    %2606 = vmatpush1.bf16.msra.mxu0 %v1991
    %2607 = vmatprep.subr.bf16.mxu0 %v1998
    %2608 = vmatpush1.bf16.msra.mxu0 %v1997
    %2609 = vmatprep.subr.bf16.mxu0 %v2004
    %2610 = vmatpush1.bf16.msra.mxu0 %v2003
    %2611 = vmatprep.subr.bf16.mxu0 %v2010
    %2612 = vmatpush1.bf16.msra.mxu0 %v2009
    %2613 = vmatprep.subr.bf16.mxu0 %v2016
    %2614 = vmatpush1.bf16.msra.mxu0 %v2015
    %2615 = vmatprep.mubr.bf16.mxu0 %v162
    %2616 = vmatmul.mubr.bf16.gmra.mrb[0].mxu0 %v161
    %v2617 = vpop.f32.mrb[0].mxu0
    %v2618 = vadd.f32 %v2577, %v2617
    %v2619 = vpop.f32.mrb[0].mxu0
    %v2620 = vadd.f32 %v2579, %v2619
    %v2621 = vpop.f32.mrb[0].mxu0
    %v2622 = vpop.f32.mrb[0].mxu0
    %2623 = vdwg.mxu0
    %2624 = vmatprep.subr.bf16.mxu0 %v2022
    %2625 = vmatpush1.bf16.msra.mxu0 %v2021
    %2626 = vmatprep.subr.bf16.mxu0 %v2028
    %2627 = vmatpush1.bf16.msra.mxu0 %v2027
    %2628 = vmatprep.subr.bf16.mxu0 %v2034
    %2629 = vmatpush1.bf16.msra.mxu0 %v2033
    %2630 = vmatprep.subr.bf16.mxu0 %v2040
    %2631 = vmatpush1.bf16.msra.mxu0 %v2039
    %2632 = vmatprep.subr.bf16.mxu0 %v2046
    %2633 = vmatpush1.bf16.msra.mxu0 %v2045
    %2634 = vmatprep.subr.bf16.mxu0 %v2052
    %2635 = vmatpush1.bf16.msra.mxu0 %v2051
    %2636 = vmatprep.subr.bf16.mxu0 %v2058
    %2637 = vmatpush1.bf16.msra.mxu0 %v2057
    %2638 = vmatprep.subr.bf16.mxu0 %v2064
    %2639 = vmatpush1.bf16.msra.mxu0 %v2063
    %2640 = vmatprep.subr.bf16.mxu0 %v2070
    %2641 = vmatpush1.bf16.msra.mxu0 %v2069
    %2642 = vmatprep.subr.bf16.mxu0 %v2076
    %2643 = vmatpush1.bf16.msra.mxu0 %v2075
    %2644 = vmatprep.subr.bf16.mxu0 %v2082
    %2645 = vmatpush1.bf16.msra.mxu0 %v2081
    %2646 = vmatprep.subr.bf16.mxu0 %v2088
    %2647 = vmatpush1.bf16.msra.mxu0 %v2087
    %2648 = vmatprep.subr.bf16.mxu0 %v2094
    %2649 = vmatpush1.bf16.msra.mxu0 %v2093
    %2650 = vmatprep.subr.bf16.mxu0 %v2100
    %2651 = vmatpush1.bf16.msra.mxu0 %v2099
    %2652 = vmatprep.subr.bf16.mxu0 %v2106
    %2653 = vmatpush1.bf16.msra.mxu0 %v2105
    %2654 = vmatprep.subr.bf16.mxu0 %v2112
    %2655 = vmatpush1.bf16.msra.mxu0 %v2111
    %2656 = vmatprep.mubr.bf16.mxu0 %v164
    %2657 = vmatmul.mubr.bf16.gmra.mrb[0].mxu0 %v163
    %v2658 = vpop.f32.mrb[0].mxu0
    %v2659 = vadd.f32 %v2618, %v2658
    %v2660 = vpop.f32.mrb[0].mxu0
    %v2661 = vadd.f32 %v2620, %v2660
    %v2662 = vpop.f32.mrb[0].mxu0
    %v2663 = vpop.f32.mrb[0].mxu0
    %2664 = vdwg.mxu0
    %2665 = vmatprep.subr.bf16.mxu0 %v1736
    %2666 = vmatpush1.bf16.msra.mxu0 %v1735
    %2667 = vmatprep.subr.bf16.mxu0 %v1742
    %2668 = vmatpush1.bf16.msra.mxu0 %v1741
    %2669 = vmatprep.subr.bf16.mxu0 %v1748
    %2670 = vmatpush1.bf16.msra.mxu0 %v1747
    %2671 = vmatprep.subr.bf16.mxu0 %v1754
    %2672 = vmatpush1.bf16.msra.mxu0 %v1753
    %2673 = vmatprep.subr.bf16.mxu0 %v1760
    %2674 = vmatpush1.bf16.msra.mxu0 %v1759
    %2675 = vmatprep.subr.bf16.mxu0 %v1766
    %2676 = vmatpush1.bf16.msra.mxu0 %v1765
    %2677 = vmatprep.subr.bf16.mxu0 %v1772
    %2678 = vmatpush1.bf16.msra.mxu0 %v1771
    %2679 = vmatprep.subr.bf16.mxu0 %v1778
    %2680 = vmatpush1.bf16.msra.mxu0 %v1777
    %2681 = vmatprep.subr.bf16.mxu0 %v1784
    %2682 = vmatpush1.bf16.msra.mxu0 %v1783
    %2683 = vmatprep.subr.bf16.mxu0 %v1790
    %2684 = vmatpush1.bf16.msra.mxu0 %v1789
    %2685 = vmatprep.subr.bf16.mxu0 %v1796
    %2686 = vmatpush1.bf16.msra.mxu0 %v1795
    %2687 = vmatprep.subr.bf16.mxu0 %v1802
    %2688 = vmatpush1.bf16.msra.mxu0 %v1801
    %2689 = vmatprep.subr.bf16.mxu0 %v1808
    %2690 = vmatpush1.bf16.msra.mxu0 %v1807
    %2691 = vmatprep.subr.bf16.mxu0 %v1814
    %2692 = vmatpush1.bf16.msra.mxu0 %v1813
    %2693 = vmatprep.subr.bf16.mxu0 %v1820
    %2694 = vmatpush1.bf16.msra.mxu0 %v1819
    %2695 = vmatprep.subr.bf16.mxu0 %v1826
    %2696 = vmatpush1.bf16.msra.mxu0 %v1825
    %2697 = vmatprep.mubr.bf16.mxu0 %v158
    %2698 = vmatmul.mubr.bf16.gmra.mrb[0].mxu0 %v157
    %v2699 = vpop.f32.mrb[0].mxu0
    %v2700 = vadd.f32 %v562, %v2699
    %v2701 = vpop.f32.mrb[0].mxu0
    %v2702 = vadd.f32 %v566, %v2701
    %v2703 = vpop.f32.mrb[0].mxu0
    %v2704 = vpop.f32.mrb[0].mxu0
    %2705 = vdwg.mxu0
    %2706 = vmatprep.subr.bf16.mxu0 %v1832
    %2707 = vmatpush1.bf16.msra.mxu0 %v1831
    %2708 = vmatprep.subr.bf16.mxu0 %v1838
    %2709 = vmatpush1.bf16.msra.mxu0 %v1837
    %2710 = vmatprep.subr.bf16.mxu0 %v1844
    %2711 = vmatpush1.bf16.msra.mxu0 %v1843
    %2712 = vmatprep.subr.bf16.mxu0 %v1850
    %2713 = vmatpush1.bf16.msra.mxu0 %v1849
    %2714 = vmatprep.subr.bf16.mxu0 %v1856
    %2715 = vmatpush1.bf16.msra.mxu0 %v1855
    %2716 = vmatprep.subr.bf16.mxu0 %v1862
    %2717 = vmatpush1.bf16.msra.mxu0 %v1861
    %2718 = vmatprep.subr.bf16.mxu0 %v1868
    %2719 = vmatpush1.bf16.msra.mxu0 %v1867
    %2720 = vmatprep.subr.bf16.mxu0 %v1874
    %2721 = vmatpush1.bf16.msra.mxu0 %v1873
    %2722 = vmatprep.subr.bf16.mxu0 %v1880
    %2723 = vmatpush1.bf16.msra.mxu0 %v1879
    %2724 = vmatprep.subr.bf16.mxu0 %v1886
    %2725 = vmatpush1.bf16.msra.mxu0 %v1885
    %2726 = vmatprep.subr.bf16.mxu0 %v1892
    %2727 = vmatpush1.bf16.msra.mxu0 %v1891
    %2728 = vmatprep.subr.bf16.mxu0 %v1898
    %2729 = vmatpush1.bf16.msra.mxu0 %v1897
    %2730 = vmatprep.subr.bf16.mxu0 %v1904
    %2731 = vmatpush1.bf16.msra.mxu0 %v1903
    %2732 = vmatprep.subr.bf16.mxu0 %v1910
    %2733 = vmatpush1.bf16.msra.mxu0 %v1909
    %2734 = vmatprep.subr.bf16.mxu0 %v1916
    %2735 = vmatpush1.bf16.msra.mxu0 %v1915
    %2736 = vmatprep.subr.bf16.mxu0 %v1922
    %2737 = vmatpush1.bf16.msra.mxu0 %v1921
    %2738 = vmatprep.mubr.bf16.mxu0 %v160
    %2739 = vmatmul.mubr.bf16.gmra.mrb[0].mxu0 %v159
    %v2740 = vpop.f32.mrb[0].mxu0
    %v2741 = vadd.f32 %v2700, %v2740
    %v2742 = vpop.f32.mrb[0].mxu0
    %v2743 = vadd.f32 %v2702, %v2742
    %v2744 = vpop.f32.mrb[0].mxu0
    %v2745 = vpop.f32.mrb[0].mxu0
    %2746 = vdwg.mxu0
    %2747 = vmatprep.subr.bf16.mxu0 %v1928
    %2748 = vmatpush1.bf16.msra.mxu0 %v1927
    %2749 = vmatprep.subr.bf16.mxu0 %v1934
    %2750 = vmatpush1.bf16.msra.mxu0 %v1933
    %2751 = vmatprep.subr.bf16.mxu0 %v1940
    %2752 = vmatpush1.bf16.msra.mxu0 %v1939
    %2753 = vmatprep.subr.bf16.mxu0 %v1946
    %2754 = vmatpush1.bf16.msra.mxu0 %v1945
    %2755 = vmatprep.subr.bf16.mxu0 %v1952
    %2756 = vmatpush1.bf16.msra.mxu0 %v1951
    %2757 = vmatprep.subr.bf16.mxu0 %v1958
    %2758 = vmatpush1.bf16.msra.mxu0 %v1957
    %2759 = vmatprep.subr.bf16.mxu0 %v1964
    %2760 = vmatpush1.bf16.msra.mxu0 %v1963
    %2761 = vmatprep.subr.bf16.mxu0 %v1970
    %2762 = vmatpush1.bf16.msra.mxu0 %v1969
    %2763 = vmatprep.subr.bf16.mxu0 %v1976
    %2764 = vmatpush1.bf16.msra.mxu0 %v1975
    %2765 = vmatprep.subr.bf16.mxu0 %v1982
    %2766 = vmatpush1.bf16.msra.mxu0 %v1981
    %2767 = vmatprep.subr.bf16.mxu0 %v1988
    %2768 = vmatpush1.bf16.msra.mxu0 %v1987
    %2769 = vmatprep.subr.bf16.mxu0 %v1994
    %2770 = vmatpush1.bf16.msra.mxu0 %v1993
    %2771 = vmatprep.subr.bf16.mxu0 %v2000
    %2772 = vmatpush1.bf16.msra.mxu0 %v1999
    %2773 = vmatprep.subr.bf16.mxu0 %v2006
    %2774 = vmatpush1.bf16.msra.mxu0 %v2005
    %2775 = vmatprep.subr.bf16.mxu0 %v2012
    %2776 = vmatpush1.bf16.msra.mxu0 %v2011
    %2777 = vmatprep.subr.bf16.mxu0 %v2018
    %2778 = vmatpush1.bf16.msra.mxu0 %v2017
    %2779 = vmatprep.mubr.bf16.mxu0 %v162
    %2780 = vmatmul.mubr.bf16.gmra.mrb[0].mxu0 %v161
    %v2781 = vpop.f32.mrb[0].mxu0
    %v2782 = vadd.f32 %v2741, %v2781
    %v2783 = vpop.f32.mrb[0].mxu0
    %v2784 = vadd.f32 %v2743, %v2783
    %v2785 = vpop.f32.mrb[0].mxu0
    %v2786 = vpop.f32.mrb[0].mxu0
    %2787 = vdwg.mxu0
    %2788 = vmatprep.subr.bf16.mxu0 %v2024
    %2789 = vmatpush1.bf16.msra.mxu0 %v2023
    %2790 = vmatprep.subr.bf16.mxu0 %v2030
    %2791 = vmatpush1.bf16.msra.mxu0 %v2029
    %2792 = vmatprep.subr.bf16.mxu0 %v2036
    %2793 = vmatpush1.bf16.msra.mxu0 %v2035
    %2794 = vmatprep.subr.bf16.mxu0 %v2042
    %2795 = vmatpush1.bf16.msra.mxu0 %v2041
    %2796 = vmatprep.subr.bf16.mxu0 %v2048
    %2797 = vmatpush1.bf16.msra.mxu0 %v2047
    %2798 = vmatprep.subr.bf16.mxu0 %v2054
    %2799 = vmatpush1.bf16.msra.mxu0 %v2053
    %2800 = vmatprep.subr.bf16.mxu0 %v2060
    %2801 = vmatpush1.bf16.msra.mxu0 %v2059
    %2802 = vmatprep.subr.bf16.mxu0 %v2066
    %2803 = vmatpush1.bf16.msra.mxu0 %v2065
    %2804 = vmatprep.subr.bf16.mxu0 %v2072
    %2805 = vmatpush1.bf16.msra.mxu0 %v2071
    %2806 = vmatprep.subr.bf16.mxu0 %v2078
    %2807 = vmatpush1.bf16.msra.mxu0 %v2077
    %2808 = vmatprep.subr.bf16.mxu0 %v2084
    %2809 = vmatpush1.bf16.msra.mxu0 %v2083
    %2810 = vmatprep.subr.bf16.mxu0 %v2090
    %2811 = vmatpush1.bf16.msra.mxu0 %v2089
    %2812 = vmatprep.subr.bf16.mxu0 %v2096
    %2813 = vmatpush1.bf16.msra.mxu0 %v2095
    %2814 = vmatprep.subr.bf16.mxu0 %v2102
    %2815 = vmatpush1.bf16.msra.mxu0 %v2101
    %2816 = vmatprep.subr.bf16.mxu0 %v2108
    %2817 = vmatpush1.bf16.msra.mxu0 %v2107
    %2818 = vmatprep.subr.bf16.mxu0 %v2114
    %2819 = vmatpush1.bf16.msra.mxu0 %v2113
    %2820 = vmatprep.mubr.bf16.mxu0 %v164
    %2821 = vmatmul.mubr.bf16.gmra.mrb[0].mxu0 %v163
    %v2822 = vpop.f32.mrb[0].mxu0
    %v2823 = vadd.f32 %v2782, %v2822
    %v2824 = vpop.f32.mrb[0].mxu0
    %v2825 = vadd.f32 %v2784, %v2824
    %v2826 = vpop.f32.mrb[0].mxu0
    %v2827 = vpop.f32.mrb[0].mxu0
    %2828 = vdwg.mxu0
    %2829 = vmatprep.subr.bf16.mxu0 %v1738
    %2830 = vmatpush1.bf16.msra.mxu0 %v1737
    %2831 = vmatprep.subr.bf16.mxu0 %v1744
    %2832 = vmatpush1.bf16.msra.mxu0 %v1743
    %2833 = vmatprep.subr.bf16.mxu0 %v1750
    %2834 = vmatpush1.bf16.msra.mxu0 %v1749
    %2835 = vmatprep.subr.bf16.mxu0 %v1756
    %2836 = vmatpush1.bf16.msra.mxu0 %v1755
    %2837 = vmatprep.subr.bf16.mxu0 %v1762
    %2838 = vmatpush1.bf16.msra.mxu0 %v1761
    %2839 = vmatprep.subr.bf16.mxu0 %v1768
    %2840 = vmatpush1.bf16.msra.mxu0 %v1767
    %2841 = vmatprep.subr.bf16.mxu0 %v1774
    %2842 = vmatpush1.bf16.msra.mxu0 %v1773
    %2843 = vmatprep.subr.bf16.mxu0 %v1780
    %2844 = vmatpush1.bf16.msra.mxu0 %v1779
    %2845 = vmatprep.subr.bf16.mxu0 %v1786
    %2846 = vmatpush1.bf16.msra.mxu0 %v1785
    %2847 = vmatprep.subr.bf16.mxu0 %v1792
    %2848 = vmatpush1.bf16.msra.mxu0 %v1791
    %2849 = vmatprep.subr.bf16.mxu0 %v1798
    %2850 = vmatpush1.bf16.msra.mxu0 %v1797
    %2851 = vmatprep.subr.bf16.mxu0 %v1804
    %2852 = vmatpush1.bf16.msra.mxu0 %v1803
    %2853 = vmatprep.subr.bf16.mxu0 %v1810
    %2854 = vmatpush1.bf16.msra.mxu0 %v1809
    %2855 = vmatprep.subr.bf16.mxu0 %v1816
    %2856 = vmatpush1.bf16.msra.mxu0 %v1815
    %2857 = vmatprep.subr.bf16.mxu0 %v1822
    %2858 = vmatpush1.bf16.msra.mxu0 %v1821
    %2859 = vmatprep.subr.bf16.mxu0 %v1828
    %2860 = vmatpush1.bf16.msra.mxu0 %v1827
    %2861 = vmatprep.mubr.bf16.mxu0 %v158
    %2862 = vmatmul.mubr.bf16.gmra.mrb[0].mxu0 %v157
    %v2863 = vpop.f32.mrb[0].mxu0
    %v2864 = vadd.f32 %v570, %v2863
    %v2865 = vpop.f32.mrb[0].mxu0
    %v2866 = vadd.f32 %v574, %v2865
    %v2867 = vpop.f32.mrb[0].mxu0
    %v2868 = vpop.f32.mrb[0].mxu0
    %2869 = vdwg.mxu0
    %2870 = vmatprep.subr.bf16.mxu0 %v1834
    %2871 = vmatpush1.bf16.msra.mxu0 %v1833
    %2872 = vmatprep.subr.bf16.mxu0 %v1840
    %2873 = vmatpush1.bf16.msra.mxu0 %v1839
    %2874 = vmatprep.subr.bf16.mxu0 %v1846
    %2875 = vmatpush1.bf16.msra.mxu0 %v1845
    %2876 = vmatprep.subr.bf16.mxu0 %v1852
    %2877 = vmatpush1.bf16.msra.mxu0 %v1851
    %2878 = vmatprep.subr.bf16.mxu0 %v1858
    %2879 = vmatpush1.bf16.msra.mxu0 %v1857
    %2880 = vmatprep.subr.bf16.mxu0 %v1864
    %2881 = vmatpush1.bf16.msra.mxu0 %v1863
    %2882 = vmatprep.subr.bf16.mxu0 %v1870
    %2883 = vmatpush1.bf16.msra.mxu0 %v1869
    %2884 = vmatprep.subr.bf16.mxu0 %v1876
    %2885 = vmatpush1.bf16.msra.mxu0 %v1875
    %2886 = vmatprep.subr.bf16.mxu0 %v1882
    %2887 = vmatpush1.bf16.msra.mxu0 %v1881
    %2888 = vmatprep.subr.bf16.mxu0 %v1888
    %2889 = vmatpush1.bf16.msra.mxu0 %v1887
    %2890 = vmatprep.subr.bf16.mxu0 %v1894
    %2891 = vmatpush1.bf16.msra.mxu0 %v1893
    %2892 = vmatprep.subr.bf16.mxu0 %v1900
    %2893 = vmatpush1.bf16.msra.mxu0 %v1899
    %2894 = vmatprep.subr.bf16.mxu0 %v1906
    %2895 = vmatpush1.bf16.msra.mxu0 %v1905
    %2896 = vmatprep.subr.bf16.mxu0 %v1912
    %2897 = vmatpush1.bf16.msra.mxu0 %v1911
    %2898 = vmatprep.subr.bf16.mxu0 %v1918
    %2899 = vmatpush1.bf16.msra.mxu0 %v1917
    %2900 = vmatprep.subr.bf16.mxu0 %v1924
    %2901 = vmatpush1.bf16.msra.mxu0 %v1923
    %2902 = vmatprep.mubr.bf16.mxu0 %v160
    %2903 = vmatmul.mubr.bf16.gmra.mrb[0].mxu0 %v159
    %v2904 = vpop.f32.mrb[0].mxu0
    %v2905 = vadd.f32 %v2864, %v2904
    %v2906 = vpop.f32.mrb[0].mxu0
    %v2907 = vadd.f32 %v2866, %v2906
    %v2908 = vpop.f32.mrb[0].mxu0
    %v2909 = vpop.f32.mrb[0].mxu0
    %2910 = vdwg.mxu0
    %2911 = vmatprep.subr.bf16.mxu0 %v1930
    %2912 = vmatpush1.bf16.msra.mxu0 %v1929
    %2913 = vmatprep.subr.bf16.mxu0 %v1936
    %2914 = vmatpush1.bf16.msra.mxu0 %v1935
    %2915 = vmatprep.subr.bf16.mxu0 %v1942
    %2916 = vmatpush1.bf16.msra.mxu0 %v1941
    %2917 = vmatprep.subr.bf16.mxu0 %v1948
    %2918 = vmatpush1.bf16.msra.mxu0 %v1947
    %2919 = vmatprep.subr.bf16.mxu0 %v1954
    %2920 = vmatpush1.bf16.msra.mxu0 %v1953
    %2921 = vmatprep.subr.bf16.mxu0 %v1960
    %2922 = vmatpush1.bf16.msra.mxu0 %v1959
    %2923 = vmatprep.subr.bf16.mxu0 %v1966
    %2924 = vmatpush1.bf16.msra.mxu0 %v1965
    %2925 = vmatprep.subr.bf16.mxu0 %v1972
    %2926 = vmatpush1.bf16.msra.mxu0 %v1971
    %2927 = vmatprep.subr.bf16.mxu0 %v1978
    %2928 = vmatpush1.bf16.msra.mxu0 %v1977
    %2929 = vmatprep.subr.bf16.mxu0 %v1984
    %2930 = vmatpush1.bf16.msra.mxu0 %v1983
    %2931 = vmatprep.subr.bf16.mxu0 %v1990
    %2932 = vmatpush1.bf16.msra.mxu0 %v1989
    %2933 = vmatprep.subr.bf16.mxu0 %v1996
    %2934 = vmatpush1.bf16.msra.mxu0 %v1995
    %2935 = vmatprep.subr.bf16.mxu0 %v2002
    %2936 = vmatpush1.bf16.msra.mxu0 %v2001
    %2937 = vmatprep.subr.bf16.mxu0 %v2008
    %2938 = vmatpush1.bf16.msra.mxu0 %v2007
    %2939 = vmatprep.subr.bf16.mxu0 %v2014
    %2940 = vmatpush1.bf16.msra.mxu0 %v2013
    %2941 = vmatprep.subr.bf16.mxu0 %v2020
    %2942 = vmatpush1.bf16.msra.mxu0 %v2019
    %2943 = vmatprep.mubr.bf16.mxu0 %v162
    %2944 = vmatmul.mubr.bf16.gmra.mrb[0].mxu0 %v161
    %v2945 = vpop.f32.mrb[0].mxu0
    %v2946 = vadd.f32 %v2905, %v2945
    %v2947 = vpop.f32.mrb[0].mxu0
    %v2948 = vadd.f32 %v2907, %v2947
    %v2949 = vpop.f32.mrb[0].mxu0
    %v2950 = vpop.f32.mrb[0].mxu0
    %2951 = vdwg.mxu0
    %2952 = vmatprep.subr.bf16.mxu0 %v2026
    %2953 = vmatpush1.bf16.msra.mxu0 %v2025
    %2954 = vmatprep.subr.bf16.mxu0 %v2032
    %2955 = vmatpush1.bf16.msra.mxu0 %v2031
    %2956 = vmatprep.subr.bf16.mxu0 %v2038
    %2957 = vmatpush1.bf16.msra.mxu0 %v2037
    %2958 = vmatprep.subr.bf16.mxu0 %v2044
    %2959 = vmatpush1.bf16.msra.mxu0 %v2043
    %2960 = vmatprep.subr.bf16.mxu0 %v2050
    %2961 = vmatpush1.bf16.msra.mxu0 %v2049
    %2962 = vmatprep.subr.bf16.mxu0 %v2056
    %2963 = vmatpush1.bf16.msra.mxu0 %v2055
    %2964 = vmatprep.subr.bf16.mxu0 %v2062
    %2965 = vmatpush1.bf16.msra.mxu0 %v2061
    %2966 = vmatprep.subr.bf16.mxu0 %v2068
    %2967 = vmatpush1.bf16.msra.mxu0 %v2067
    %2968 = vmatprep.subr.bf16.mxu0 %v2074
    %2969 = vmatpush1.bf16.msra.mxu0 %v2073
    %2970 = vmatprep.subr.bf16.mxu0 %v2080
    %2971 = vmatpush1.bf16.msra.mxu0 %v2079
    %2972 = vmatprep.subr.bf16.mxu0 %v2086
    %2973 = vmatpush1.bf16.msra.mxu0 %v2085
    %2974 = vmatprep.subr.bf16.mxu0 %v2092
    %2975 = vmatpush1.bf16.msra.mxu0 %v2091
    %2976 = vmatprep.subr.bf16.mxu0 %v2098
    %2977 = vmatpush1.bf16.msra.mxu0 %v2097
    %2978 = vmatprep.subr.bf16.mxu0 %v2104
    %2979 = vmatpush1.bf16.msra.mxu0 %v2103
    %2980 = vmatprep.subr.bf16.mxu0 %v2110
    %2981 = vmatpush1.bf16.msra.mxu0 %v2109
    %2982 = vmatprep.subr.bf16.mxu0 %v2116
    %2983 = vmatpush1.bf16.msra.mxu0 %v2115
    %2984 = vmatprep.mubr.bf16.mxu0 %v164
    %2985 = vmatmul.mubr.bf16.gmra.mrb[0].mxu0 %v163
    %v2986 = vpop.f32.mrb[0].mxu0
    %v2987 = vadd.f32 %v2946, %v2986
    %v2988 = vpop.f32.mrb[0].mxu0
    %v2989 = vadd.f32 %v2948, %v2988
    %v2990 = vpop.f32.mrb[0].mxu0
    %v2991 = vpop.f32.mrb[0].mxu0
    %2992 = vdwg.mxu0
    %2993 = vst [vmem:[#allocation18] sm:$0xff] %v2659
    %2994 = vst [vmem:[#allocation18 + $0x8] sm:$0xff] %v2661
    %2995 = vst [vmem:[#allocation18 + $0x10] sm:$0xff] %v2823
    %2996 = vst [vmem:[#allocation18 + $0x18] sm:$0xff] %v2825
    %2997 = vst [vmem:[#allocation18 + $0x20] sm:$0xff] %v2987
    %2998 = vst [vmem:[#allocation18 + $0x28] sm:$0xff] %v2989
    %v2999 = vmax.f32 %v2659, 0.0
    %v3000 = vmax.f32 %v2661, 0.0
    %v3001 = vmax.f32 %v2823, 0.0
    %v3002 = vmax.f32 %v2825, 0.0
    %v3003 = vmax.f32 %v2987, 0.0
    %v3004 = vmax.f32 %v2989, 0.0
    %v3005 = vpack.c.bf16 %v2999, %v2999
    %v3006 = vpack.c.bf16 %v3000, %v3000
    %v3007 = vpack.c.bf16 %v3001, %v3001
    %v3008 = vpack.c.bf16 %v3002, %v3002
    %v3009 = vpack.c.bf16 %v3003, %v3003
    %v3010 = vpack.c.bf16 %v3004, %v3004
    %v3011 = vld [vmem:[#allocation8] sm:$0xff]
    %v3012 = vld [vmem:[#allocation8 + $0x8] sm:$0xff]
    %v3013 = vld [vmem:[#allocation8 + $0x10] sm:$0xff]
    %v3014 = vld [vmem:[#allocation8 + $0x18] sm:$0xff]
    %v3015 = vld [vmem:[#allocation8 + $0x20] sm:$0xff]
    %v3016 = vld [vmem:[#allocation8 + $0x28] sm:$0xff]
    %v3017 = vld [vmem:[#allocation8 + $0x30] sm:$0xff]
    %v3018 = vld [vmem:[#allocation8 + $0x38] sm:$0xff]
    %v3019 = vld [vmem:[#allocation8 + $0x40] sm:$0xff]
    %v3020 = vld [vmem:[#allocation8 + $0x48] sm:$0xff]
    %v3021 = vld [vmem:[#allocation8 + $0x50] sm:$0xff]
    %v3022 = vld [vmem:[#allocation8 + $0x58] sm:$0xff]
    %v3023 = vld [vmem:[#allocation8 + $0x60] sm:$0xff]
    %v3024 = vld [vmem:[#allocation8 + $0x68] sm:$0xff]
    %v3025 = vld [vmem:[#allocation8 + $0x70] sm:$0xff]
    %v3026 = vld [vmem:[#allocation8 + $0x78] sm:$0xff]
    %v3027 = vld [vmem:[#allocation8 + $0x80] sm:$0xff]
    %v3028 = vld [vmem:[#allocation8 + $0x88] sm:$0xff]
    %v3029 = vld [vmem:[#allocation8 + $0x90] sm:$0xff]
    %v3030 = vld [vmem:[#allocation8 + $0x98] sm:$0xff]
    %v3031 = vld [vmem:[#allocation8 + $0xa0] sm:$0xff]
    %v3032 = vld [vmem:[#allocation8 + $0xa8] sm:$0xff]
    %v3033 = vld [vmem:[#allocation8 + $0xb0] sm:$0xff]
    %v3034 = vld [vmem:[#allocation8 + $0xb8] sm:$0xff]
    %v3035 = vld [vmem:[#allocation8 + $0xc0] sm:$0xff]
    %v3036 = vld [vmem:[#allocation8 + $0xc8] sm:$0xff]
    %v3037 = vld [vmem:[#allocation8 + $0xd0] sm:$0xff]
    %v3038 = vld [vmem:[#allocation8 + $0xd8] sm:$0xff]
    %v3039 = vld [vmem:[#allocation8 + $0xe0] sm:$0xff]
    %v3040 = vld [vmem:[#allocation8 + $0xe8] sm:$0xff]
    %v3041 = vld [vmem:[#allocation8 + $0xf0] sm:$0xff]
    %v3042 = vld [vmem:[#allocation8 + $0xf8] sm:$0xff]
    %v3043 = vld [vmem:[#allocation8 + $0x100] sm:$0xff]
    %v3044 = vld [vmem:[#allocation8 + $0x108] sm:$0xff]
    %v3045 = vld [vmem:[#allocation8 + $0x110] sm:$0xff]
    %v3046 = vld [vmem:[#allocation8 + $0x118] sm:$0xff]
    %v3047 = vld [vmem:[#allocation8 + $0x120] sm:$0xff]
    %v3048 = vld [vmem:[#allocation8 + $0x128] sm:$0xff]
    %v3049 = vld [vmem:[#allocation8 + $0x130] sm:$0xff]
    %v3050 = vld [vmem:[#allocation8 + $0x138] sm:$0xff]
    %v3051 = vld [vmem:[#allocation8 + $0x140] sm:$0xff]
    %v3052 = vld [vmem:[#allocation8 + $0x148] sm:$0xff]
    %v3053 = vld [vmem:[#allocation8 + $0x150] sm:$0xff]
    %v3054 = vld [vmem:[#allocation8 + $0x158] sm:$0xff]
    %v3055 = vld [vmem:[#allocation8 + $0x160] sm:$0xff]
    %v3056 = vld [vmem:[#allocation8 + $0x168] sm:$0xff]
    %v3057 = vld [vmem:[#allocation8 + $0x170] sm:$0xff]
    %v3058 = vld [vmem:[#allocation8 + $0x178] sm:$0xff]
    %v3059 = vld [vmem:[#allocation8 + $0x180] sm:$0xff]
    %v3060 = vld [vmem:[#allocation8 + $0x188] sm:$0xff]
    %v3061 = vld [vmem:[#allocation8 + $0x190] sm:$0xff]
    %v3062 = vld [vmem:[#allocation8 + $0x198] sm:$0xff]
    %v3063 = vld [vmem:[#allocation8 + $0x1a0] sm:$0xff]
    %v3064 = vld [vmem:[#allocation8 + $0x1a8] sm:$0xff]
    %v3065 = vld [vmem:[#allocation8 + $0x1b0] sm:$0xff]
    %v3066 = vld [vmem:[#allocation8 + $0x1b8] sm:$0xff]
    %v3067 = vld [vmem:[#allocation8 + $0x1c0] sm:$0xff]
    %v3068 = vld [vmem:[#allocation8 + $0x1c8] sm:$0xff]
    %v3069 = vld [vmem:[#allocation8 + $0x1d0] sm:$0xff]
    %v3070 = vld [vmem:[#allocation8 + $0x1d8] sm:$0xff]
    %v3071 = vld [vmem:[#allocation8 + $0x1e0] sm:$0xff]
    %v3072 = vld [vmem:[#allocation8 + $0x1e8] sm:$0xff]
    %v3073 = vld [vmem:[#allocation8 + $0x1f0] sm:$0xff]
    %v3074 = vld [vmem:[#allocation8 + $0x1f8] sm:$0xff]
    %v3075 = vld [vmem:[#allocation8 + $0x200] sm:$0xff]
    %v3076 = vld [vmem:[#allocation8 + $0x208] sm:$0xff]
    %v3077 = vld [vmem:[#allocation8 + $0x210] sm:$0xff]
    %v3078 = vld [vmem:[#allocation8 + $0x218] sm:$0xff]
    %v3079 = vld [vmem:[#allocation8 + $0x220] sm:$0xff]
    %v3080 = vld [vmem:[#allocation8 + $0x228] sm:$0xff]
    %v3081 = vld [vmem:[#allocation8 + $0x230] sm:$0xff]
    %v3082 = vld [vmem:[#allocation8 + $0x238] sm:$0xff]
    %v3083 = vld [vmem:[#allocation8 + $0x240] sm:$0xff]
    %v3084 = vld [vmem:[#allocation8 + $0x248] sm:$0xff]
    %v3085 = vld [vmem:[#allocation8 + $0x250] sm:$0xff]
    %v3086 = vld [vmem:[#allocation8 + $0x258] sm:$0xff]
    %v3087 = vld [vmem:[#allocation8 + $0x260] sm:$0xff]
    %v3088 = vld [vmem:[#allocation8 + $0x268] sm:$0xff]
    %v3089 = vld [vmem:[#allocation8 + $0x270] sm:$0xff]
    %v3090 = vld [vmem:[#allocation8 + $0x278] sm:$0xff]
    %v3091 = vld [vmem:[#allocation8 + $0x280] sm:$0xff]
    %v3092 = vld [vmem:[#allocation8 + $0x288] sm:$0xff]
    %v3093 = vld [vmem:[#allocation8 + $0x290] sm:$0xff]
    %v3094 = vld [vmem:[#allocation8 + $0x298] sm:$0xff]
    %v3095 = vld [vmem:[#allocation8 + $0x2a0] sm:$0xff]
    %v3096 = vld [vmem:[#allocation8 + $0x2a8] sm:$0xff]
    %v3097 = vld [vmem:[#allocation8 + $0x2b0] sm:$0xff]
    %v3098 = vld [vmem:[#allocation8 + $0x2b8] sm:$0xff]
    %v3099 = vld [vmem:[#allocation8 + $0x2c0] sm:$0xff]
    %v3100 = vld [vmem:[#allocation8 + $0x2c8] sm:$0xff]
    %v3101 = vld [vmem:[#allocation8 + $0x2d0] sm:$0xff]
    %v3102 = vld [vmem:[#allocation8 + $0x2d8] sm:$0xff]
    %v3103 = vld [vmem:[#allocation8 + $0x2e0] sm:$0xff]
    %v3104 = vld [vmem:[#allocation8 + $0x2e8] sm:$0xff]
    %v3105 = vld [vmem:[#allocation8 + $0x2f0] sm:$0xff]
    %v3106 = vld [vmem:[#allocation8 + $0x2f8] sm:$0xff]
    %v3107 = vld [vmem:[#allocation10] sm:$0x3]
    %v3109 = vlaneseq
    %v3110 = vshrl.u32 %v3109, 7
    %v3111 = vsub.s32 0, %v3110
    %v3112 = vrot.slane %v3107, %v3111
    %v3113 = vlaneseq
    %v3114 = vshrl.u32 %v3113, 7
    %v3115 = vsub.s32 1, %v3114
    %v3116 = vrot.slane %v3107, %v3115
    %v3215 = vunpack.c.l.b16 %v3011
    %v3216 = vunpack.c.h.b16 %v3011
    %v3217 = vunpack.c.l.b16 %v3012
    %v3218 = vunpack.c.h.b16 %v3012
    %v3219 = vunpack.c.l.b16 %v3013
    %v3220 = vunpack.c.h.b16 %v3013
    %v3221 = vunpack.c.l.b16 %v3014
    %v3222 = vunpack.c.h.b16 %v3014
    %v3223 = vunpack.c.l.b16 %v3015
    %v3224 = vunpack.c.h.b16 %v3015
    %v3225 = vunpack.c.l.b16 %v3016
    %v3226 = vunpack.c.h.b16 %v3016
    %v3227 = vunpack.c.l.b16 %v3017
    %v3228 = vunpack.c.h.b16 %v3017
    %v3229 = vunpack.c.l.b16 %v3018
    %v3230 = vunpack.c.h.b16 %v3018
    %v3231 = vunpack.c.l.b16 %v3019
    %v3232 = vunpack.c.h.b16 %v3019
    %v3233 = vunpack.c.l.b16 %v3020
    %v3234 = vunpack.c.h.b16 %v3020
    %v3235 = vunpack.c.l.b16 %v3021
    %v3236 = vunpack.c.h.b16 %v3021
    %v3237 = vunpack.c.l.b16 %v3022
    %v3238 = vunpack.c.h.b16 %v3022
    %v3239 = vunpack.c.l.b16 %v3023
    %v3240 = vunpack.c.h.b16 %v3023
    %v3241 = vunpack.c.l.b16 %v3024
    %v3242 = vunpack.c.h.b16 %v3024
    %v3243 = vunpack.c.l.b16 %v3025
    %v3244 = vunpack.c.h.b16 %v3025
    %v3245 = vunpack.c.l.b16 %v3026
    %v3246 = vunpack.c.h.b16 %v3026
    %v3247 = vunpack.c.l.b16 %v3027
    %v3248 = vunpack.c.h.b16 %v3027
    %v3249 = vunpack.c.l.b16 %v3028
    %v3250 = vunpack.c.h.b16 %v3028
    %v3251 = vunpack.c.l.b16 %v3029
    %v3252 = vunpack.c.h.b16 %v3029
    %v3253 = vunpack.c.l.b16 %v3030
    %v3254 = vunpack.c.h.b16 %v3030
    %v3255 = vunpack.c.l.b16 %v3031
    %v3256 = vunpack.c.h.b16 %v3031
    %v3257 = vunpack.c.l.b16 %v3032
    %v3258 = vunpack.c.h.b16 %v3032
    %v3259 = vunpack.c.l.b16 %v3033
    %v3260 = vunpack.c.h.b16 %v3033
    %v3261 = vunpack.c.l.b16 %v3034
    %v3262 = vunpack.c.h.b16 %v3034
    %v3263 = vunpack.c.l.b16 %v3035
    %v3264 = vunpack.c.h.b16 %v3035
    %v3265 = vunpack.c.l.b16 %v3036
    %v3266 = vunpack.c.h.b16 %v3036
    %v3267 = vunpack.c.l.b16 %v3037
    %v3268 = vunpack.c.h.b16 %v3037
    %v3269 = vunpack.c.l.b16 %v3038
    %v3270 = vunpack.c.h.b16 %v3038
    %v3271 = vunpack.c.l.b16 %v3039
    %v3272 = vunpack.c.h.b16 %v3039
    %v3273 = vunpack.c.l.b16 %v3040
    %v3274 = vunpack.c.h.b16 %v3040
    %v3275 = vunpack.c.l.b16 %v3041
    %v3276 = vunpack.c.h.b16 %v3041
    %v3277 = vunpack.c.l.b16 %v3042
    %v3278 = vunpack.c.h.b16 %v3042
    %v3279 = vunpack.c.l.b16 %v3043
    %v3280 = vunpack.c.h.b16 %v3043
    %v3281 = vunpack.c.l.b16 %v3044
    %v3282 = vunpack.c.h.b16 %v3044
    %v3283 = vunpack.c.l.b16 %v3045
    %v3284 = vunpack.c.h.b16 %v3045
    %v3285 = vunpack.c.l.b16 %v3046
    %v3286 = vunpack.c.h.b16 %v3046
    %v3287 = vunpack.c.l.b16 %v3047
    %v3288 = vunpack.c.h.b16 %v3047
    %v3289 = vunpack.c.l.b16 %v3048
    %v3290 = vunpack.c.h.b16 %v3048
    %v3291 = vunpack.c.l.b16 %v3049
    %v3292 = vunpack.c.h.b16 %v3049
    %v3293 = vunpack.c.l.b16 %v3050
    %v3294 = vunpack.c.h.b16 %v3050
    %v3295 = vunpack.c.l.b16 %v3051
    %v3296 = vunpack.c.h.b16 %v3051
    %v3297 = vunpack.c.l.b16 %v3052
    %v3298 = vunpack.c.h.b16 %v3052
    %v3299 = vunpack.c.l.b16 %v3053
    %v3300 = vunpack.c.h.b16 %v3053
    %v3301 = vunpack.c.l.b16 %v3054
    %v3302 = vunpack.c.h.b16 %v3054
    %v3303 = vunpack.c.l.b16 %v3055
    %v3304 = vunpack.c.h.b16 %v3055
    %v3305 = vunpack.c.l.b16 %v3056
    %v3306 = vunpack.c.h.b16 %v3056
    %v3307 = vunpack.c.l.b16 %v3057
    %v3308 = vunpack.c.h.b16 %v3057
    %v3309 = vunpack.c.l.b16 %v3058
    %v3310 = vunpack.c.h.b16 %v3058
    %v3311 = vunpack.c.l.b16 %v3059
    %v3312 = vunpack.c.h.b16 %v3059
    %v3313 = vunpack.c.l.b16 %v3060
    %v3314 = vunpack.c.h.b16 %v3060
    %v3315 = vunpack.c.l.b16 %v3061
    %v3316 = vunpack.c.h.b16 %v3061
    %v3317 = vunpack.c.l.b16 %v3062
    %v3318 = vunpack.c.h.b16 %v3062
    %v3319 = vunpack.c.l.b16 %v3063
    %v3320 = vunpack.c.h.b16 %v3063
    %v3321 = vunpack.c.l.b16 %v3064
    %v3322 = vunpack.c.h.b16 %v3064
    %v3323 = vunpack.c.l.b16 %v3065
    %v3324 = vunpack.c.h.b16 %v3065
    %v3325 = vunpack.c.l.b16 %v3066
    %v3326 = vunpack.c.h.b16 %v3066
    %v3327 = vunpack.c.l.b16 %v3067
    %v3328 = vunpack.c.h.b16 %v3067
    %v3329 = vunpack.c.l.b16 %v3068
    %v3330 = vunpack.c.h.b16 %v3068
    %v3331 = vunpack.c.l.b16 %v3069
    %v3332 = vunpack.c.h.b16 %v3069
    %v3333 = vunpack.c.l.b16 %v3070
    %v3334 = vunpack.c.h.b16 %v3070
    %v3335 = vunpack.c.l.b16 %v3071
    %v3336 = vunpack.c.h.b16 %v3071
    %v3337 = vunpack.c.l.b16 %v3072
    %v3338 = vunpack.c.h.b16 %v3072
    %v3339 = vunpack.c.l.b16 %v3073
    %v3340 = vunpack.c.h.b16 %v3073
    %v3341 = vunpack.c.l.b16 %v3074
    %v3342 = vunpack.c.h.b16 %v3074
    %v3343 = vunpack.c.l.b16 %v3075
    %v3344 = vunpack.c.h.b16 %v3075
    %v3345 = vunpack.c.l.b16 %v3076
    %v3346 = vunpack.c.h.b16 %v3076
    %v3347 = vunpack.c.l.b16 %v3077
    %v3348 = vunpack.c.h.b16 %v3077
    %v3349 = vunpack.c.l.b16 %v3078
    %v3350 = vunpack.c.h.b16 %v3078
    %v3351 = vunpack.c.l.b16 %v3079
    %v3352 = vunpack.c.h.b16 %v3079
    %v3353 = vunpack.c.l.b16 %v3080
    %v3354 = vunpack.c.h.b16 %v3080
    %v3355 = vunpack.c.l.b16 %v3081
    %v3356 = vunpack.c.h.b16 %v3081
    %v3357 = vunpack.c.l.b16 %v3082
    %v3358 = vunpack.c.h.b16 %v3082
    %v3359 = vunpack.c.l.b16 %v3083
    %v3360 = vunpack.c.h.b16 %v3083
    %v3361 = vunpack.c.l.b16 %v3084
    %v3362 = vunpack.c.h.b16 %v3084
    %v3363 = vunpack.c.l.b16 %v3085
    %v3364 = vunpack.c.h.b16 %v3085
    %v3365 = vunpack.c.l.b16 %v3086
    %v3366 = vunpack.c.h.b16 %v3086
    %v3367 = vunpack.c.l.b16 %v3087
    %v3368 = vunpack.c.h.b16 %v3087
    %v3369 = vunpack.c.l.b16 %v3088
    %v3370 = vunpack.c.h.b16 %v3088
    %v3371 = vunpack.c.l.b16 %v3089
    %v3372 = vunpack.c.h.b16 %v3089
    %v3373 = vunpack.c.l.b16 %v3090
    %v3374 = vunpack.c.h.b16 %v3090
    %v3375 = vunpack.c.l.b16 %v3091
    %v3376 = vunpack.c.h.b16 %v3091
    %v3377 = vunpack.c.l.b16 %v3092
    %v3378 = vunpack.c.h.b16 %v3092
    %v3379 = vunpack.c.l.b16 %v3093
    %v3380 = vunpack.c.h.b16 %v3093
    %v3381 = vunpack.c.l.b16 %v3094
    %v3382 = vunpack.c.h.b16 %v3094
    %v3383 = vunpack.c.l.b16 %v3095
    %v3384 = vunpack.c.h.b16 %v3095
    %v3385 = vunpack.c.l.b16 %v3096
    %v3386 = vunpack.c.h.b16 %v3096
    %v3387 = vunpack.c.l.b16 %v3097
    %v3388 = vunpack.c.h.b16 %v3097
    %v3389 = vunpack.c.l.b16 %v3098
    %v3390 = vunpack.c.h.b16 %v3098
    %v3391 = vunpack.c.l.b16 %v3099
    %v3392 = vunpack.c.h.b16 %v3099
    %v3393 = vunpack.c.l.b16 %v3100
    %v3394 = vunpack.c.h.b16 %v3100
    %v3395 = vunpack.c.l.b16 %v3101
    %v3396 = vunpack.c.h.b16 %v3101
    %v3397 = vunpack.c.l.b16 %v3102
    %v3398 = vunpack.c.h.b16 %v3102
    %v3399 = vunpack.c.l.b16 %v3103
    %v3400 = vunpack.c.h.b16 %v3103
    %v3401 = vunpack.c.l.b16 %v3104
    %v3402 = vunpack.c.h.b16 %v3104
    %v3403 = vunpack.c.l.b16 %v3105
    %v3404 = vunpack.c.h.b16 %v3105
    %v3405 = vunpack.c.l.b16 %v3106
    %v3406 = vunpack.c.h.b16 %v3106
    %v3407 = vpack.c.b16 %v3217, %v3215
    %v3408 = vpack.c.b16 %v3218, %v3216
    %v3409 = vpack.c.b16 %v3221, %v3219
    %v3410 = vpack.c.b16 %v3222, %v3220
    %v3411 = vpack.c.b16 %v3225, %v3223
    %v3412 = vpack.c.b16 %v3226, %v3224
    %v3413 = vpack.c.b16 %v3229, %v3227
    %v3414 = vpack.c.b16 %v3230, %v3228
    %v3415 = vpack.c.b16 %v3233, %v3231
    %v3416 = vpack.c.b16 %v3234, %v3232
    %v3417 = vpack.c.b16 %v3237, %v3235
    %v3418 = vpack.c.b16 %v3238, %v3236
    %v3419 = vpack.c.b16 %v3241, %v3239
    %v3420 = vpack.c.b16 %v3242, %v3240
    %v3421 = vpack.c.b16 %v3245, %v3243
    %v3422 = vpack.c.b16 %v3246, %v3244
    %v3423 = vpack.c.b16 %v3249, %v3247
    %v3424 = vpack.c.b16 %v3250, %v3248
    %v3425 = vpack.c.b16 %v3253, %v3251
    %v3426 = vpack.c.b16 %v3254, %v3252
    %v3427 = vpack.c.b16 %v3257, %v3255
    %v3428 = vpack.c.b16 %v3258, %v3256
    %v3429 = vpack.c.b16 %v3261, %v3259
    %v3430 = vpack.c.b16 %v3262, %v3260
    %v3431 = vpack.c.b16 %v3265, %v3263
    %v3432 = vpack.c.b16 %v3266, %v3264
    %v3433 = vpack.c.b16 %v3269, %v3267
    %v3434 = vpack.c.b16 %v3270, %v3268
    %v3435 = vpack.c.b16 %v3273, %v3271
    %v3436 = vpack.c.b16 %v3274, %v3272
    %v3437 = vpack.c.b16 %v3277, %v3275
    %v3438 = vpack.c.b16 %v3278, %v3276
    %v3439 = vpack.c.b16 %v3281, %v3279
    %v3440 = vpack.c.b16 %v3282, %v3280
    %v3441 = vpack.c.b16 %v3285, %v3283
    %v3442 = vpack.c.b16 %v3286, %v3284
    %v3443 = vpack.c.b16 %v3289, %v3287
    %v3444 = vpack.c.b16 %v3290, %v3288
    %v3445 = vpack.c.b16 %v3293, %v3291
    %v3446 = vpack.c.b16 %v3294, %v3292
    %v3447 = vpack.c.b16 %v3297, %v3295
    %v3448 = vpack.c.b16 %v3298, %v3296
    %v3449 = vpack.c.b16 %v3301, %v3299
    %v3450 = vpack.c.b16 %v3302, %v3300
    %v3451 = vpack.c.b16 %v3305, %v3303
    %v3452 = vpack.c.b16 %v3306, %v3304
    %v3453 = vpack.c.b16 %v3309, %v3307
    %v3454 = vpack.c.b16 %v3310, %v3308
    %v3455 = vpack.c.b16 %v3313, %v3311
    %v3456 = vpack.c.b16 %v3314, %v3312
    %v3457 = vpack.c.b16 %v3317, %v3315
    %v3458 = vpack.c.b16 %v3318, %v3316
    %v3459 = vpack.c.b16 %v3321, %v3319
    %v3460 = vpack.c.b16 %v3322, %v3320
    %v3461 = vpack.c.b16 %v3325, %v3323
    %v3462 = vpack.c.b16 %v3326, %v3324
    %v3463 = vpack.c.b16 %v3329, %v3327
    %v3464 = vpack.c.b16 %v3330, %v3328
    %v3465 = vpack.c.b16 %v3333, %v3331
    %v3466 = vpack.c.b16 %v3334, %v3332
    %v3467 = vpack.c.b16 %v3337, %v3335
    %v3468 = vpack.c.b16 %v3338, %v3336
    %v3469 = vpack.c.b16 %v3341, %v3339
    %v3470 = vpack.c.b16 %v3342, %v3340
    %v3471 = vpack.c.b16 %v3345, %v3343
    %v3472 = vpack.c.b16 %v3346, %v3344
    %v3473 = vpack.c.b16 %v3349, %v3347
    %v3474 = vpack.c.b16 %v3350, %v3348
    %v3475 = vpack.c.b16 %v3353, %v3351
    %v3476 = vpack.c.b16 %v3354, %v3352
    %v3477 = vpack.c.b16 %v3357, %v3355
    %v3478 = vpack.c.b16 %v3358, %v3356
    %v3479 = vpack.c.b16 %v3361, %v3359
    %v3480 = vpack.c.b16 %v3362, %v3360
    %v3481 = vpack.c.b16 %v3365, %v3363
    %v3482 = vpack.c.b16 %v3366, %v3364
    %v3483 = vpack.c.b16 %v3369, %v3367
    %v3484 = vpack.c.b16 %v3370, %v3368
    %v3485 = vpack.c.b16 %v3373, %v3371
    %v3486 = vpack.c.b16 %v3374, %v3372
    %v3487 = vpack.c.b16 %v3377, %v3375
    %v3488 = vpack.c.b16 %v3378, %v3376
    %v3489 = vpack.c.b16 %v3381, %v3379
    %v3490 = vpack.c.b16 %v3382, %v3380
    %v3491 = vpack.c.b16 %v3385, %v3383
    %v3492 = vpack.c.b16 %v3386, %v3384
    %v3493 = vpack.c.b16 %v3389, %v3387
    %v3494 = vpack.c.b16 %v3390, %v3388
    %v3495 = vpack.c.b16 %v3393, %v3391
    %v3496 = vpack.c.b16 %v3394, %v3392
    %v3497 = vpack.c.b16 %v3397, %v3395
    %v3498 = vpack.c.b16 %v3398, %v3396
    %v3499 = vpack.c.b16 %v3401, %v3399
    %v3500 = vpack.c.b16 %v3402, %v3400
    %v3501 = vpack.c.b16 %v3405, %v3403
    %v3502 = vpack.c.b16 %v3406, %v3404
    %3599 = vmatprep.subr.bf16.mxu0 %v3408
    %3600 = vmatpush1.bf16.msra.mxu0 %v3407
    %3601 = vmatprep.subr.bf16.mxu0 %v3410
    %3602 = vmatpush1.bf16.msra.mxu0 %v3409
    %3603 = vmatprep.subr.bf16.mxu0 %v3412
    %3604 = vmatpush1.bf16.msra.mxu0 %v3411
    %3605 = vmatprep.subr.bf16.mxu0 %v3414
    %3606 = vmatpush1.bf16.msra.mxu0 %v3413
    %3607 = vmatprep.subr.bf16.mxu0 %v3416
    %3608 = vmatpush1.bf16.msra.mxu0 %v3415
    %3609 = vmatprep.subr.bf16.mxu0 %v3418
    %3610 = vmatpush1.bf16.msra.mxu0 %v3417
    %3611 = vmatprep.subr.bf16.mxu0 %v3420
    %3612 = vmatpush1.bf16.msra.mxu0 %v3419
    %3613 = vmatprep.subr.bf16.mxu0 %v3422
    %3614 = vmatpush1.bf16.msra.mxu0 %v3421
    %3615 = vmatprep.subr.bf16.mxu0 %v3424
    %3616 = vmatpush1.bf16.msra.mxu0 %v3423
    %3617 = vmatprep.subr.bf16.mxu0 %v3426
    %3618 = vmatpush1.bf16.msra.mxu0 %v3425
    %3619 = vmatprep.subr.bf16.mxu0 %v3428
    %3620 = vmatpush1.bf16.msra.mxu0 %v3427
    %3621 = vmatprep.subr.bf16.mxu0 %v3430
    %3622 = vmatpush1.bf16.msra.mxu0 %v3429
    %3623 = vmatprep.subr.bf16.mxu0 %v3432
    %3624 = vmatpush1.bf16.msra.mxu0 %v3431
    %3625 = vmatprep.subr.bf16.mxu0 %v3434
    %3626 = vmatpush1.bf16.msra.mxu0 %v3433
    %3627 = vmatprep.subr.bf16.mxu0 %v3436
    %3628 = vmatpush1.bf16.msra.mxu0 %v3435
    %3629 = vmatprep.subr.bf16.mxu0 %v3438
    %3630 = vmatpush1.bf16.msra.mxu0 %v3437
    %3631 = vmatprep.mubr.bf16.mxu0 %v3006
    %3632 = vmatmul.mubr.bf16.gmra.mrb[0].mxu0 %v3005
    %v3633 = vpop.f32.mrb[0].mxu0
    %v3634 = vadd.f32 %v3112, %v3633
    %v3635 = vpop.f32.mrb[0].mxu0
    %v3636 = vadd.f32 %v3116, %v3635
    %v3637 = vpop.f32.mrb[0].mxu0
    %v3638 = vpop.f32.mrb[0].mxu0
    %3639 = vdwg.mxu0
    %3640 = vmatprep.subr.bf16.mxu0 %v3440
    %3641 = vmatpush1.bf16.msra.mxu0 %v3439
    %3642 = vmatprep.subr.bf16.mxu0 %v3442
    %3643 = vmatpush1.bf16.msra.mxu0 %v3441
    %3644 = vmatprep.subr.bf16.mxu0 %v3444
    %3645 = vmatpush1.bf16.msra.mxu0 %v3443
    %3646 = vmatprep.subr.bf16.mxu0 %v3446
    %3647 = vmatpush1.bf16.msra.mxu0 %v3445
    %3648 = vmatprep.subr.bf16.mxu0 %v3448
    %3649 = vmatpush1.bf16.msra.mxu0 %v3447
    %3650 = vmatprep.subr.bf16.mxu0 %v3450
    %3651 = vmatpush1.bf16.msra.mxu0 %v3449
    %3652 = vmatprep.subr.bf16.mxu0 %v3452
    %3653 = vmatpush1.bf16.msra.mxu0 %v3451
    %3654 = vmatprep.subr.bf16.mxu0 %v3454
    %3655 = vmatpush1.bf16.msra.mxu0 %v3453
    %3656 = vmatprep.subr.bf16.mxu0 %v3456
    %3657 = vmatpush1.bf16.msra.mxu0 %v3455
    %3658 = vmatprep.subr.bf16.mxu0 %v3458
    %3659 = vmatpush1.bf16.msra.mxu0 %v3457
    %3660 = vmatprep.subr.bf16.mxu0 %v3460
    %3661 = vmatpush1.bf16.msra.mxu0 %v3459
    %3662 = vmatprep.subr.bf16.mxu0 %v3462
    %3663 = vmatpush1.bf16.msra.mxu0 %v3461
    %3664 = vmatprep.subr.bf16.mxu0 %v3464
    %3665 = vmatpush1.bf16.msra.mxu0 %v3463
    %3666 = vmatprep.subr.bf16.mxu0 %v3466
    %3667 = vmatpush1.bf16.msra.mxu0 %v3465
    %3668 = vmatprep.subr.bf16.mxu0 %v3468
    %3669 = vmatpush1.bf16.msra.mxu0 %v3467
    %3670 = vmatprep.subr.bf16.mxu0 %v3470
    %3671 = vmatpush1.bf16.msra.mxu0 %v3469
    %3672 = vmatprep.mubr.bf16.mxu0 %v3008
    %3673 = vmatmul.mubr.bf16.gmra.mrb[0].mxu0 %v3007
    %v3674 = vpop.f32.mrb[0].mxu0
    %v3675 = vadd.f32 %v3634, %v3674
    %v3676 = vpop.f32.mrb[0].mxu0
    %v3677 = vadd.f32 %v3636, %v3676
    %v3678 = vpop.f32.mrb[0].mxu0
    %v3679 = vpop.f32.mrb[0].mxu0
    %3680 = vdwg.mxu0
    %3681 = vmatprep.subr.bf16.mxu0 %v3472
    %3682 = vmatpush1.bf16.msra.mxu0 %v3471
    %3683 = vmatprep.subr.bf16.mxu0 %v3474
    %3684 = vmatpush1.bf16.msra.mxu0 %v3473
    %3685 = vmatprep.subr.bf16.mxu0 %v3476
    %3686 = vmatpush1.bf16.msra.mxu0 %v3475
    %3687 = vmatprep.subr.bf16.mxu0 %v3478
    %3688 = vmatpush1.bf16.msra.mxu0 %v3477
    %3689 = vmatprep.subr.bf16.mxu0 %v3480
    %3690 = vmatpush1.bf16.msra.mxu0 %v3479
    %3691 = vmatprep.subr.bf16.mxu0 %v3482
    %3692 = vmatpush1.bf16.msra.mxu0 %v3481
    %3693 = vmatprep.subr.bf16.mxu0 %v3484
    %3694 = vmatpush1.bf16.msra.mxu0 %v3483
    %3695 = vmatprep.subr.bf16.mxu0 %v3486
    %3696 = vmatpush1.bf16.msra.mxu0 %v3485
    %3697 = vmatprep.subr.bf16.mxu0 %v3488
    %3698 = vmatpush1.bf16.msra.mxu0 %v3487
    %3699 = vmatprep.subr.bf16.mxu0 %v3490
    %3700 = vmatpush1.bf16.msra.mxu0 %v3489
    %3701 = vmatprep.subr.bf16.mxu0 %v3492
    %3702 = vmatpush1.bf16.msra.mxu0 %v3491
    %3703 = vmatprep.subr.bf16.mxu0 %v3494
    %3704 = vmatpush1.bf16.msra.mxu0 %v3493
    %3705 = vmatprep.subr.bf16.mxu0 %v3496
    %3706 = vmatpush1.bf16.msra.mxu0 %v3495
    %3707 = vmatprep.subr.bf16.mxu0 %v3498
    %3708 = vmatpush1.bf16.msra.mxu0 %v3497
    %3709 = vmatprep.subr.bf16.mxu0 %v3500
    %3710 = vmatpush1.bf16.msra.mxu0 %v3499
    %3711 = vmatprep.subr.bf16.mxu0 %v3502
    %3712 = vmatpush1.bf16.msra.mxu0 %v3501
    %3713 = vmatprep.mubr.bf16.mxu0 %v3010
    %3714 = vmatmul.mubr.bf16.gmra.mrb[0].mxu0 %v3009
    %v3715 = vpop.f32.mrb[0].mxu0
    %v3716 = vadd.f32 %v3675, %v3715
    %v3717 = vpop.f32.mrb[0].mxu0
    %v3718 = vadd.f32 %v3677, %v3717
    %v3719 = vpop.f32.mrb[0].mxu0
    %v3720 = vpop.f32.mrb[0].mxu0
    %3721 = vdwg.mxu0
    %v3722 = vmax.f32 %v3716, 0.0
    %v3723 = vmax.f32 %v3718, 0.0
    %v3724 = vpack.c.bf16 %v3722, %v3722
    %v3725 = vpack.c.bf16 %v3723, %v3723
    %v3726 = vld [vmem:[#allocation11] sm:$0xf]
    %v3727 = vld [vmem:[#allocation11 + $0x4] sm:$0xf]
    %v3728 = vld [vmem:[#allocation11 + $0x8] sm:$0xf]
    %v3729 = vld [vmem:[#allocation11 + $0xc] sm:$0xf]
    %v3730 = vld [vmem:[#allocation11 + $0x10] sm:$0xf]
    %v3731 = vld [vmem:[#allocation11 + $0x14] sm:$0xf]
    %v3732 = vld [vmem:[#allocation11 + $0x18] sm:$0xf]
    %v3733 = vld [vmem:[#allocation11 + $0x1c] sm:$0xf]
    %v3734 = vld [vmem:[#allocation11 + $0x20] sm:$0xf]
    %v3735 = vld [vmem:[#allocation11 + $0x24] sm:$0xf]
    %v3736 = vld [vmem:[#allocation11 + $0x28] sm:$0xf]
    %v3737 = vld [vmem:[#allocation11 + $0x2c] sm:$0xf]
    %v3738 = vld [vmem:[#allocation11 + $0x30] sm:$0xf]
    %v3739 = vld [vmem:[#allocation11 + $0x34] sm:$0xf]
    %v3740 = vld [vmem:[#allocation11 + $0x38] sm:$0xf]
    %v3741 = vld [vmem:[#allocation11 + $0x3c] sm:$0xf]
    %v3742 = vld [vmem:[#allocation11 + $0x40] sm:$0xf]
    %v3743 = vld [vmem:[#allocation11 + $0x44] sm:$0xf]
    %v3744 = vld [vmem:[#allocation11 + $0x48] sm:$0xf]
    %v3745 = vld [vmem:[#allocation11 + $0x4c] sm:$0xf]
    %v3746 = vld [vmem:[#allocation11 + $0x50] sm:$0xf]
    %v3747 = vld [vmem:[#allocation11 + $0x54] sm:$0xf]
    %v3748 = vld [vmem:[#allocation11 + $0x58] sm:$0xf]
    %v3749 = vld [vmem:[#allocation11 + $0x5c] sm:$0xf]
    %v3750 = vld [vmem:[#allocation11 + $0x60] sm:$0xf]
    %v3751 = vld [vmem:[#allocation11 + $0x64] sm:$0xf]
    %v3752 = vld [vmem:[#allocation11 + $0x68] sm:$0xf]
    %v3753 = vld [vmem:[#allocation11 + $0x6c] sm:$0xf]
    %v3754 = vld [vmem:[#allocation11 + $0x70] sm:$0xf]
    %v3755 = vld [vmem:[#allocation11 + $0x74] sm:$0xf]
    %v3756 = vld [vmem:[#allocation11 + $0x78] sm:$0xf]
    %v3757 = vld [vmem:[#allocation11 + $0x7c] sm:$0xf]
    %v3758 = vld [vmem:[#allocation13] sm:$0x1]
    %v3760 = vlaneseq
    %v3761 = vshrl.u32 %v3760, 7
    %v3762 = vsub.s32 0, %v3761
    %v3763 = vrot.slane %v3758, %v3762
    %v3797 = vunpack.c.l.b16 %v3726
    %v3798 = vunpack.c.l.b16 %v3727
    %v3799 = vunpack.c.l.b16 %v3728
    %v3800 = vunpack.c.l.b16 %v3729
    %v3801 = vunpack.c.l.b16 %v3730
    %v3802 = vunpack.c.l.b16 %v3731
    %v3803 = vunpack.c.l.b16 %v3732
    %v3804 = vunpack.c.l.b16 %v3733
    %v3805 = vunpack.c.l.b16 %v3734
    %v3806 = vunpack.c.l.b16 %v3735
    %v3807 = vunpack.c.l.b16 %v3736
    %v3808 = vunpack.c.l.b16 %v3737
    %v3809 = vunpack.c.l.b16 %v3738
    %v3810 = vunpack.c.l.b16 %v3739
    %v3811 = vunpack.c.l.b16 %v3740
    %v3812 = vunpack.c.l.b16 %v3741
    %v3813 = vunpack.c.l.b16 %v3742
    %v3814 = vunpack.c.l.b16 %v3743
    %v3815 = vunpack.c.l.b16 %v3744
    %v3816 = vunpack.c.l.b16 %v3745
    %v3817 = vunpack.c.l.b16 %v3746
    %v3818 = vunpack.c.l.b16 %v3747
    %v3819 = vunpack.c.l.b16 %v3748
    %v3820 = vunpack.c.l.b16 %v3749
    %v3821 = vunpack.c.l.b16 %v3750
    %v3822 = vunpack.c.l.b16 %v3751
    %v3823 = vunpack.c.l.b16 %v3752
    %v3824 = vunpack.c.l.b16 %v3753
    %v3825 = vunpack.c.l.b16 %v3754
    %v3826 = vunpack.c.l.b16 %v3755
    %v3827 = vunpack.c.l.b16 %v3756
    %v3828 = vunpack.c.l.b16 %v3757
    %v3829 = vpack.c.b16 %v3798, %v3797
    %v3830 = vpack.c.b16 %v3800, %v3799
    %v3831 = vpack.c.b16 %v3802, %v3801
    %v3832 = vpack.c.b16 %v3804, %v3803
    %v3833 = vpack.c.b16 %v3806, %v3805
    %v3834 = vpack.c.b16 %v3808, %v3807
    %v3835 = vpack.c.b16 %v3810, %v3809
    %v3836 = vpack.c.b16 %v3812, %v3811
    %v3837 = vpack.c.b16 %v3814, %v3813
    %v3838 = vpack.c.b16 %v3816, %v3815
    %v3839 = vpack.c.b16 %v3818, %v3817
    %v3840 = vpack.c.b16 %v3820, %v3819
    %v3841 = vpack.c.b16 %v3822, %v3821
    %v3842 = vpack.c.b16 %v3824, %v3823
    %v3843 = vpack.c.b16 %v3826, %v3825
    %v3844 = vpack.c.b16 %v3828, %v3827
    %3861 = vmatprep.subr.bf16.mxu0 0
    %3862 = vmatpush1.bf16.msra.mxu0 %v3829
    %3863 = vmatprep.subr.bf16.mxu0 0
    %3864 = vmatpush1.bf16.msra.mxu0 %v3830
    %3865 = vmatprep.subr.bf16.mxu0 0
    %3866 = vmatpush1.bf16.msra.mxu0 %v3831
    %3867 = vmatprep.subr.bf16.mxu0 0
    %3868 = vmatpush1.bf16.msra.mxu0 %v3832
    %3869 = vmatprep.subr.bf16.mxu0 0
    %3870 = vmatpush1.bf16.msra.mxu0 %v3833
    %3871 = vmatprep.subr.bf16.mxu0 0
    %3872 = vmatpush1.bf16.msra.mxu0 %v3834
    %3873 = vmatprep.subr.bf16.mxu0 0
    %3874 = vmatpush1.bf16.msra.mxu0 %v3835
    %3875 = vmatprep.subr.bf16.mxu0 0
    %3876 = vmatpush1.bf16.msra.mxu0 %v3836
    %3877 = vmatprep.subr.bf16.mxu0 0
    %3878 = vmatpush1.bf16.msra.mxu0 %v3837
    %3879 = vmatprep.subr.bf16.mxu0 0
    %3880 = vmatpush1.bf16.msra.mxu0 %v3838
    %3881 = vmatprep.subr.bf16.mxu0 0
    %3882 = vmatpush1.bf16.msra.mxu0 %v3839
    %3883 = vmatprep.subr.bf16.mxu0 0
    %3884 = vmatpush1.bf16.msra.mxu0 %v3840
    %3885 = vmatprep.subr.bf16.mxu0 0
    %3886 = vmatpush1.bf16.msra.mxu0 %v3841
    %3887 = vmatprep.subr.bf16.mxu0 0
    %3888 = vmatpush1.bf16.msra.mxu0 %v3842
    %3889 = vmatprep.subr.bf16.mxu0 0
    %3890 = vmatpush1.bf16.msra.mxu0 %v3843
    %3891 = vmatprep.subr.bf16.mxu0 0
    %3892 = vmatpush1.bf16.msra.mxu0 %v3844
    %3893 = vmatprep.mubr.bf16.mxu0 %v3725
    %3894 = vmatmul.mubr.bf16.gmra.mrb[0].mxu0 %v3724
    %v3895 = vpop.f32.mrb[0].mxu0
    %v3896 = vadd.f32 %v3763, %v3895
    %v3897 = vpop.f32.mrb[0].mxu0
    %v3898 = vpop.f32.mrb[0].mxu0
    %v3899 = vpop.f32.mrb[0].mxu0
    %3900 = vdwg.mxu0
    %v3901 = vmax.f32 %v3896, 0.0
    %v3902 = vpack.c.bf16 %v3901, %v3901
    %v3903 = vld [vmem:[#allocation14] sm:$0xf]
    %v3904 = vld [vmem:[#allocation14 + $0x4] sm:$0xf]
    %v3905 = vld [vmem:[#allocation14 + $0x8] sm:$0xf]
    %v3906 = vld [vmem:[#allocation14 + $0xc] sm:$0xf]
    %v3907 = vld [vmem:[#allocation14 + $0x10] sm:$0xf]
    %v3908 = vld [vmem:[#allocation14 + $0x14] sm:$0xf]
    %v3909 = vld [vmem:[#allocation14 + $0x18] sm:$0xf]
    %v3910 = vld [vmem:[#allocation14 + $0x1c] sm:$0xf]
    %v3911 = vld [vmem:[#allocation14 + $0x20] sm:$0xf]
    %v3912 = vld [vmem:[#allocation14 + $0x24] sm:$0xf]
    %v3913 = vld [vmem:[#allocation14 + $0x28] sm:$0xf]
    %v3914 = vld [vmem:[#allocation14 + $0x2c] sm:$0xf]
    %v3915 = vld [vmem:[#allocation14 + $0x30] sm:$0xf]
    %v3916 = vld [vmem:[#allocation14 + $0x34] sm:$0xf]
    %v3917 = vld [vmem:[#allocation14 + $0x38] sm:$0xf]
    %v3918 = vld [vmem:[#allocation14 + $0x3c] sm:$0xf]
    %v3919 = vld [vmem:[#allocation16] sm:$0x1]
    %v3921 = vlaneseq
    %v3922 = vshrl.u32 %v3921, 7
    %v3923 = vsub.s32 0, %v3922
    %v3924 = vrot.slane %v3919, %v3923
    %v3942 = vunpack.c.l.b16 %v3903
    %v3943 = vunpack.c.l.b16 %v3904
    %v3944 = vunpack.c.l.b16 %v3905
    %v3945 = vunpack.c.l.b16 %v3906
    %v3946 = vunpack.c.l.b16 %v3907
    %v3947 = vunpack.c.l.b16 %v3908
    %v3948 = vunpack.c.l.b16 %v3909
    %v3949 = vunpack.c.l.b16 %v3910
    %v3950 = vunpack.c.l.b16 %v3911
    %v3951 = vunpack.c.l.b16 %v3912
    %v3952 = vunpack.c.l.b16 %v3913
    %v3953 = vunpack.c.l.b16 %v3914
    %v3954 = vunpack.c.l.b16 %v3915
    %v3955 = vunpack.c.l.b16 %v3916
    %v3956 = vunpack.c.l.b16 %v3917
    %v3957 = vunpack.c.l.b16 %v3918
    %v3958 = vpack.c.b16 %v3943, %v3942
    %v3959 = vpack.c.b16 %v3945, %v3944
    %v3960 = vpack.c.b16 %v3947, %v3946
    %v3961 = vpack.c.b16 %v3949, %v3948
    %v3962 = vpack.c.b16 %v3951, %v3950
    %v3963 = vpack.c.b16 %v3953, %v3952
    %v3964 = vpack.c.b16 %v3955, %v3954
    %v3965 = vpack.c.b16 %v3957, %v3956
    %3974 = vmatprep.subr.bf16.mxu0 0
    %3975 = vmatpush1.bf16.msra.mxu0 %v3958
    %3976 = vmatprep.subr.bf16.mxu0 0
    %3977 = vmatpush1.bf16.msra.mxu0 %v3959
    %3978 = vmatprep.subr.bf16.mxu0 0
    %3979 = vmatpush1.bf16.msra.mxu0 %v3960
    %3980 = vmatprep.subr.bf16.mxu0 0
    %3981 = vmatpush1.bf16.msra.mxu0 %v3961
    %3982 = vmatprep.subr.bf16.mxu0 0
    %3983 = vmatpush1.bf16.msra.mxu0 %v3962
    %3984 = vmatprep.subr.bf16.mxu0 0
    %3985 = vmatpush1.bf16.msra.mxu0 %v3963
    %3986 = vmatprep.subr.bf16.mxu0 0
    %3987 = vmatpush1.bf16.msra.mxu0 %v3964
    %3988 = vmatprep.subr.bf16.mxu0 0
    %3989 = vmatpush1.bf16.msra.mxu0 %v3965
    %3990 = vmatprep.subr.bf16.mxu0 0
    %3991 = vmatpush1.bf16.msra.mxu0 0
    %3992 = vmatprep.subr.bf16.mxu0 0
    %3993 = vmatpush1.bf16.msra.mxu0 0
    %3994 = vmatprep.subr.bf16.mxu0 0
    %3995 = vmatpush1.bf16.msra.mxu0 0
    %3996 = vmatprep.subr.bf16.mxu0 0
    %3997 = vmatpush1.bf16.msra.mxu0 0
    %3998 = vmatprep.subr.bf16.mxu0 0
    %3999 = vmatpush1.bf16.msra.mxu0 0
    %4000 = vmatprep.subr.bf16.mxu0 0
    %4001 = vmatpush1.bf16.msra.mxu0 0
    %4002 = vmatprep.subr.bf16.mxu0 0
    %4003 = vmatpush1.bf16.msra.mxu0 0
    %4004 = vmatprep.subr.bf16.mxu0 0
    %4005 = vmatpush1.bf16.msra.mxu0 0
    %4006 = vmatprep.mubr.bf16.mxu0 0
    %4007 = vmatmul.mubr.bf16.gmra.mrb[0].mxu0 %v3902
    %v4008 = vpop.f32.mrb[0].mxu0
    %v4009 = vadd.f32 %v3924, %v4008
    %v4010 = vpop.f32.mrb[0].mxu0
    %v4011 = vpop.f32.mrb[0].mxu0
    %v4012 = vpop.f32.mrb[0].mxu0
    %4013 = vdwg.mxu0
    %4014 = vmax.xlane.f32.xlu0 %v4009
    %v4015 = vpop.xlane.xlu0 %4014
    %v4016 = vsub.f32 %v4009, %v4015
    %v4017 = vmul.f32 %v4016, 1.442695
    %v4018 = vpow.pop %v4017
    %4019 = vadd.xlane.f32.xlu0 %v4018
    %v4020 = vpop.xlane.xlu0 %4019
    %v4021 = vrcp.pop %v4020
    %v4022 = vmul.f32 %v4018, %v4021
    %4023 = vst [vmem:[#allocation17] sm:$0xff] %v4022
    // Predicated region
    $region74: #{tpu_custom_call.1} parent=1 // pred_check
      _
    $region75: #{tpu_custom_call.1} parent=1 // pred_check_branch
      %4025 = sbr.rel (0) target = $region77
    $region76: #{tpu_custom_call.1} parent=1 // pred_region
      %s4027 = ssub.s32 128, 128
      %4028 = vsyncadd [#allocation4], %s4027
      %s4030 = sshll.u32 [#allocation17], 4
      %s4031 = int_to_ptr.vmem [resolvable:$true] %s4030
      %4033 = dma.vmem_to_hbm [thread:$0]  %s4031, 128, %s9, [#allocation4]
    $region77: #{tpu_custom_call.1} parent=1 // pred_fallthru
      _
    // Predicated region
    $region78: #{tpu_custom_call.1} parent=1 // pred_check
      _
    $region79: #{tpu_custom_call.1} parent=1 // pred_check_branch
      %4035 = sbr.rel (0) target = $region81
    $region80: #{tpu_custom_call.1} parent=1 // pred_region
      %s4037 = ssub.s32 768, 768
      %4038 = vsyncadd [#allocation19], %s4037
      %s4040 = sshll.u32 [#allocation18], 4
      %s4041 = int_to_ptr.vmem [resolvable:$true] %s4040
      %4043 = dma.vmem_to_hbm [thread:$0]  %s4041, 768, %s10, [#allocation19]
    $region81: #{tpu_custom_call.1} parent=1 // pred_fallthru
      _
    // Predicated region
    $region82: #{tpu_custom_call.1} parent=1 // pred_check
      _
    $region83: #{tpu_custom_call.1} parent=1 // pred_check_branch
      %4045 = sbr.rel (0) target = $region85
    $region84: #{tpu_custom_call.1} parent=1 // pred_region
      %4046 = dma.done [#allocation4], 128
    $region85: #{tpu_custom_call.1} parent=1 // pred_fallthru
      _
    // Predicated region
    $region86: #{tpu_custom_call.1} parent=1 // pred_check
      _
    $region87: #{tpu_custom_call.1} parent=1 // pred_check_branch
      %4048 = sbr.rel (0) target = $region89
    $region88: #{tpu_custom_call.1} parent=1 // pred_region
      %4049 = dma.done [#allocation19], 768
    $region89: #{tpu_custom_call.1} parent=1 // pred_fallthru
      _
    %4050 = vsyncpa [#allocation3], 1
    %4051 = vsyncpa [#allocation6], 1
    %4052 = vsyncpa [#allocation9], 1
    %4053 = vsyncpa [#allocation12], 1
    %4054 = vsyncpa [#allocation15], 1
    %4055 = vsyncpa [#allocation4], 1
    %4056 = vsyncpa [#allocation19], 1

</llo_original>
